<compile_context>
chip_gen: v7x
topology: tpu7x:2x2x1
jax: 0.10.0
libtpu: 0.0.40
codegen_flags: <defaults>
</compile_context>

<pallas_src>
import jax
import jax.numpy as jnp
import numpy as np
from jax.experimental import pallas as pl
from jax.experimental.pallas import tpu as pltpu

# Small, TPU-friendly stand-ins for the module defaults
# (input_dim=256*256, hidden_dim=400, latent_dim=200 in the original).
INPUT_DIM = 1024      # stands in for 256*256
HIDDEN_DIM = 256      # stands in for 400
LATENT_DIM = 128      # stands in for 200
Z_DIM = 2             # bottleneck width of mean/logvar layers (as in module)
Z_PAD = 128           # bottleneck padded to a full lane width for the MXU
MV_PAD = 2 * Z_PAD    # fused [mean | logvar] slab width (lane-dense output)
BATCH = 256
TB = 64               # batch tile: grid=(4,) -> >=2 steps per v7x TensorCore
CN = 256              # column-chunk width for the final (hidden -> input_dim) layer


def _leaky(v):
    # nn.LeakyReLU(0.2)
    return jnp.where(v > 0, v, 0.2 * v)


def vae_kernel(x_ref, eps_ref,
               w1_ref, b1_ref, w2_ref, b2_ref,
               wmv_ref, bmv_ref,
               wd1_ref, bd1_ref, wd2_ref, bd2_ref, wd3_ref, bd3_ref,
               xhat_ref, mv_ref):
    f32 = jnp.float32
    bf16 = jnp.bfloat16

    # ---- encoder (bf16 x bf16 -> f32 accumulation on the MXU) ----
    x = x_ref[...].astype(bf16)
    h1 = _leaky(jnp.dot(x, w1_ref[...], preferred_element_type=f32) + b1_ref[...])
    h2 = _leaky(jnp.dot(h1.astype(bf16), w2_ref[...], preferred_element_type=f32)
                + b2_ref[...])

    # ---- fused mean/logvar heads: one (LATENT_DIM, 256) matmul ----
    # columns [0:Z_PAD) = padded mean, [Z_PAD:2*Z_PAD) = padded logvar
    mv = jnp.dot(h2.astype(bf16), wmv_ref[...], preferred_element_type=f32) + bmv_ref[...]
    mean_p = mv[:, :Z_PAD]
    logvar_p = mv[:, Z_PAD:]

    # ---- reparameterization: z = mean + exp(0.5 * logvar) * eps ----
    # padded logvar/mean columns are 0 and padded eps columns are 0, so padding is inert
    z = mean_p + jnp.exp(0.5 * logvar_p) * eps_ref[...]

    # ---- decoder ----
    d1 = _leaky(jnp.dot(z.astype(bf16), wd1_ref[...], preferred_element_type=f32)
                + bd1_ref[...])
    d2 = _leaky(jnp.dot(d1.astype(bf16), wd2_ref[...], preferred_element_type=f32)
                + bd2_ref[...])
    d2b = d2.astype(bf16)

    # final layer in 256-wide column chunks: bounds live vregs, overlaps
    # sigmoid (EUP) + store with the next chunk's MXU work.
    for c in range(INPUT_DIM // CN):
        lo = c * CN
        d3_c = (jnp.dot(d2b, wd3_ref[:, lo:lo + CN], preferred_element_type=f32)
                + bd3_ref[:, lo:lo + CN])
        xhat_ref[:, lo:lo + CN] = jax.nn.sigmoid(d3_c)

    mv_ref[...] = mv          # lane-dense (TB, 256) store; sliced to (N, 2) in wrapper


def _full_spec(shape):
    # grid-invariant weight / bias block: never re-DMA'd, so single-buffer it.
    return pl.BlockSpec(shape, lambda i: tuple(0 for _ in shape),
                        pipeline_mode=pl.Buffered(1))


def vae_forward(x, eps_padded, p):
    n = x.shape[0]
    assert n % TB == 0
    grid = (n // TB,)

    in_specs = [
        pl.BlockSpec((TB, INPUT_DIM), lambda i: (i, 0)),   # x
        pl.BlockSpec((TB, Z_PAD), lambda i: (i, 0)),       # eps (padded)
        _full_spec((INPUT_DIM, HIDDEN_DIM)), _full_spec((1, HIDDEN_DIM)),   # w1, b1
        _full_spec((HIDDEN_DIM, LATENT_DIM)), _full_spec((1, LATENT_DIM)),  # w2, b2
        _full_spec((LATENT_DIM, MV_PAD)), _full_spec((1, MV_PAD)),          # wmv, bmv
        _full_spec((Z_PAD, LATENT_DIM)), _full_spec((1, LATENT_DIM)),       # wd1, bd1
        _full_spec((LATENT_DIM, HIDDEN_DIM)), _full_spec((1, HIDDEN_DIM)),  # wd2, bd2
        _full_spec((HIDDEN_DIM, INPUT_DIM)), _full_spec((1, INPUT_DIM)),    # wd3, bd3
    ]
    out_specs = [
        pl.BlockSpec((TB, INPUT_DIM), lambda i: (i, 0)),   # x_hat
        pl.BlockSpec((TB, MV_PAD), lambda i: (i, 0)),      # [mean | logvar] slab
    ]
    out_shape = (
        jax.ShapeDtypeStruct((n, INPUT_DIM), jnp.float32),
        jax.ShapeDtypeStruct((n, MV_PAD), jnp.float32),
    )

    x_hat, mv = pl.pallas_call(
        vae_kernel,
        out_shape=out_shape,
        grid_spec=pltpu.PrefetchScalarGridSpec(
            num_scalar_prefetch=0,
            grid=grid,
            in_specs=in_specs,
            out_specs=out_specs,
        ),
        compiler_params=pltpu.CompilerParams(
            dimension_semantics=("parallel",),
            vmem_limit_bytes=8 << 20,
        ),
    )(x, eps_padded,
      p["w1"], p["b1"], p["w2"], p["b2"],
      p["wmv_p"], p["bmv_p"],
      p["wd1_p"], p["bd1"], p["wd2"], p["bd2"], p["wd3"], p["bd3"])

    # free layout plumbing in the wrapper (lane-dense kernel stores)
    mean = mv[:, :Z_DIM]
    logvar = mv[:, Z_PAD:Z_PAD + Z_DIM]
    return x_hat, mean, logvar


def _init_linear(key, fan_in, fan_out):
    # matches torch nn.Linear default init: U(-1/sqrt(fan_in), 1/sqrt(fan_in));
    # weights are stored in bf16 (native MXU dtype, half the HBM bytes), biases in f32.
    kw, kb = jax.random.split(key)
    bound = 1.0 / np.sqrt(fan_in)
    w = jax.random.uniform(kw, (fan_in, fan_out), jnp.float32, -bound, bound)
    b = jax.random.uniform(kb, (1, fan_out), jnp.float32, -bound, bound)
    return w.astype(jnp.bfloat16), b


def make_params(key):
    ks = jax.random.split(key, 8)
    w1, b1 = _init_linear(ks[0], INPUT_DIM, HIDDEN_DIM)
    w2, b2 = _init_linear(ks[1], HIDDEN_DIM, LATENT_DIM)
    wm, bm = _init_linear(ks[2], LATENT_DIM, Z_DIM)
    wv, bv = _init_linear(ks[3], LATENT_DIM, Z_DIM)
    wd1, bd1 = _init_linear(ks[4], Z_DIM, LATENT_DIM)
    wd2, bd2 = _init_linear(ks[5], LATENT_DIM, HIDDEN_DIM)
    wd3, bd3 = _init_linear(ks[6], HIDDEN_DIM, INPUT_DIM)

    # fused + zero-padded [mean | logvar] head: (LATENT_DIM, 256) weight, (1, 256) bias
    wmv_p = jnp.zeros((LATENT_DIM, MV_PAD), jnp.bfloat16)
    wmv_p = wmv_p.at[:, :Z_DIM].set(wm).at[:, Z_PAD:Z_PAD + Z_DIM].set(wv)
    bmv_p = jnp.zeros((1, MV_PAD), jnp.float32)
    bmv_p = bmv_p.at[:, :Z_DIM].set(bm).at[:, Z_PAD:Z_PAD + Z_DIM].set(bv)
    # decoder input layer padded from 2 -> Z_PAD rows (padding rows are 0 -> inert)
    wd1_p = jnp.zeros((Z_PAD, LATENT_DIM), jnp.bfloat16).at[:Z_DIM, :].set(wd1)

    return dict(w1=w1, b1=b1, w2=w2, b2=b2,
                wm=wm, bm=bm, wv=wv, bv=bv,
                wd1=wd1, bd1=bd1, wd2=wd2, bd2=bd2, wd3=wd3, bd3=bd3,
                wmv_p=wmv_p, bmv_p=bmv_p, wd1_p=wd1_p)


def vae_ref(x, eps, p):
    # pure-JAX reference (same math as the PyTorch module), using the same
    # bf16 activations / bf16 weights with f32 accumulation as the kernel.
    f32 = jnp.float32
    bf16 = jnp.bfloat16

    def lin(a, w, b):
        return jnp.dot(a.astype(bf16), w, preferred_element_type=f32) + b

    h1 = _leaky(lin(x, p["w1"], p["b1"]))
    h2 = _leaky(lin(h1, p["w2"], p["b2"]))
    mean = lin(h2, p["wm"], p["bm"])
    logvar = lin(h2, p["wv"], p["bv"])
    z = mean + jnp.exp(0.5 * logvar) * eps
    d1 = _leaky(lin(z, p["wd1"], p["bd1"]))
    d2 = _leaky(lin(d1, p["wd2"], p["bd2"]))
    x_hat = jax.nn.sigmoid(lin(d2, p["wd3"], p["bd3"]))
    return x_hat, mean, logvar


if __name__ == "__main__":
    key = jax.random.PRNGKey(0)
    k_param, k_x, k_eps = jax.random.split(key, 3)

    params = make_params(k_param)
    x = jax.random.uniform(k_x, (BATCH, INPUT_DIM), jnp.float32)   # "image" pixels in [0,1)
    eps = jax.random.normal(k_eps, (BATCH, Z_DIM), jnp.float32)    # torch.randn_like(var)
    eps_padded = jnp.zeros((BATCH, Z_PAD), jnp.float32).at[:, :Z_DIM].set(eps)

    x_hat, mean, logvar = jax.jit(vae_forward)(x, eps_padded, params)
    jax.block_until_ready((x_hat, mean, logvar))

    # sanity check against a plain-JAX reference (bf16 products, f32 accumulation)
    x_hat_r, mean_r, logvar_r = vae_ref(x, eps, params)
    np.testing.assert_allclose(np.asarray(mean), np.asarray(mean_r), rtol=1e-2, atol=1e-2)
    np.testing.assert_allclose(np.asarray(logvar), np.asarray(logvar_r), rtol=1e-2, atol=1e-2)
    np.testing.assert_allclose(np.asarray(x_hat), np.asarray(x_hat_r), rtol=1e-2, atol=1e-2)

    print("KERNEL_OK")
</pallas_src>

<mosaic_0001>
module attributes {stable_mosaic.version = 11 : i64} {
  func.func @vae_kernel(%arg0: i32, %arg1: memref<64x1024xf32, #tpu.memory_space<vmem>>, %arg2: memref<64x128xf32, #tpu.memory_space<vmem>>, %arg3: memref<1024x256xbf16, #tpu.memory_space<vmem>>, %arg4: memref<1x256xf32, #tpu.memory_space<vmem>>, %arg5: memref<256x128xbf16, #tpu.memory_space<vmem>>, %arg6: memref<1x128xf32, #tpu.memory_space<vmem>>, %arg7: memref<128x256xbf16, #tpu.memory_space<vmem>>, %arg8: memref<1x256xf32, #tpu.memory_space<vmem>>, %arg9: memref<128x128xbf16, #tpu.memory_space<vmem>>, %arg10: memref<1x128xf32, #tpu.memory_space<vmem>>, %arg11: memref<128x256xbf16, #tpu.memory_space<vmem>>, %arg12: memref<1x256xf32, #tpu.memory_space<vmem>>, %arg13: memref<256x1024xbf16, #tpu.memory_space<vmem>>, %arg14: memref<1x1024xf32, #tpu.memory_space<vmem>>, %arg15: memref<64x1024xf32, #tpu.memory_space<vmem>>, %arg16: memref<64x256xf32, #tpu.memory_space<vmem>>) attributes {dimension_semantics = [#tpu.dimension_semantics<parallel>], iteration_bounds = array<i64: 4>, scalar_prefetch = 0 : i64, scratch_operands = 0 : i64, tpu.core_type = #tpu.core_type<tc>, window_params = [{transform_indices = @transform_0, window_bounds = array<i64: 64, 1024>}, {transform_indices = @transform_1, window_bounds = array<i64: 64, 128>}, {pipeline_mode = #tpu.pipeline_mode<synchronous>, transform_indices = @transform_2, window_bounds = array<i64: 1024, 256>}, {pipeline_mode = #tpu.pipeline_mode<synchronous>, transform_indices = @transform_3, window_bounds = array<i64: 1, 256>}, {pipeline_mode = #tpu.pipeline_mode<synchronous>, transform_indices = @transform_4, window_bounds = array<i64: 256, 128>}, {pipeline_mode = #tpu.pipeline_mode<synchronous>, transform_indices = @transform_5, window_bounds = array<i64: 1, 128>}, {pipeline_mode = #tpu.pipeline_mode<synchronous>, transform_indices = @transform_6, window_bounds = array<i64: 128, 256>}, {pipeline_mode = #tpu.pipeline_mode<synchronous>, transform_indices = @transform_7, window_bounds = array<i64: 1, 256>}, {pipeline_mode = #tpu.pipeline_mode<synchronous>, transform_indices = @transform_8, window_bounds = array<i64: 128, 128>}, {pipeline_mode = #tpu.pipeline_mode<synchronous>, transform_indices = @transform_9, window_bounds = array<i64: 1, 128>}, {pipeline_mode = #tpu.pipeline_mode<synchronous>, transform_indices = @transform_10, window_bounds = array<i64: 128, 256>}, {pipeline_mode = #tpu.pipeline_mode<synchronous>, transform_indices = @transform_11, window_bounds = array<i64: 1, 256>}, {pipeline_mode = #tpu.pipeline_mode<synchronous>, transform_indices = @transform_12, window_bounds = array<i64: 256, 1024>}, {pipeline_mode = #tpu.pipeline_mode<synchronous>, transform_indices = @transform_13, window_bounds = array<i64: 1, 1024>}, {transform_indices = @transform_14, window_bounds = array<i64: 64, 1024>}, {transform_indices = @transform_15, window_bounds = array<i64: 64, 256>}]} {
    %c0 = arith.constant 0 : index
    %c0_0 = arith.constant 0 : index
    %0 = vector.load %arg1[%c0, %c0_0] : memref<64x1024xf32, #tpu.memory_space<vmem>>, vector<64x1024xf32>
    %1 = arith.truncf %0 : vector<64x1024xf32> to vector<64x1024xbf16>
    %c0_1 = arith.constant 0 : index
    %c0_2 = arith.constant 0 : index
    %2 = vector.load %arg3[%c0_1, %c0_2] : memref<1024x256xbf16, #tpu.memory_space<vmem>>, vector<1024x256xbf16>
    %cst = arith.constant dense<0.000000e+00> : vector<64x256xf32>
    %3 = tpu.matmul %1, %2, %cst {dimension_numbers = #tpu.dot_dimension_numbers<[1], [0], [0], [1], [0, 0, 1, 1], [], []>} : vector<64x1024xbf16>, vector<1024x256xbf16>, vector<64x256xf32> -> vector<64x256xf32>
    %c0_3 = arith.constant 0 : index
    %c0_4 = arith.constant 0 : index
    %4 = vector.load %arg4[%c0_3, %c0_4] : memref<1x256xf32, #tpu.memory_space<vmem>>, vector<1x256xf32>
    %5 = vector.broadcast %4 : vector<1x256xf32> to vector<64x256xf32>
    %6 = arith.addf %3, %5 : vector<64x256xf32>
    %cst_5 = arith.constant 0.000000e+00 : f32
    %7 = vector.broadcast %cst_5 : f32 to vector<64x256xf32>
    %8 = arith.cmpf ogt, %6, %7 : vector<64x256xf32>
    %cst_6 = arith.constant 2.000000e-01 : f32
    %9 = vector.broadcast %cst_6 : f32 to vector<64x256xf32>
    %10 = arith.mulf %9, %6 : vector<64x256xf32>
    %11 = arith.select %8, %6, %10 : vector<64x256xi1>, vector<64x256xf32>
    %12 = arith.truncf %11 : vector<64x256xf32> to vector<64x256xbf16>
    %c0_7 = arith.constant 0 : index
    %c0_8 = arith.constant 0 : index
    %13 = vector.load %arg5[%c0_7, %c0_8] : memref<256x128xbf16, #tpu.memory_space<vmem>>, vector<256x128xbf16>
    %cst_9 = arith.constant dense<0.000000e+00> : vector<64x128xf32>
    %14 = tpu.matmul %12, %13, %cst_9 {dimension_numbers = #tpu.dot_dimension_numbers<[1], [0], [0], [1], [0, 0, 1, 1], [], []>} : vector<64x256xbf16>, vector<256x128xbf16>, vector<64x128xf32> -> vector<64x128xf32>
    %c0_10 = arith.constant 0 : index
    %c0_11 = arith.constant 0 : index
    %15 = vector.load %arg6[%c0_10, %c0_11] : memref<1x128xf32, #tpu.memory_space<vmem>>, vector<1x128xf32>
    %16 = vector.broadcast %15 : vector<1x128xf32> to vector<64x128xf32>
    %17 = arith.addf %14, %16 : vector<64x128xf32>
    %cst_12 = arith.constant 0.000000e+00 : f32
    %18 = vector.broadcast %cst_12 : f32 to vector<64x128xf32>
    %19 = arith.cmpf ogt, %17, %18 : vector<64x128xf32>
    %cst_13 = arith.constant 2.000000e-01 : f32
    %20 = vector.broadcast %cst_13 : f32 to vector<64x128xf32>
    %21 = arith.mulf %20, %17 : vector<64x128xf32>
    %22 = arith.select %19, %17, %21 : vector<64x128xi1>, vector<64x128xf32>
    %23 = arith.truncf %22 : vector<64x128xf32> to vector<64x128xbf16>
    %c0_14 = arith.constant 0 : index
    %c0_15 = arith.constant 0 : index
    %24 = vector.load %arg7[%c0_14, %c0_15] : memref<128x256xbf16, #tpu.memory_space<vmem>>, vector<128x256xbf16>
    %cst_16 = arith.constant dense<0.000000e+00> : vector<64x256xf32>
    %25 = tpu.matmul %23, %24, %cst_16 {dimension_numbers = #tpu.dot_dimension_numbers<[1], [0], [0], [1], [0, 0, 1, 1], [], []>} : vector<64x128xbf16>, vector<128x256xbf16>, vector<64x256xf32> -> vector<64x256xf32>
    %c0_17 = arith.constant 0 : index
    %c0_18 = arith.constant 0 : index
    %26 = vector.load %arg8[%c0_17, %c0_18] : memref<1x256xf32, #tpu.memory_space<vmem>>, vector<1x256xf32>
    %27 = vector.broadcast %26 : vector<1x256xf32> to vector<64x256xf32>
    %28 = arith.addf %25, %27 : vector<64x256xf32>
    %29 = vector.extract_strided_slice %28 {offsets = [0, 0], sizes = [64, 128], strides = [1, 1]} : vector<64x256xf32> to vector<64x128xf32>
    %30 = vector.extract_strided_slice %28 {offsets = [0, 128], sizes = [64, 128], strides = [1, 1]} : vector<64x256xf32> to vector<64x128xf32>
    %cst_19 = arith.constant 5.000000e-01 : f32
    %31 = vector.broadcast %cst_19 : f32 to vector<64x128xf32>
    %32 = arith.mulf %31, %30 : vector<64x128xf32>
    %33 = math.exp %32 : vector<64x128xf32>
    %c0_20 = arith.constant 0 : index
    %c0_21 = arith.constant 0 : index
    %34 = vector.load %arg2[%c0_20, %c0_21] : memref<64x128xf32, #tpu.memory_space<vmem>>, vector<64x128xf32>
    %35 = arith.mulf %33, %34 : vector<64x128xf32>
    %36 = arith.addf %29, %35 : vector<64x128xf32>
    %37 = arith.truncf %36 : vector<64x128xf32> to vector<64x128xbf16>
    %c0_22 = arith.constant 0 : index
    %c0_23 = arith.constant 0 : index
    %38 = vector.load %arg9[%c0_22, %c0_23] : memref<128x128xbf16, #tpu.memory_space<vmem>>, vector<128x128xbf16>
    %cst_24 = arith.constant dense<0.000000e+00> : vector<64x128xf32>
    %39 = tpu.matmul %37, %38, %cst_24 {dimension_numbers = #tpu.dot_dimension_numbers<[1], [0], [0], [1], [0, 0, 1, 1], [], []>} : vector<64x128xbf16>, vector<128x128xbf16>, vector<64x128xf32> -> vector<64x128xf32>
    %c0_25 = arith.constant 0 : index
    %c0_26 = arith.constant 0 : index
    %40 = vector.load %arg10[%c0_25, %c0_26] : memref<1x128xf32, #tpu.memory_space<vmem>>, vector<1x128xf32>
    %41 = vector.broadcast %40 : vector<1x128xf32> to vector<64x128xf32>
    %42 = arith.addf %39, %41 : vector<64x128xf32>
    %cst_27 = arith.constant 0.000000e+00 : f32
    %43 = vector.broadcast %cst_27 : f32 to vector<64x128xf32>
    %44 = arith.cmpf ogt, %42, %43 : vector<64x128xf32>
    %cst_28 = arith.constant 2.000000e-01 : f32
    %45 = vector.broadcast %cst_28 : f32 to vector<64x128xf32>
    %46 = arith.mulf %45, %42 : vector<64x128xf32>
    %47 = arith.select %44, %42, %46 : vector<64x128xi1>, vector<64x128xf32>
    %48 = arith.truncf %47 : vector<64x128xf32> to vector<64x128xbf16>
    %c0_29 = arith.constant 0 : index
    %c0_30 = arith.constant 0 : index
    %49 = vector.load %arg11[%c0_29, %c0_30] : memref<128x256xbf16, #tpu.memory_space<vmem>>, vector<128x256xbf16>
    %cst_31 = arith.constant dense<0.000000e+00> : vector<64x256xf32>
    %50 = tpu.matmul %48, %49, %cst_31 {dimension_numbers = #tpu.dot_dimension_numbers<[1], [0], [0], [1], [0, 0, 1, 1], [], []>} : vector<64x128xbf16>, vector<128x256xbf16>, vector<64x256xf32> -> vector<64x256xf32>
    %c0_32 = arith.constant 0 : index
    %c0_33 = arith.constant 0 : index
    %51 = vector.load %arg12[%c0_32, %c0_33] : memref<1x256xf32, #tpu.memory_space<vmem>>, vector<1x256xf32>
    %52 = vector.broadcast %51 : vector<1x256xf32> to vector<64x256xf32>
    %53 = arith.addf %50, %52 : vector<64x256xf32>
    %cst_34 = arith.constant 0.000000e+00 : f32
    %54 = vector.broadcast %cst_34 : f32 to vector<64x256xf32>
    %55 = arith.cmpf ogt, %53, %54 : vector<64x256xf32>
    %cst_35 = arith.constant 2.000000e-01 : f32
    %56 = vector.broadcast %cst_35 : f32 to vector<64x256xf32>
    %57 = arith.mulf %56, %53 : vector<64x256xf32>
    %58 = arith.select %55, %53, %57 : vector<64x256xi1>, vector<64x256xf32>
    %59 = arith.truncf %58 : vector<64x256xf32> to vector<64x256xbf16>
    %c0_36 = arith.constant 0 : index
    %c0_37 = arith.constant 0 : index
    %60 = vector.load %arg13[%c0_36, %c0_37] : memref<256x1024xbf16, #tpu.memory_space<vmem>>, vector<256x256xbf16>
    %cst_38 = arith.constant dense<0.000000e+00> : vector<64x256xf32>
    %61 = tpu.matmul %59, %60, %cst_38 {dimension_numbers = #tpu.dot_dimension_numbers<[1], [0], [0], [1], [0, 0, 1, 1], [], []>} : vector<64x256xbf16>, vector<256x256xbf16>, vector<64x256xf32> -> vector<64x256xf32>
    %c0_39 = arith.constant 0 : index
    %c0_40 = arith.constant 0 : index
    %62 = vector.load %arg14[%c0_39, %c0_40] : memref<1x1024xf32, #tpu.memory_space<vmem>>, vector<1x256xf32>
    %63 = vector.broadcast %62 : vector<1x256xf32> to vector<64x256xf32>
    %64 = arith.addf %61, %63 : vector<64x256xf32>
    %65 = arith.negf %64 : vector<64x256xf32>
    %66 = math.exp %65 : vector<64x256xf32>
    %cst_41 = arith.constant 1.000000e+00 : f32
    %67 = vector.broadcast %cst_41 : f32 to vector<64x256xf32>
    %68 = arith.addf %67, %66 : vector<64x256xf32>
    %69 = arith.divf %67, %68 : vector<64x256xf32>
    %c0_42 = arith.constant 0 : index
    %c0_43 = arith.constant 0 : index
    %70 = vector.load %arg15[%c0_42, %c0_43] : memref<64x1024xf32, #tpu.memory_space<vmem>>, vector<64x256xf32>
    tpu.vector_store %arg15[%c0_42, %c0_43], %69 {strides = array<i32>} : memref<64x1024xf32, #tpu.memory_space<vmem>>, vector<64x256xf32>,
    %c0_44 = arith.constant 0 : index
    %c256 = arith.constant 256 : index
    %71 = vector.load %arg13[%c0_44, %c256] : memref<256x1024xbf16, #tpu.memory_space<vmem>>, vector<256x256xbf16>
    %cst_45 = arith.constant dense<0.000000e+00> : vector<64x256xf32>
    %72 = tpu.matmul %59, %71, %cst_45 {dimension_numbers = #tpu.dot_dimension_numbers<[1], [0], [0], [1], [0, 0, 1, 1], [], []>} : vector<64x256xbf16>, vector<256x256xbf16>, vector<64x256xf32> -> vector<64x256xf32>
    %c0_46 = arith.constant 0 : index
    %c256_47 = arith.constant 256 : index
    %73 = vector.load %arg14[%c0_46, %c256_47] : memref<1x1024xf32, #tpu.memory_space<vmem>>, vector<1x256xf32>
    %74 = vector.broadcast %73 : vector<1x256xf32> to vector<64x256xf32>
    %75 = arith.addf %72, %74 : vector<64x256xf32>
    %76 = arith.negf %75 : vector<64x256xf32>
    %77 = math.exp %76 : vector<64x256xf32>
    %cst_48 = arith.constant 1.000000e+00 : f32
    %78 = vector.broadcast %cst_48 : f32 to vector<64x256xf32>
    %79 = arith.addf %78, %77 : vector<64x256xf32>
    %80 = arith.divf %78, %79 : vector<64x256xf32>
    %c0_49 = arith.constant 0 : index
    %c256_50 = arith.constant 256 : index
    %81 = vector.load %arg15[%c0_49, %c256_50] : memref<64x1024xf32, #tpu.memory_space<vmem>>, vector<64x256xf32>
    tpu.vector_store %arg15[%c0_49, %c256_50], %80 {strides = array<i32>} : memref<64x1024xf32, #tpu.memory_space<vmem>>, vector<64x256xf32>,
    %c0_51 = arith.constant 0 : index
    %c512 = arith.constant 512 : index
    %82 = vector.load %arg13[%c0_51, %c512] : memref<256x1024xbf16, #tpu.memory_space<vmem>>, vector<256x256xbf16>
    %cst_52 = arith.constant dense<0.000000e+00> : vector<64x256xf32>
    %83 = tpu.matmul %59, %82, %cst_52 {dimension_numbers = #tpu.dot_dimension_numbers<[1], [0], [0], [1], [0, 0, 1, 1], [], []>} : vector<64x256xbf16>, vector<256x256xbf16>, vector<64x256xf32> -> vector<64x256xf32>
    %c0_53 = arith.constant 0 : index
    %c512_54 = arith.constant 512 : index
    %84 = vector.load %arg14[%c0_53, %c512_54] : memref<1x1024xf32, #tpu.memory_space<vmem>>, vector<1x256xf32>
    %85 = vector.broadcast %84 : vector<1x256xf32> to vector<64x256xf32>
    %86 = arith.addf %83, %85 : vector<64x256xf32>
    %87 = arith.negf %86 : vector<64x256xf32>
    %88 = math.exp %87 : vector<64x256xf32>
    %cst_55 = arith.constant 1.000000e+00 : f32
    %89 = vector.broadcast %cst_55 : f32 to vector<64x256xf32>
    %90 = arith.addf %89, %88 : vector<64x256xf32>
    %91 = arith.divf %89, %90 : vector<64x256xf32>
    %c0_56 = arith.constant 0 : index
    %c512_57 = arith.constant 512 : index
    %92 = vector.load %arg15[%c0_56, %c512_57] : memref<64x1024xf32, #tpu.memory_space<vmem>>, vector<64x256xf32>
    tpu.vector_store %arg15[%c0_56, %c512_57], %91 {strides = array<i32>} : memref<64x1024xf32, #tpu.memory_space<vmem>>, vector<64x256xf32>,
    %c0_58 = arith.constant 0 : index
    %c768 = arith.constant 768 : index
    %93 = vector.load %arg13[%c0_58, %c768] : memref<256x1024xbf16, #tpu.memory_space<vmem>>, vector<256x256xbf16>
    %cst_59 = arith.constant dense<0.000000e+00> : vector<64x256xf32>
    %94 = tpu.matmul %59, %93, %cst_59 {dimension_numbers = #tpu.dot_dimension_numbers<[1], [0], [0], [1], [0, 0, 1, 1], [], []>} : vector<64x256xbf16>, vector<256x256xbf16>, vector<64x256xf32> -> vector<64x256xf32>
    %c0_60 = arith.constant 0 : index
    %c768_61 = arith.constant 768 : index
    %95 = vector.load %arg14[%c0_60, %c768_61] : memref<1x1024xf32, #tpu.memory_space<vmem>>, vector<1x256xf32>
    %96 = vector.broadcast %95 : vector<1x256xf32> to vector<64x256xf32>
    %97 = arith.addf %94, %96 : vector<64x256xf32>
    %98 = arith.negf %97 : vector<64x256xf32>
    %99 = math.exp %98 : vector<64x256xf32>
    %cst_62 = arith.constant 1.000000e+00 : f32
    %100 = vector.broadcast %cst_62 : f32 to vector<64x256xf32>
    %101 = arith.addf %100, %99 : vector<64x256xf32>
    %102 = arith.divf %100, %101 : vector<64x256xf32>
    %c0_63 = arith.constant 0 : index
    %c768_64 = arith.constant 768 : index
    %103 = vector.load %arg15[%c0_63, %c768_64] : memref<64x1024xf32, #tpu.memory_space<vmem>>, vector<64x256xf32>
    tpu.vector_store %arg15[%c0_63, %c768_64], %102 {strides = array<i32>} : memref<64x1024xf32, #tpu.memory_space<vmem>>, vector<64x256xf32>,
    %c0_65 = arith.constant 0 : index
    %c0_66 = arith.constant 0 : index
    %104 = vector.load %arg16[%c0_65, %c0_66] : memref<64x256xf32, #tpu.memory_space<vmem>>, vector<64x256xf32>
    tpu.vector_store %arg16[%c0_65, %c0_66], %28 {strides = array<i32>} : memref<64x256xf32, #tpu.memory_space<vmem>>, vector<64x256xf32>,
    return
  }
  func.func @transform_0(%arg0: i32) -> (i32, i32) {
    %c0_i32 = arith.constant 0 : i32
    %c0_i32_0 = arith.constant 0 : i32
    return %arg0, %c0_i32 : i32, i32
  }
  func.func @transform_1(%arg0: i32) -> (i32, i32) {
    %c0_i32 = arith.constant 0 : i32
    %c0_i32_0 = arith.constant 0 : i32
    return %arg0, %c0_i32 : i32, i32
  }
  func.func @transform_2(%arg0: i32) -> (i32, i32) {
    %c0_i32 = arith.constant 0 : i32
    %c0_i32_0 = arith.constant 0 : i32
    %c0_i32_1 = arith.constant 0 : i32
    return %c0_i32, %c0_i32_0 : i32, i32
  }
  func.func @transform_3(%arg0: i32) -> (i32, i32) {
    %c0_i32 = arith.constant 0 : i32
    %c0_i32_0 = arith.constant 0 : i32
    %c0_i32_1 = arith.constant 0 : i32
    return %c0_i32, %c0_i32_0 : i32, i32
  }
  func.func @transform_4(%arg0: i32) -> (i32, i32) {
    %c0_i32 = arith.constant 0 : i32
    %c0_i32_0 = arith.constant 0 : i32
    %c0_i32_1 = arith.constant 0 : i32
    return %c0_i32, %c0_i32_0 : i32, i32
  }
  func.func @transform_5(%arg0: i32) -> (i32, i32) {
    %c0_i32 = arith.constant 0 : i32
    %c0_i32_0 = arith.constant 0 : i32
    %c0_i32_1 = arith.constant 0 : i32
    return %c0_i32, %c0_i32_0 : i32, i32
  }
  func.func @transform_6(%arg0: i32) -> (i32, i32) {
    %c0_i32 = arith.constant 0 : i32
    %c0_i32_0 = arith.constant 0 : i32
    %c0_i32_1 = arith.constant 0 : i32
    return %c0_i32, %c0_i32_0 : i32, i32
  }
  func.func @transform_7(%arg0: i32) -> (i32, i32) {
    %c0_i32 = arith.constant 0 : i32
    %c0_i32_0 = arith.constant 0 : i32
    %c0_i32_1 = arith.constant 0 : i32
    return %c0_i32, %c0_i32_0 : i32, i32
  }
  func.func @transform_8(%arg0: i32) -> (i32, i32) {
    %c0_i32 = arith.constant 0 : i32
    %c0_i32_0 = arith.constant 0 : i32
    %c0_i32_1 = arith.constant 0 : i32
    return %c0_i32, %c0_i32_0 : i32, i32
  }
  func.func @transform_9(%arg0: i32) -> (i32, i32) {
    %c0_i32 = arith.constant 0 : i32
    %c0_i32_0 = arith.constant 0 : i32
    %c0_i32_1 = arith.constant 0 : i32
    return %c0_i32, %c0_i32_0 : i32, i32
  }
  func.func @transform_10(%arg0: i32) -> (i32, i32) {
    %c0_i32 = arith.constant 0 : i32
    %c0_i32_0 = arith.constant 0 : i32
    %c0_i32_1 = arith.constant 0 : i32
    return %c0_i32, %c0_i32_0 : i32, i32
  }
  func.func @transform_11(%arg0: i32) -> (i32, i32) {
    %c0_i32 = arith.constant 0 : i32
    %c0_i32_0 = arith.constant 0 : i32
    %c0_i32_1 = arith.constant 0 : i32
    return %c0_i32, %c0_i32_0 : i32, i32
  }
  func.func @transform_12(%arg0: i32) -> (i32, i32) {
    %c0_i32 = arith.constant 0 : i32
    %c0_i32_0 = arith.constant 0 : i32
    %c0_i32_1 = arith.constant 0 : i32
    return %c0_i32, %c0_i32_0 : i32, i32
  }
  func.func @transform_13(%arg0: i32) -> (i32, i32) {
    %c0_i32 = arith.constant 0 : i32
    %c0_i32_0 = arith.constant 0 : i32
    %c0_i32_1 = arith.constant 0 : i32
    return %c0_i32, %c0_i32_0 : i32, i32
  }
  func.func @transform_14(%arg0: i32) -> (i32, i32) {
    %c0_i32 = arith.constant 0 : i32
    %c0_i32_0 = arith.constant 0 : i32
    return %arg0, %c0_i32 : i32, i32
  }
  func.func @transform_15(%arg0: i32) -> (i32, i32) {
    %c0_i32 = arith.constant 0 : i32
    %c0_i32_0 = arith.constant 0 : i32
    return %arg0, %c0_i32 : i32, i32
  }
}

</mosaic_0001>

<llo_original>
// kernel: vae_forward.1
$region0: #{vae_forward.1}
  #allocation0 [shape = 'u32[]', space=smem, size = 0x4, offset = 0x4, fixed_abs, tag = 'smem constant byte address 0x4 - core index']
  #allocation1 [shape = 'u32[144,128]{1,0:T(1,128)}', space=vmem, size = 0x12000, scoped, tag = 'internal scratch']
  %s0 = inlined_call_operand.hbm [shape: f32[256,1024], index: 0, kind: input, shape index: {}]
  %s1 = inlined_call_operand.hbm [shape: f32[256,128], index: 1, kind: input, shape index: {}]
  %s2 = inlined_call_operand.hbm [shape: bf16[1024,256], index: 2, kind: input, shape index: {}]
  %s3 = inlined_call_operand.vmem [shape: f32[1,256], index: 3, kind: input, shape index: {}]
  %s4 = inlined_call_operand.hbm [shape: bf16[256,128], index: 4, kind: input, shape index: {}]
  %s5 = inlined_call_operand.vmem [shape: f32[1,128], index: 5, kind: input, shape index: {}]
  %s6 = inlined_call_operand.hbm [shape: bf16[128,256], index: 6, kind: input, shape index: {}]
  %s7 = inlined_call_operand.vmem [shape: f32[1,256], index: 7, kind: input, shape index: {}]
  %s8 = inlined_call_operand.hbm [shape: bf16[128,128], index: 8, kind: input, shape index: {}]
  %s9 = inlined_call_operand.hbm [shape: f32[1,128], index: 9, kind: input, shape index: {}]
  %s10 = inlined_call_operand.hbm [shape: bf16[128,256], index: 10, kind: input, shape index: {}]
  %s11 = inlined_call_operand.vmem [shape: f32[1,256], index: 11, kind: input, shape index: {}]
  %s12 = inlined_call_operand.hbm [shape: bf16[256,1024], index: 12, kind: input, shape index: {}]
  %s13 = inlined_call_operand.vmem [shape: f32[1,1024], index: 13, kind: input, shape index: {}]
  %s14 = inlined_call_operand.hbm [shape: f32[256,1024], index: 14, kind: output, shape index: {0}]
  %s15 = inlined_call_operand.vmem [shape: f32[256,256], index: 15, kind: output, shape index: {1}]
  %16 = xla_tuple %s14, %s15
  %s17 = sld [smem:[#allocation0]]
  $region133: #{vae_forward.1} parent=0
    _
  %s19 = ssub.s32 1, %s17
  %s20 = scalar_select 0, %s19, %s17
  $region1: #{vae_forward.1} parent=0
    #allocation2 [shape = 'u8[524288]{0}', space=vmem, size = 0x80000, scoped, tag = 'input window, operand 0']
    #allocation3 [shape = 's32[2]{0}', space=sflag, size = 0x8, scoped, tag = 'scoped memory for vae_forward.1']
    #allocation4 [shape = 's32[2]{0}', space=sflag, size = 0x8, scoped, tag = 'scoped memory for vae_forward.1']
    #allocation5 [shape = 'u8[65536]{0}', space=vmem, size = 0x10000, scoped, tag = 'input window, operand 1']
    #allocation6 [shape = 's32[2]{0}', space=sflag, size = 0x8, scoped, tag = 'scoped memory for vae_forward.1']
    #allocation7 [shape = 'u8[524288]{0}', space=vmem, size = 0x80000, scoped, tag = 'input window, operand 2, single buffered']
    #allocation8 [shape = 'u8[65536]{0}', space=vmem, size = 0x10000, scoped, tag = 'input window, operand 4, single buffered']
    #allocation9 [shape = 's32[1]{0}', space=sflag, size = 0x4, scoped, tag = 'scoped memory for vae_forward.1']
    #allocation10 [shape = 'u8[65536]{0}', space=vmem, size = 0x10000, scoped, tag = 'input window, operand 6, single buffered']
    #allocation11 [shape = 'u8[32768]{0}', space=vmem, size = 0x8000, scoped, tag = 'input window, operand 8, single buffered']
    #allocation12 [shape = 's32[1]{0}', space=sflag, size = 0x4, scoped, tag = 'scoped memory for vae_forward.1']
    #allocation13 [shape = 'u8[512]{0}', space=vmem, size = 0x400, scoped, tag = 'input window, operand 9, single buffered']
    #allocation14 [shape = 'u8[65536]{0}', space=vmem, size = 0x10000, scoped, tag = 'input window, operand 10, single buffered']
    #allocation15 [shape = 's32[1]{0}', space=sflag, size = 0x4, scoped, tag = 'scoped memory for vae_forward.1']
    #allocation16 [shape = 'u8[524288]{0}', space=vmem, size = 0x80000, scoped, tag = 'input window, operand 12, single buffered']
    #allocation17 [shape = 'u8[524288]{0}', space=vmem, size = 0x80000, scoped, tag = 'output window, operand 0']
    %21 = vsyncpa [#allocation3], 0
    %s22 = scalar_lea.sflag [#allocation3], 1
    %23 = vsyncpa %s22, 0
    %24 = vsyncpa [#allocation6], 0
    %s25 = scalar_lea.sflag [#allocation6], 1
    %26 = vsyncpa %s25, 0
    %27 = vsyncpa [#allocation9], 0
    %28 = vsyncpa [#allocation12], 0
    %29 = vsyncpa [#allocation15], 0
    %30 = vsyncpa [#allocation4], 0
    %s31 = scalar_lea.sflag [#allocation4], 1
    %32 = vsyncpa %s31, 0
    loop: start=0, step=1, limit=6
    $region2: #{vae_forward.1} parent=1 // loop_pre_header
      _
    $region3: #{vae_forward.1} parent=1 // loop_header
      %s34 = sphi 0, %s38
      %p35 = scmp.ge.s32.totalorder %s34, 6
      %s44 = sphi 0, %s46
      %s47 = sphi 0, %s44
      %s48 = sphi 0, %s47
      %s64 = sphi 0, %s48
      %s70 = sphi 0, %s72
      %s73 = sphi 0, %s70
      %s74 = sphi 0, %s73
      %s90 = sphi 0, %s74
      %s94 = sphi 0, %s94
      %s96 = sphi 0, %s94
      %s97 = sphi 0, %s96
      %s111 = sphi 0, %s97
      %s115 = sphi 0, %s115
      %s117 = sphi 0, %s115
      %s118 = sphi 0, %s117
      %s132 = sphi 0, %s118
      %s136 = sphi 0, %s136
      %s138 = sphi 0, %s136
      %s139 = sphi 0, %s138
      %s153 = sphi 0, %s139
      %s157 = sphi 0, %s157
      %s159 = sphi 0, %s157
      %s160 = sphi 0, %s159
      %s174 = sphi 0, %s160
      %s178 = sphi 0, %s178
      %s180 = sphi 0, %s178
      %s181 = sphi 0, %s180
      %s195 = sphi 0, %s181
      %s199 = sphi 0, %s199
      %s201 = sphi 0, %s199
      %s202 = sphi 0, %s201
      %s216 = sphi 0, %s202
      %s220 = sphi 0, %s220
      %s222 = sphi 0, %s220
      %s223 = sphi 0, %s222
      %s237 = sphi 0, %s223
      %s241 = sphi 0, %s241
      %s243 = sphi 0, %s241
      %s244 = sphi 0, %s243
      %s258 = sphi 0, %s244
      %s262 = sphi 0, %s262
      %s264 = sphi 0, %s262
      %s265 = sphi 0, %s264
      %s279 = sphi 0, %s265
      %s283 = sphi 0, %s283
      %s285 = sphi 0, %s283
      %s286 = sphi 0, %s285
      %s300 = sphi 0, %s286
      %s304 = sphi 0, %s304
      %s306 = sphi 0, %s304
      %s307 = sphi 0, %s306
      %s321 = sphi 0, %s307
      %s325 = sphi 0, %s325
      %s327 = sphi 0, %s325
      %s328 = sphi 0, %s327
      %s342 = sphi 0, %s328
      %s348 = sphi 0, %s350
      %s351 = sphi 0, %s348
      %s352 = sphi 0, %s351
      %s368 = sphi 0, %s352
      %s374 = sphi 0, %s376
      %s377 = sphi 0, %s374
      %s378 = sphi 0, %s377
      %s394 = sphi 0, %s378
    $region4: #{vae_forward.1} parent=1 // loop_header_branch
      %37 = sbr.rel (%p35) target = $region8
    $region5: #{vae_forward.1} parent=1 // loop_body
      %s39 = ssub.s32 %s34, 1
      %s40 = ssub.s32 %s34, 2
      %s41 = sadd.s32 %s34, 1
      %s42 = ssub.s32 %s34, %s41
      %p43 = scmp.eq.s32.totalorder %s42, 0
      %s45 = sadd.s32 %s44, 1
      %s46 = scalar_select %p43, %s44, %s45
      %p49 = pneg %p43
      %p50 = scmp.eq.s32.totalorder %s34, 3
      %p51 = por %p49, %p50
      %p52 = scmp.ne.s32.totalorder %s44, %s47
      %p53 = scmp.eq.s32.totalorder %s34, 0
      %p54 = por %p52, %p53
      %p55 = scmp.ne.s32.totalorder %s44, %s47
      %p56 = scmp.eq.s32.totalorder %s39, 3
      %p57 = por %p55, %p56
      %p58 = scmp.ne.s32.totalorder %s47, %s48
      %p59 = scmp.eq.s32.totalorder %s39, 0
      %p60 = por %p58, %p59
      %p61 = scmp.ne.s32.totalorder %s47, %s48
      %p62 = scmp.eq.s32.totalorder %s40, 3
      %p63 = por %p61, %p62
      %p65 = scmp.ne.s32.totalorder %s48, %s64
      %p66 = scmp.eq.s32.totalorder %s40, 0
      %p67 = por %p65, %p66
      %s68 = ssub.s32 %s34, %s41
      %p69 = scmp.eq.s32.totalorder %s68, 0
      %s71 = sadd.s32 %s70, 1
      %s72 = scalar_select %p69, %s70, %s71
      %p75 = pneg %p69
      %p76 = scmp.eq.s32.totalorder %s34, 3
      %p77 = por %p75, %p76
      %p78 = scmp.ne.s32.totalorder %s70, %s73
      %p79 = scmp.eq.s32.totalorder %s34, 0
      %p80 = por %p78, %p79
      %p81 = scmp.ne.s32.totalorder %s70, %s73
      %p82 = scmp.eq.s32.totalorder %s39, 3
      %p83 = por %p81, %p82
      %p84 = scmp.ne.s32.totalorder %s73, %s74
      %p85 = scmp.eq.s32.totalorder %s39, 0
      %p86 = por %p84, %p85
      %p87 = scmp.ne.s32.totalorder %s73, %s74
      %p88 = scmp.eq.s32.totalorder %s40, 3
      %p89 = por %p87, %p88
      %p91 = scmp.ne.s32.totalorder %s74, %s90
      %p92 = scmp.eq.s32.totalorder %s40, 0
      %p93 = por %p91, %p92
      %s95 = sadd.s32 %s94, 1
      %p98 = scmp.eq.s32.totalorder %s34, 3
      %p99 = scmp.ne.s32.totalorder %s94, %s96
      %p100 = scmp.eq.s32.totalorder %s34, 0
      %p101 = por %p99, %p100
      %p102 = scmp.ne.s32.totalorder %s94, %s96
      %p103 = scmp.eq.s32.totalorder %s39, 3
      %p104 = por %p102, %p103
      %p105 = scmp.ne.s32.totalorder %s96, %s97
      %p106 = scmp.eq.s32.totalorder %s39, 0
      %p107 = por %p105, %p106
      %p108 = scmp.ne.s32.totalorder %s96, %s97
      %p109 = scmp.eq.s32.totalorder %s40, 3
      %p110 = por %p108, %p109
      %p112 = scmp.ne.s32.totalorder %s97, %s111
      %p113 = scmp.eq.s32.totalorder %s40, 0
      %p114 = por %p112, %p113
      %s116 = sadd.s32 %s115, 1
      %p119 = scmp.eq.s32.totalorder %s34, 3
      %p120 = scmp.ne.s32.totalorder %s115, %s117
      %p121 = scmp.eq.s32.totalorder %s34, 0
      %p122 = por %p120, %p121
      %p123 = scmp.ne.s32.totalorder %s115, %s117
      %p124 = scmp.eq.s32.totalorder %s39, 3
      %p125 = por %p123, %p124
      %p126 = scmp.ne.s32.totalorder %s117, %s118
      %p127 = scmp.eq.s32.totalorder %s39, 0
      %p128 = por %p126, %p127
      %p129 = scmp.ne.s32.totalorder %s117, %s118
      %p130 = scmp.eq.s32.totalorder %s40, 3
      %p131 = por %p129, %p130
      %p133 = scmp.ne.s32.totalorder %s118, %s132
      %p134 = scmp.eq.s32.totalorder %s40, 0
      %p135 = por %p133, %p134
      %s137 = sadd.s32 %s136, 1
      %p140 = scmp.eq.s32.totalorder %s34, 3
      %p141 = scmp.ne.s32.totalorder %s136, %s138
      %p142 = scmp.eq.s32.totalorder %s34, 0
      %p143 = por %p141, %p142
      %p144 = scmp.ne.s32.totalorder %s136, %s138
      %p145 = scmp.eq.s32.totalorder %s39, 3
      %p146 = por %p144, %p145
      %p147 = scmp.ne.s32.totalorder %s138, %s139
      %p148 = scmp.eq.s32.totalorder %s39, 0
      %p149 = por %p147, %p148
      %p150 = scmp.ne.s32.totalorder %s138, %s139
      %p151 = scmp.eq.s32.totalorder %s40, 3
      %p152 = por %p150, %p151
      %p154 = scmp.ne.s32.totalorder %s139, %s153
      %p155 = scmp.eq.s32.totalorder %s40, 0
      %p156 = por %p154, %p155
      %s158 = sadd.s32 %s157, 1
      %p161 = scmp.eq.s32.totalorder %s34, 3
      %p162 = scmp.ne.s32.totalorder %s157, %s159
      %p163 = scmp.eq.s32.totalorder %s34, 0
      %p164 = por %p162, %p163
      %p165 = scmp.ne.s32.totalorder %s157, %s159
      %p166 = scmp.eq.s32.totalorder %s39, 3
      %p167 = por %p165, %p166
      %p168 = scmp.ne.s32.totalorder %s159, %s160
      %p169 = scmp.eq.s32.totalorder %s39, 0
      %p170 = por %p168, %p169
      %p171 = scmp.ne.s32.totalorder %s159, %s160
      %p172 = scmp.eq.s32.totalorder %s40, 3
      %p173 = por %p171, %p172
      %p175 = scmp.ne.s32.totalorder %s160, %s174
      %p176 = scmp.eq.s32.totalorder %s40, 0
      %p177 = por %p175, %p176
      %s179 = sadd.s32 %s178, 1
      %p182 = scmp.eq.s32.totalorder %s34, 3
      %p183 = scmp.ne.s32.totalorder %s178, %s180
      %p184 = scmp.eq.s32.totalorder %s34, 0
      %p185 = por %p183, %p184
      %p186 = scmp.ne.s32.totalorder %s178, %s180
      %p187 = scmp.eq.s32.totalorder %s39, 3
      %p188 = por %p186, %p187
      %p189 = scmp.ne.s32.totalorder %s180, %s181
      %p190 = scmp.eq.s32.totalorder %s39, 0
      %p191 = por %p189, %p190
      %p192 = scmp.ne.s32.totalorder %s180, %s181
      %p193 = scmp.eq.s32.totalorder %s40, 3
      %p194 = por %p192, %p193
      %p196 = scmp.ne.s32.totalorder %s181, %s195
      %p197 = scmp.eq.s32.totalorder %s40, 0
      %p198 = por %p196, %p197
      %s200 = sadd.s32 %s199, 1
      %p203 = scmp.eq.s32.totalorder %s34, 3
      %p204 = scmp.ne.s32.totalorder %s199, %s201
      %p205 = scmp.eq.s32.totalorder %s34, 0
      %p206 = por %p204, %p205
      %p207 = scmp.ne.s32.totalorder %s199, %s201
      %p208 = scmp.eq.s32.totalorder %s39, 3
      %p209 = por %p207, %p208
      %p210 = scmp.ne.s32.totalorder %s201, %s202
      %p211 = scmp.eq.s32.totalorder %s39, 0
      %p212 = por %p210, %p211
      %p213 = scmp.ne.s32.totalorder %s201, %s202
      %p214 = scmp.eq.s32.totalorder %s40, 3
      %p215 = por %p213, %p214
      %p217 = scmp.ne.s32.totalorder %s202, %s216
      %p218 = scmp.eq.s32.totalorder %s40, 0
      %p219 = por %p217, %p218
      %s221 = sadd.s32 %s220, 1
      %p224 = scmp.eq.s32.totalorder %s34, 3
      %p225 = scmp.ne.s32.totalorder %s220, %s222
      %p226 = scmp.eq.s32.totalorder %s34, 0
      %p227 = por %p225, %p226
      %p228 = scmp.ne.s32.totalorder %s220, %s222
      %p229 = scmp.eq.s32.totalorder %s39, 3
      %p230 = por %p228, %p229
      %p231 = scmp.ne.s32.totalorder %s222, %s223
      %p232 = scmp.eq.s32.totalorder %s39, 0
      %p233 = por %p231, %p232
      %p234 = scmp.ne.s32.totalorder %s222, %s223
      %p235 = scmp.eq.s32.totalorder %s40, 3
      %p236 = por %p234, %p235
      %p238 = scmp.ne.s32.totalorder %s223, %s237
      %p239 = scmp.eq.s32.totalorder %s40, 0
      %p240 = por %p238, %p239
      %s242 = sadd.s32 %s241, 1
      %p245 = scmp.eq.s32.totalorder %s34, 3
      %p246 = scmp.ne.s32.totalorder %s241, %s243
      %p247 = scmp.eq.s32.totalorder %s34, 0
      %p248 = por %p246, %p247
      %p249 = scmp.ne.s32.totalorder %s241, %s243
      %p250 = scmp.eq.s32.totalorder %s39, 3
      %p251 = por %p249, %p250
      %p252 = scmp.ne.s32.totalorder %s243, %s244
      %p253 = scmp.eq.s32.totalorder %s39, 0
      %p254 = por %p252, %p253
      %p255 = scmp.ne.s32.totalorder %s243, %s244
      %p256 = scmp.eq.s32.totalorder %s40, 3
      %p257 = por %p255, %p256
      %p259 = scmp.ne.s32.totalorder %s244, %s258
      %p260 = scmp.eq.s32.totalorder %s40, 0
      %p261 = por %p259, %p260
      %s263 = sadd.s32 %s262, 1
      %p266 = scmp.eq.s32.totalorder %s34, 3
      %p267 = scmp.ne.s32.totalorder %s262, %s264
      %p268 = scmp.eq.s32.totalorder %s34, 0
      %p269 = por %p267, %p268
      %p270 = scmp.ne.s32.totalorder %s262, %s264
      %p271 = scmp.eq.s32.totalorder %s39, 3
      %p272 = por %p270, %p271
      %p273 = scmp.ne.s32.totalorder %s264, %s265
      %p274 = scmp.eq.s32.totalorder %s39, 0
      %p275 = por %p273, %p274
      %p276 = scmp.ne.s32.totalorder %s264, %s265
      %p277 = scmp.eq.s32.totalorder %s40, 3
      %p278 = por %p276, %p277
      %p280 = scmp.ne.s32.totalorder %s265, %s279
      %p281 = scmp.eq.s32.totalorder %s40, 0
      %p282 = por %p280, %p281
      %s284 = sadd.s32 %s283, 1
      %p287 = scmp.eq.s32.totalorder %s34, 3
      %p288 = scmp.ne.s32.totalorder %s283, %s285
      %p289 = scmp.eq.s32.totalorder %s34, 0
      %p290 = por %p288, %p289
      %p291 = scmp.ne.s32.totalorder %s283, %s285
      %p292 = scmp.eq.s32.totalorder %s39, 3
      %p293 = por %p291, %p292
      %p294 = scmp.ne.s32.totalorder %s285, %s286
      %p295 = scmp.eq.s32.totalorder %s39, 0
      %p296 = por %p294, %p295
      %p297 = scmp.ne.s32.totalorder %s285, %s286
      %p298 = scmp.eq.s32.totalorder %s40, 3
      %p299 = por %p297, %p298
      %p301 = scmp.ne.s32.totalorder %s286, %s300
      %p302 = scmp.eq.s32.totalorder %s40, 0
      %p303 = por %p301, %p302
      %s305 = sadd.s32 %s304, 1
      %p308 = scmp.eq.s32.totalorder %s34, 3
      %p309 = scmp.ne.s32.totalorder %s304, %s306
      %p310 = scmp.eq.s32.totalorder %s34, 0
      %p311 = por %p309, %p310
      %p312 = scmp.ne.s32.totalorder %s304, %s306
      %p313 = scmp.eq.s32.totalorder %s39, 3
      %p314 = por %p312, %p313
      %p315 = scmp.ne.s32.totalorder %s306, %s307
      %p316 = scmp.eq.s32.totalorder %s39, 0
      %p317 = por %p315, %p316
      %p318 = scmp.ne.s32.totalorder %s306, %s307
      %p319 = scmp.eq.s32.totalorder %s40, 3
      %p320 = por %p318, %p319
      %p322 = scmp.ne.s32.totalorder %s307, %s321
      %p323 = scmp.eq.s32.totalorder %s40, 0
      %p324 = por %p322, %p323
      %s326 = sadd.s32 %s325, 1
      %p329 = scmp.eq.s32.totalorder %s34, 3
      %p330 = scmp.ne.s32.totalorder %s325, %s327
      %p331 = scmp.eq.s32.totalorder %s34, 0
      %p332 = por %p330, %p331
      %p333 = scmp.ne.s32.totalorder %s325, %s327
      %p334 = scmp.eq.s32.totalorder %s39, 3
      %p335 = por %p333, %p334
      %p336 = scmp.ne.s32.totalorder %s327, %s328
      %p337 = scmp.eq.s32.totalorder %s39, 0
      %p338 = por %p336, %p337
      %p339 = scmp.ne.s32.totalorder %s327, %s328
      %p340 = scmp.eq.s32.totalorder %s40, 3
      %p341 = por %p339, %p340
      %p343 = scmp.ne.s32.totalorder %s328, %s342
      %p344 = scmp.eq.s32.totalorder %s40, 0
      %p345 = por %p343, %p344
      %s346 = ssub.s32 %s34, %s41
      %p347 = scmp.eq.s32.totalorder %s346, 0
      %s349 = sadd.s32 %s348, 1
      %s350 = scalar_select %p347, %s348, %s349
      %p353 = pneg %p347
      %p354 = scmp.eq.s32.totalorder %s34, 3
      %p355 = por %p353, %p354
      %p356 = scmp.ne.s32.totalorder %s348, %s351
      %p357 = scmp.eq.s32.totalorder %s34, 0
      %p358 = por %p356, %p357
      %p359 = scmp.ne.s32.totalorder %s348, %s351
      %p360 = scmp.eq.s32.totalorder %s39, 3
      %p361 = por %p359, %p360
      %p362 = scmp.ne.s32.totalorder %s351, %s352
      %p363 = scmp.eq.s32.totalorder %s39, 0
      %p364 = por %p362, %p363
      %p365 = scmp.ne.s32.totalorder %s351, %s352
      %p366 = scmp.eq.s32.totalorder %s40, 3
      %p367 = por %p365, %p366
      %p369 = scmp.ne.s32.totalorder %s352, %s368
      %p370 = scmp.eq.s32.totalorder %s40, 0
      %p371 = por %p369, %p370
      %s372 = ssub.s32 %s34, %s41
      %p373 = scmp.eq.s32.totalorder %s372, 0
      %s375 = sadd.s32 %s374, 1
      %s376 = scalar_select %p373, %s374, %s375
      %p379 = pneg %p373
      %p380 = scmp.eq.s32.totalorder %s34, 3
      %p381 = por %p379, %p380
      %p382 = scmp.ne.s32.totalorder %s374, %s377
      %p383 = scmp.eq.s32.totalorder %s34, 0
      %p384 = por %p382, %p383
      %p385 = scmp.ne.s32.totalorder %s374, %s377
      %p386 = scmp.eq.s32.totalorder %s39, 3
      %p387 = por %p385, %p386
      %p388 = scmp.ne.s32.totalorder %s377, %s378
      %p389 = scmp.eq.s32.totalorder %s39, 0
      %p390 = por %p388, %p389
      %p391 = scmp.ne.s32.totalorder %s377, %s378
      %p392 = scmp.eq.s32.totalorder %s40, 3
      %p393 = por %p391, %p392
      %p395 = scmp.ne.s32.totalorder %s378, %s394
      %p396 = scmp.eq.s32.totalorder %s40, 0
      %p397 = por %p395, %p396
      %p398 = scmp.le.s32.totalorder 1, %s34
      %p399 = scmp.lt.s32.totalorder %s34, 5
      %p400 = pnand %p398, %p399
      %p401 = pneg %p400
      // Predicated region
      $region9: #{vae_forward.1} parent=5 // pred_check
        _
      $region10: #{vae_forward.1} parent=5 // pred_check_branch
        %403 = sbr.rel (%p400) target = $region12
      $region11: #{vae_forward.1} parent=5 // pred_region
        %s404 = ssub.s32 %s34, 1
        // Predicated region
        $region13: #{vae_forward.1} parent=11 // pred_check
          %p405 = pneg %p107
        $region14: #{vae_forward.1} parent=11 // pred_check_branch
          %407 = sbr.rel (%p405) target = $region16
        $region15: #{vae_forward.1} parent=11 // pred_region
          %s409 = ssub.s32 16384, 16384
          %410 = vsyncadd [#allocation6], %s409
          %s411 = sshll.u32 [#allocation7], 4
          %s412 = int_to_ptr.vmem [resolvable:$true] %s411
          %417 = dma.hbm_to_vmem [thread:$0]  %s2, 16384, %s412, [#allocation6], 128, 128, 8
        $region16: #{vae_forward.1} parent=11 // pred_fallthru
          _
        // Predicated region
        $region17: #{vae_forward.1} parent=11 // pred_check
          %p418 = pneg %p128
        $region18: #{vae_forward.1} parent=11 // pred_check_branch
          %420 = sbr.rel (%p418) target = $region20
        $region19: #{vae_forward.1} parent=11 // pred_region
          _
        $region20: #{vae_forward.1} parent=11 // pred_fallthru
          _
        // Predicated region
        $region21: #{vae_forward.1} parent=11 // pred_check
          %p421 = pneg %p149
        $region22: #{vae_forward.1} parent=11 // pred_check_branch
          %423 = sbr.rel (%p421) target = $region24
        $region23: #{vae_forward.1} parent=11 // pred_region
          %s425 = ssub.s32 2048, 2048
          %426 = vsyncadd [#allocation9], %s425
          %s427 = sshll.u32 [#allocation8], 4
          %s428 = int_to_ptr.vmem [resolvable:$true] %s427
          %433 = dma.hbm_to_vmem [thread:$0]  %s4, 2048, %s428, [#allocation9], 64, 64, 4
        $region24: #{vae_forward.1} parent=11 // pred_fallthru
          _
        // Predicated region
        $region25: #{vae_forward.1} parent=11 // pred_check
          %p434 = pneg %p170
        $region26: #{vae_forward.1} parent=11 // pred_check_branch
          %436 = sbr.rel (%p434) target = $region28
        $region27: #{vae_forward.1} parent=11 // pred_region
          _
        $region28: #{vae_forward.1} parent=11 // pred_fallthru
          _
        // Predicated region
        $region29: #{vae_forward.1} parent=11 // pred_check
          %p437 = pneg %p191
        $region30: #{vae_forward.1} parent=11 // pred_check_branch
          %439 = sbr.rel (%p437) target = $region32
        $region31: #{vae_forward.1} parent=11 // pred_region
          %s441 = ssub.s32 2048, 2048
          %442 = vsyncadd [#allocation9], %s441
          %s443 = sshll.u32 [#allocation10], 4
          %s444 = int_to_ptr.vmem [resolvable:$true] %s443
          %449 = dma.hbm_to_vmem [thread:$0]  %s6, 2048, %s444, [#allocation9], 128, 128, 8
        $region32: #{vae_forward.1} parent=11 // pred_fallthru
          _
        // Predicated region
        $region33: #{vae_forward.1} parent=11 // pred_check
          %p450 = pneg %p212
        $region34: #{vae_forward.1} parent=11 // pred_check_branch
          %452 = sbr.rel (%p450) target = $region36
        $region35: #{vae_forward.1} parent=11 // pred_region
          _
        $region36: #{vae_forward.1} parent=11 // pred_fallthru
          _
        // Predicated region
        $region37: #{vae_forward.1} parent=11 // pred_check
          %p453 = pneg %p233
        $region38: #{vae_forward.1} parent=11 // pred_check_branch
          %455 = sbr.rel (%p453) target = $region40
        $region39: #{vae_forward.1} parent=11 // pred_region
          %s457 = ssub.s32 1024, 1024
          %458 = vsyncadd [#allocation12], %s457
          %s459 = sshll.u32 [#allocation11], 4
          %s460 = int_to_ptr.vmem [resolvable:$true] %s459
          %465 = dma.hbm_to_vmem [thread:$0]  %s8, 1024, %s460, [#allocation12], 64, 64, 4
        $region40: #{vae_forward.1} parent=11 // pred_fallthru
          _
        // Predicated region
        $region41: #{vae_forward.1} parent=11 // pred_check
          %p466 = pneg %p254
        $region42: #{vae_forward.1} parent=11 // pred_check_branch
          %468 = sbr.rel (%p466) target = $region44
        $region43: #{vae_forward.1} parent=11 // pred_region
          %s470 = ssub.s32 16, 16
          %471 = vsyncadd [#allocation12], %s470
          %s473 = sshll.u32 [#allocation13], 4
          %s474 = int_to_ptr.vmem [resolvable:$true] %s473
          %476 = dma.hbm_to_vmem [thread:$0]  %s9, 16, %s474, [#allocation12]
        $region44: #{vae_forward.1} parent=11 // pred_fallthru
          _
        // Predicated region
        $region45: #{vae_forward.1} parent=11 // pred_check
          %p477 = pneg %p275
        $region46: #{vae_forward.1} parent=11 // pred_check_branch
          %479 = sbr.rel (%p477) target = $region48
        $region47: #{vae_forward.1} parent=11 // pred_region
          %s481 = ssub.s32 2048, 2048
          %482 = vsyncadd [#allocation15], %s481
          %s483 = sshll.u32 [#allocation14], 4
          %s484 = int_to_ptr.vmem [resolvable:$true] %s483
          %489 = dma.hbm_to_vmem [thread:$0]  %s10, 2048, %s484, [#allocation15], 128, 128, 8
        $region48: #{vae_forward.1} parent=11 // pred_fallthru
          _
        // Predicated region
        $region49: #{vae_forward.1} parent=11 // pred_check
          %p490 = pneg %p296
        $region50: #{vae_forward.1} parent=11 // pred_check_branch
          %492 = sbr.rel (%p490) target = $region52
        $region51: #{vae_forward.1} parent=11 // pred_region
          _
        $region52: #{vae_forward.1} parent=11 // pred_fallthru
          _
        // Predicated region
        $region53: #{vae_forward.1} parent=11 // pred_check
          %p493 = pneg %p317
        $region54: #{vae_forward.1} parent=11 // pred_check_branch
          %495 = sbr.rel (%p493) target = $region56
        $region55: #{vae_forward.1} parent=11 // pred_region
          %s497 = ssub.s32 16384, 16384
          %498 = vsyncadd [#allocation15], %s497
          %s499 = sshll.u32 [#allocation16], 4
          %s500 = int_to_ptr.vmem [resolvable:$true] %s499
          %505 = dma.hbm_to_vmem [thread:$0]  %s12, 16384, %s500, [#allocation15], 512, 512, 32
        $region56: #{vae_forward.1} parent=11 // pred_fallthru
          _
        // Predicated region
        $region57: #{vae_forward.1} parent=11 // pred_check
          %p506 = pneg %p338
        $region58: #{vae_forward.1} parent=11 // pred_check_branch
          %508 = sbr.rel (%p506) target = $region60
        $region59: #{vae_forward.1} parent=11 // pred_region
          _
        $region60: #{vae_forward.1} parent=11 // pred_fallthru
          _
      $region12: #{vae_forward.1} parent=5 // pred_fallthru
        _
      %p509 = scmp.lt.s32.totalorder %s34, 4
      // Predicated region
      $region61: #{vae_forward.1} parent=5 // pred_check
        %p510 = pneg %p509
      $region62: #{vae_forward.1} parent=5 // pred_check_branch
        %512 = sbr.rel (%p510) target = $region64
      $region63: #{vae_forward.1} parent=5 // pred_region
        // Predicated region
        $region65: #{vae_forward.1} parent=63 // pred_check
          %p513 = pneg %p54
        $region66: #{vae_forward.1} parent=63 // pred_check_branch
          %515 = sbr.rel (%p513) target = $region68
        $region67: #{vae_forward.1} parent=63 // pred_region
          %s516 = sand.u32 %s44, 1
          %s517 = scalar_lea.sflag [#allocation3], %s516
          %s518 = sand.u32 %s44, 1
          %s519 = smul.addr %s518, 512
          %s520 = scalar_lea.vmem [#allocation2], %s519
          %s521 = smul.u32 8, %s34
          %s523 = ssub.s32 8192, 8192
          %524 = vsyncadd %s517, %s523
          %s525 = smul.addr %s521, 8
          %s526 = smul.addr %s525, 128
          %s527 = scalar_lea.hbm %s0, %s526
          %s528 = sshll.u32 %s520, 4
          %s529 = int_to_ptr.vmem [resolvable:$true] %s528
          %534 = dma.hbm_to_vmem [thread:$0]  %s527, 8192, %s529, %s517, 1024, 1024, 64
        $region68: #{vae_forward.1} parent=63 // pred_fallthru
          _
        // Predicated region
        $region69: #{vae_forward.1} parent=63 // pred_check
          %p535 = pneg %p80
        $region70: #{vae_forward.1} parent=63 // pred_check_branch
          %537 = sbr.rel (%p535) target = $region72
        $region71: #{vae_forward.1} parent=63 // pred_region
          %s538 = sand.u32 %s34, 1
          %s539 = scalar_lea.sflag [#allocation6], %s538
          %s540 = sand.u32 %s70, 1
          %s541 = smul.addr %s540, 64
          %s542 = scalar_lea.vmem [#allocation5], %s541
          %s543 = smul.u32 8, %s34
          %s545 = ssub.s32 1024, 1024
          %546 = vsyncadd %s539, %s545
          %s547 = smul.addr %s543, 128
          %s548 = scalar_lea.hbm %s1, %s547
          %s549 = sshll.u32 %s542, 4
          %s550 = int_to_ptr.vmem [resolvable:$true] %s549
          %555 = dma.hbm_to_vmem [thread:$0]  %s548, 1024, %s550, %s539, 128, 128, 8
        $region72: #{vae_forward.1} parent=63 // pred_fallthru
          _
      $region64: #{vae_forward.1} parent=5 // pred_fallthru
        _
      %p556 = scmp.le.s32.totalorder 1, %s34
      %p557 = scmp.lt.s32.totalorder %s34, 5
      %p558 = pnand %p556, %p557
      %p559 = pneg %p558
      // Predicated region
      $region73: #{vae_forward.1} parent=5 // pred_check
        _
      $region74: #{vae_forward.1} parent=5 // pred_check_branch
        %561 = sbr.rel (%p558) target = $region76
      $region75: #{vae_forward.1} parent=5 // pred_region
        %s562 = ssub.s32 %s34, 1
        %s563 = sand.u32 %s47, 1
        %s564 = scalar_lea.sflag [#allocation3], %s563
        %s565 = sand.u32 %s47, 1
        %s566 = smul.addr %s565, 512
        %s567 = scalar_lea.vmem [#allocation2], %s566
        // Predicated region
        $region77: #{vae_forward.1} parent=75 // pred_check
          %p568 = pneg %p60
        $region78: #{vae_forward.1} parent=75 // pred_check_branch
          %570 = sbr.rel (%p568) target = $region80
        $region79: #{vae_forward.1} parent=75 // pred_region
          %571 = dma.done %s564, 8192
        $region80: #{vae_forward.1} parent=75 // pred_fallthru
          _
        %s572 = sand.u32 %s39, 1
        %s573 = scalar_lea.sflag [#allocation6], %s572
        %s574 = sand.u32 %s73, 1
        %s575 = smul.addr %s574, 64
        %s576 = scalar_lea.vmem [#allocation5], %s575
        // Predicated region
        $region81: #{vae_forward.1} parent=75 // pred_check
          %p577 = pneg %p86
        $region82: #{vae_forward.1} parent=75 // pred_check_branch
          %579 = sbr.rel (%p577) target = $region84
        $region83: #{vae_forward.1} parent=75 // pred_region
          %580 = dma.done %s573, 1024
        $region84: #{vae_forward.1} parent=75 // pred_fallthru
          _
        // Predicated region
        $region85: #{vae_forward.1} parent=75 // pred_check
          %p581 = pneg %p107
        $region86: #{vae_forward.1} parent=75 // pred_check_branch
          %583 = sbr.rel (%p581) target = $region88
        $region87: #{vae_forward.1} parent=75 // pred_region
          %584 = dma.done [#allocation6], 16384
        $region88: #{vae_forward.1} parent=75 // pred_fallthru
          _
        // Predicated region
        $region89: #{vae_forward.1} parent=75 // pred_check
          %p585 = pneg %p149
        $region90: #{vae_forward.1} parent=75 // pred_check_branch
          %587 = sbr.rel (%p585) target = $region92
        $region91: #{vae_forward.1} parent=75 // pred_region
          %588 = dma.done [#allocation9], 2048
        $region92: #{vae_forward.1} parent=75 // pred_fallthru
          _
        // Predicated region
        $region93: #{vae_forward.1} parent=75 // pred_check
          %p589 = pneg %p191
        $region94: #{vae_forward.1} parent=75 // pred_check_branch
          %591 = sbr.rel (%p589) target = $region96
        $region95: #{vae_forward.1} parent=75 // pred_region
          %592 = dma.done [#allocation9], 2048
        $region96: #{vae_forward.1} parent=75 // pred_fallthru
          _
        // Predicated region
        $region97: #{vae_forward.1} parent=75 // pred_check
          %p593 = pneg %p233
        $region98: #{vae_forward.1} parent=75 // pred_check_branch
          %595 = sbr.rel (%p593) target = $region100
        $region99: #{vae_forward.1} parent=75 // pred_region
          %596 = dma.done [#allocation12], 1024
        $region100: #{vae_forward.1} parent=75 // pred_fallthru
          _
        // Predicated region
        $region101: #{vae_forward.1} parent=75 // pred_check
          %p597 = pneg %p254
        $region102: #{vae_forward.1} parent=75 // pred_check_branch
          %599 = sbr.rel (%p597) target = $region104
        $region103: #{vae_forward.1} parent=75 // pred_region
          %600 = dma.done [#allocation12], 16
        $region104: #{vae_forward.1} parent=75 // pred_fallthru
          _
        // Predicated region
        $region105: #{vae_forward.1} parent=75 // pred_check
          %p601 = pneg %p275
        $region106: #{vae_forward.1} parent=75 // pred_check_branch
          %603 = sbr.rel (%p601) target = $region108
        $region107: #{vae_forward.1} parent=75 // pred_region
          %604 = dma.done [#allocation15], 2048
        $region108: #{vae_forward.1} parent=75 // pred_fallthru
          _
        // Predicated region
        $region109: #{vae_forward.1} parent=75 // pred_check
          %p605 = pneg %p317
        $region110: #{vae_forward.1} parent=75 // pred_check_branch
          %607 = sbr.rel (%p605) target = $region112
        $region111: #{vae_forward.1} parent=75 // pred_region
          %608 = dma.done [#allocation15], 16384
        $region112: #{vae_forward.1} parent=75 // pred_fallthru
          _
        %s609 = sand.u32 %s47, 1
        %s610 = scalar_lea.sflag [#allocation3], %s609
        %s611 = sand.u32 %s47, 1
        %s612 = smul.addr %s611, 512
        %s613 = scalar_lea.vmem [#allocation2], %s612
        %p614 = pneg %p60
        %p615 = pneg %p57
        %s616 = sand.u32 %s39, 1
        %s617 = scalar_lea.sflag [#allocation6], %s616
        %s618 = sand.u32 %s73, 1
        %s619 = smul.addr %s618, 64
        %s620 = scalar_lea.vmem [#allocation5], %s619
        %p621 = pneg %p86
        %p622 = pneg %p83
        %p623 = pneg %p107
        %p624 = pneg %p104
        %p625 = pneg %p128
        %p626 = pneg %p125
        %p627 = pneg %p149
        %p628 = pneg %p146
        %p629 = pneg %p170
        %p630 = pneg %p167
        %p631 = pneg %p191
        %p632 = pneg %p188
        %p633 = pneg %p212
        %p634 = pneg %p209
        %p635 = pneg %p233
        %p636 = pneg %p230
        %p637 = pneg %p254
        %p638 = pneg %p251
        %p639 = pneg %p275
        %p640 = pneg %p272
        %p641 = pneg %p296
        %p642 = pneg %p293
        %p643 = pneg %p317
        %p644 = pneg %p314
        %p645 = pneg %p338
        %p646 = pneg %p335
        %p647 = pneg %p364
        %p648 = pneg %p361
        %s649 = sand.u32 %s351, 1
        %s650 = scalar_lea.sflag [#allocation4], %s649
        %s651 = sand.u32 %s351, 1
        %s652 = smul.addr %s651, 512
        %s653 = scalar_lea.vmem [#allocation17], %s652
        %p654 = pneg %p390
        %p655 = pneg %p387
        %s656 = smul.u32 8, %s39
        %p657 = scmp.lt.s32.totalorder %s656, 31
        %s658 = scalar_select %p657, %s656, 31
        %s659 = smul.addr %s658, 2
        %s660 = smul.addr %s659, 8
        %s661 = scalar_lea.vmem %s15, %s660
        %s662 = smul.u32 8, %s39
        %s663 = smul.u32 8, %s39
        %s664 = smul.u32 8, %s39
        %s665 = smul.u32 8, %s39
        %p666 = scmp.lt.s32.totalorder %s665, 31
        %s667 = scalar_select %p666, %s665, 31
        %s668 = smul.addr %s667, 2
        %s669 = smul.addr %s668, 8
        %s670 = scalar_lea.vmem %s15, %s669
        %s671 = smul.u32 8, %s39
        %v673 = vld [vmem:[%s567] sm:$0xff]
        %v674 = vld [vmem:[%s567 + $0x8] sm:$0xff]
        %v675 = vld [vmem:[%s567 + $0x10] sm:$0xff]
        %v676 = vld [vmem:[%s567 + $0x18] sm:$0xff]
        %v677 = vld [vmem:[%s567 + $0x20] sm:$0xff]
        %v678 = vld [vmem:[%s567 + $0x28] sm:$0xff]
        %v679 = vld [vmem:[%s567 + $0x30] sm:$0xff]
        %v680 = vld [vmem:[%s567 + $0x38] sm:$0xff]
        %v681 = vld [vmem:[%s567 + $0x40] sm:$0xff]
        %v682 = vld [vmem:[%s567 + $0x48] sm:$0xff]
        %v683 = vld [vmem:[%s567 + $0x50] sm:$0xff]
        %v684 = vld [vmem:[%s567 + $0x58] sm:$0xff]
        %v685 = vld [vmem:[%s567 + $0x60] sm:$0xff]
        %v686 = vld [vmem:[%s567 + $0x68] sm:$0xff]
        %v687 = vld [vmem:[%s567 + $0x70] sm:$0xff]
        %v688 = vld [vmem:[%s567 + $0x78] sm:$0xff]
        %v689 = vld [vmem:[%s567 + $0x80] sm:$0xff]
        %v690 = vld [vmem:[%s567 + $0x88] sm:$0xff]
        %v691 = vld [vmem:[%s567 + $0x90] sm:$0xff]
        %v692 = vld [vmem:[%s567 + $0x98] sm:$0xff]
        %v693 = vld [vmem:[%s567 + $0xa0] sm:$0xff]
        %v694 = vld [vmem:[%s567 + $0xa8] sm:$0xff]
        %v695 = vld [vmem:[%s567 + $0xb0] sm:$0xff]
        %v696 = vld [vmem:[%s567 + $0xb8] sm:$0xff]
        %v697 = vld [vmem:[%s567 + $0xc0] sm:$0xff]
        %v698 = vld [vmem:[%s567 + $0xc8] sm:$0xff]
        %v699 = vld [vmem:[%s567 + $0xd0] sm:$0xff]
        %v700 = vld [vmem:[%s567 + $0xd8] sm:$0xff]
        %v701 = vld [vmem:[%s567 + $0xe0] sm:$0xff]
        %v702 = vld [vmem:[%s567 + $0xe8] sm:$0xff]
        %v703 = vld [vmem:[%s567 + $0xf0] sm:$0xff]
        %v704 = vld [vmem:[%s567 + $0xf8] sm:$0xff]
        %v705 = vld [vmem:[%s567 + $0x100] sm:$0xff]
        %v706 = vld [vmem:[%s567 + $0x108] sm:$0xff]
        %v707 = vld [vmem:[%s567 + $0x110] sm:$0xff]
        %v708 = vld [vmem:[%s567 + $0x118] sm:$0xff]
        %v709 = vld [vmem:[%s567 + $0x120] sm:$0xff]
        %v710 = vld [vmem:[%s567 + $0x128] sm:$0xff]
        %v711 = vld [vmem:[%s567 + $0x130] sm:$0xff]
        %v712 = vld [vmem:[%s567 + $0x138] sm:$0xff]
        %v713 = vld [vmem:[%s567 + $0x140] sm:$0xff]
        %v714 = vld [vmem:[%s567 + $0x148] sm:$0xff]
        %v715 = vld [vmem:[%s567 + $0x150] sm:$0xff]
        %v716 = vld [vmem:[%s567 + $0x158] sm:$0xff]
        %v717 = vld [vmem:[%s567 + $0x160] sm:$0xff]
        %v718 = vld [vmem:[%s567 + $0x168] sm:$0xff]
        %v719 = vld [vmem:[%s567 + $0x170] sm:$0xff]
        %v720 = vld [vmem:[%s567 + $0x178] sm:$0xff]
        %v721 = vld [vmem:[%s567 + $0x180] sm:$0xff]
        %v722 = vld [vmem:[%s567 + $0x188] sm:$0xff]
        %v723 = vld [vmem:[%s567 + $0x190] sm:$0xff]
        %v724 = vld [vmem:[%s567 + $0x198] sm:$0xff]
        %v725 = vld [vmem:[%s567 + $0x1a0] sm:$0xff]
        %v726 = vld [vmem:[%s567 + $0x1a8] sm:$0xff]
        %v727 = vld [vmem:[%s567 + $0x1b0] sm:$0xff]
        %v728 = vld [vmem:[%s567 + $0x1b8] sm:$0xff]
        %v729 = vld [vmem:[%s567 + $0x1c0] sm:$0xff]
        %v730 = vld [vmem:[%s567 + $0x1c8] sm:$0xff]
        %v731 = vld [vmem:[%s567 + $0x1d0] sm:$0xff]
        %v732 = vld [vmem:[%s567 + $0x1d8] sm:$0xff]
        %v733 = vld [vmem:[%s567 + $0x1e0] sm:$0xff]
        %v734 = vld [vmem:[%s567 + $0x1e8] sm:$0xff]
        %v735 = vld [vmem:[%s567 + $0x1f0] sm:$0xff]
        %v736 = vld [vmem:[%s567 + $0x1f8] sm:$0xff]
        %v737 = vpack.c.bf16 %v681, %v673
        %v738 = vpack.c.bf16 %v682, %v674
        %v739 = vpack.c.bf16 %v683, %v675
        %v740 = vpack.c.bf16 %v684, %v676
        %v741 = vpack.c.bf16 %v685, %v677
        %v742 = vpack.c.bf16 %v686, %v678
        %v743 = vpack.c.bf16 %v687, %v679
        %v744 = vpack.c.bf16 %v688, %v680
        %v745 = vpack.c.bf16 %v697, %v689
        %v746 = vpack.c.bf16 %v698, %v690
        %v747 = vpack.c.bf16 %v699, %v691
        %v748 = vpack.c.bf16 %v700, %v692
        %v749 = vpack.c.bf16 %v701, %v693
        %v750 = vpack.c.bf16 %v702, %v694
        %v751 = vpack.c.bf16 %v703, %v695
        %v752 = vpack.c.bf16 %v704, %v696
        %v753 = vpack.c.bf16 %v713, %v705
        %v754 = vpack.c.bf16 %v714, %v706
        %v755 = vpack.c.bf16 %v715, %v707
        %v756 = vpack.c.bf16 %v716, %v708
        %v757 = vpack.c.bf16 %v717, %v709
        %v758 = vpack.c.bf16 %v718, %v710
        %v759 = vpack.c.bf16 %v719, %v711
        %v760 = vpack.c.bf16 %v720, %v712
        %v761 = vpack.c.bf16 %v729, %v721
        %v762 = vpack.c.bf16 %v730, %v722
        %v763 = vpack.c.bf16 %v731, %v723
        %v764 = vpack.c.bf16 %v732, %v724
        %v765 = vpack.c.bf16 %v733, %v725
        %v766 = vpack.c.bf16 %v734, %v726
        %v767 = vpack.c.bf16 %v735, %v727
        %v768 = vpack.c.bf16 %v736, %v728
        %v769 = vld [vmem:[#allocation7] sm:$0xff]
        %v770 = vld [vmem:[#allocation7 + $0x8] sm:$0xff]
        %v771 = vld [vmem:[#allocation7 + $0x10] sm:$0xff]
        %v772 = vld [vmem:[#allocation7 + $0x18] sm:$0xff]
        %v773 = vld [vmem:[#allocation7 + $0x20] sm:$0xff]
        %v774 = vld [vmem:[#allocation7 + $0x28] sm:$0xff]
        %v775 = vld [vmem:[#allocation7 + $0x30] sm:$0xff]
        %v776 = vld [vmem:[#allocation7 + $0x38] sm:$0xff]
        %v777 = vld [vmem:[#allocation7 + $0x40] sm:$0xff]
        %v778 = vld [vmem:[#allocation7 + $0x48] sm:$0xff]
        %v779 = vld [vmem:[#allocation7 + $0x50] sm:$0xff]
        %v780 = vld [vmem:[#allocation7 + $0x58] sm:$0xff]
        %v781 = vld [vmem:[#allocation7 + $0x60] sm:$0xff]
        %v782 = vld [vmem:[#allocation7 + $0x68] sm:$0xff]
        %v783 = vld [vmem:[#allocation7 + $0x70] sm:$0xff]
        %v784 = vld [vmem:[#allocation7 + $0x78] sm:$0xff]
        %v785 = vld [vmem:[#allocation7 + $0x80] sm:$0xff]
        %v786 = vld [vmem:[#allocation7 + $0x88] sm:$0xff]
        %v787 = vld [vmem:[#allocation7 + $0x90] sm:$0xff]
        %v788 = vld [vmem:[#allocation7 + $0x98] sm:$0xff]
        %v789 = vld [vmem:[#allocation7 + $0xa0] sm:$0xff]
        %v790 = vld [vmem:[#allocation7 + $0xa8] sm:$0xff]
        %v791 = vld [vmem:[#allocation7 + $0xb0] sm:$0xff]
        %v792 = vld [vmem:[#allocation7 + $0xb8] sm:$0xff]
        %v793 = vld [vmem:[#allocation7 + $0xc0] sm:$0xff]
        %v794 = vld [vmem:[#allocation7 + $0xc8] sm:$0xff]
        %v795 = vld [vmem:[#allocation7 + $0xd0] sm:$0xff]
        %v796 = vld [vmem:[#allocation7 + $0xd8] sm:$0xff]
        %v797 = vld [vmem:[#allocation7 + $0xe0] sm:$0xff]
        %v798 = vld [vmem:[#allocation7 + $0xe8] sm:$0xff]
        %v799 = vld [vmem:[#allocation7 + $0xf0] sm:$0xff]
        %v800 = vld [vmem:[#allocation7 + $0xf8] sm:$0xff]
        %v801 = vld [vmem:[#allocation7 + $0x100] sm:$0xff]
        %v802 = vld [vmem:[#allocation7 + $0x108] sm:$0xff]
        %v803 = vld [vmem:[#allocation7 + $0x110] sm:$0xff]
        %v804 = vld [vmem:[#allocation7 + $0x118] sm:$0xff]
        %v805 = vld [vmem:[#allocation7 + $0x120] sm:$0xff]
        %v806 = vld [vmem:[#allocation7 + $0x128] sm:$0xff]
        %v807 = vld [vmem:[#allocation7 + $0x130] sm:$0xff]
        %v808 = vld [vmem:[#allocation7 + $0x138] sm:$0xff]
        %v809 = vld [vmem:[#allocation7 + $0x140] sm:$0xff]
        %v810 = vld [vmem:[#allocation7 + $0x148] sm:$0xff]
        %v811 = vld [vmem:[#allocation7 + $0x150] sm:$0xff]
        %v812 = vld [vmem:[#allocation7 + $0x158] sm:$0xff]
        %v813 = vld [vmem:[#allocation7 + $0x160] sm:$0xff]
        %v814 = vld [vmem:[#allocation7 + $0x168] sm:$0xff]
        %v815 = vld [vmem:[#allocation7 + $0x170] sm:$0xff]
        %v816 = vld [vmem:[#allocation7 + $0x178] sm:$0xff]
        %v817 = vld [vmem:[#allocation7 + $0x180] sm:$0xff]
        %v818 = vld [vmem:[#allocation7 + $0x188] sm:$0xff]
        %v819 = vld [vmem:[#allocation7 + $0x190] sm:$0xff]
        %v820 = vld [vmem:[#allocation7 + $0x198] sm:$0xff]
        %v821 = vld [vmem:[#allocation7 + $0x1a0] sm:$0xff]
        %v822 = vld [vmem:[#allocation7 + $0x1a8] sm:$0xff]
        %v823 = vld [vmem:[#allocation7 + $0x1b0] sm:$0xff]
        %v824 = vld [vmem:[#allocation7 + $0x1b8] sm:$0xff]
        %v825 = vld [vmem:[#allocation7 + $0x1c0] sm:$0xff]
        %v826 = vld [vmem:[#allocation7 + $0x1c8] sm:$0xff]
        %v827 = vld [vmem:[#allocation7 + $0x1d0] sm:$0xff]
        %v828 = vld [vmem:[#allocation7 + $0x1d8] sm:$0xff]
        %v829 = vld [vmem:[#allocation7 + $0x1e0] sm:$0xff]
        %v830 = vld [vmem:[#allocation7 + $0x1e8] sm:$0xff]
        %v831 = vld [vmem:[#allocation7 + $0x1f0] sm:$0xff]
        %v832 = vld [vmem:[#allocation7 + $0x1f8] sm:$0xff]
        %v833 = vld [vmem:[#allocation7 + $0x200] sm:$0xff]
        %v834 = vld [vmem:[#allocation7 + $0x208] sm:$0xff]
        %v835 = vld [vmem:[#allocation7 + $0x210] sm:$0xff]
        %v836 = vld [vmem:[#allocation7 + $0x218] sm:$0xff]
        %v837 = vld [vmem:[#allocation7 + $0x220] sm:$0xff]
        %v838 = vld [vmem:[#allocation7 + $0x228] sm:$0xff]
        %v839 = vld [vmem:[#allocation7 + $0x230] sm:$0xff]
        %v840 = vld [vmem:[#allocation7 + $0x238] sm:$0xff]
        %v841 = vld [vmem:[#allocation7 + $0x240] sm:$0xff]
        %v842 = vld [vmem:[#allocation7 + $0x248] sm:$0xff]
        %v843 = vld [vmem:[#allocation7 + $0x250] sm:$0xff]
        %v844 = vld [vmem:[#allocation7 + $0x258] sm:$0xff]
        %v845 = vld [vmem:[#allocation7 + $0x260] sm:$0xff]
        %v846 = vld [vmem:[#allocation7 + $0x268] sm:$0xff]
        %v847 = vld [vmem:[#allocation7 + $0x270] sm:$0xff]
        %v848 = vld [vmem:[#allocation7 + $0x278] sm:$0xff]
        %v849 = vld [vmem:[#allocation7 + $0x280] sm:$0xff]
        %v850 = vld [vmem:[#allocation7 + $0x288] sm:$0xff]
        %v851 = vld [vmem:[#allocation7 + $0x290] sm:$0xff]
        %v852 = vld [vmem:[#allocation7 + $0x298] sm:$0xff]
        %v853 = vld [vmem:[#allocation7 + $0x2a0] sm:$0xff]
        %v854 = vld [vmem:[#allocation7 + $0x2a8] sm:$0xff]
        %v855 = vld [vmem:[#allocation7 + $0x2b0] sm:$0xff]
        %v856 = vld [vmem:[#allocation7 + $0x2b8] sm:$0xff]
        %v857 = vld [vmem:[#allocation7 + $0x2c0] sm:$0xff]
        %v858 = vld [vmem:[#allocation7 + $0x2c8] sm:$0xff]
        %v859 = vld [vmem:[#allocation7 + $0x2d0] sm:$0xff]
        %v860 = vld [vmem:[#allocation7 + $0x2d8] sm:$0xff]
        %v861 = vld [vmem:[#allocation7 + $0x2e0] sm:$0xff]
        %v862 = vld [vmem:[#allocation7 + $0x2e8] sm:$0xff]
        %v863 = vld [vmem:[#allocation7 + $0x2f0] sm:$0xff]
        %v864 = vld [vmem:[#allocation7 + $0x2f8] sm:$0xff]
        %v865 = vld [vmem:[#allocation7 + $0x300] sm:$0xff]
        %v866 = vld [vmem:[#allocation7 + $0x308] sm:$0xff]
        %v867 = vld [vmem:[#allocation7 + $0x310] sm:$0xff]
        %v868 = vld [vmem:[#allocation7 + $0x318] sm:$0xff]
        %v869 = vld [vmem:[#allocation7 + $0x320] sm:$0xff]
        %v870 = vld [vmem:[#allocation7 + $0x328] sm:$0xff]
        %v871 = vld [vmem:[#allocation7 + $0x330] sm:$0xff]
        %v872 = vld [vmem:[#allocation7 + $0x338] sm:$0xff]
        %v873 = vld [vmem:[#allocation7 + $0x340] sm:$0xff]
        %v874 = vld [vmem:[#allocation7 + $0x348] sm:$0xff]
        %v875 = vld [vmem:[#allocation7 + $0x350] sm:$0xff]
        %v876 = vld [vmem:[#allocation7 + $0x358] sm:$0xff]
        %v877 = vld [vmem:[#allocation7 + $0x360] sm:$0xff]
        %v878 = vld [vmem:[#allocation7 + $0x368] sm:$0xff]
        %v879 = vld [vmem:[#allocation7 + $0x370] sm:$0xff]
        %v880 = vld [vmem:[#allocation7 + $0x378] sm:$0xff]
        %v881 = vld [vmem:[#allocation7 + $0x380] sm:$0xff]
        %v882 = vld [vmem:[#allocation7 + $0x388] sm:$0xff]
        %v883 = vld [vmem:[#allocation7 + $0x390] sm:$0xff]
        %v884 = vld [vmem:[#allocation7 + $0x398] sm:$0xff]
        %v885 = vld [vmem:[#allocation7 + $0x3a0] sm:$0xff]
        %v886 = vld [vmem:[#allocation7 + $0x3a8] sm:$0xff]
        %v887 = vld [vmem:[#allocation7 + $0x3b0] sm:$0xff]
        %v888 = vld [vmem:[#allocation7 + $0x3b8] sm:$0xff]
        %v889 = vld [vmem:[#allocation7 + $0x3c0] sm:$0xff]
        %v890 = vld [vmem:[#allocation7 + $0x3c8] sm:$0xff]
        %v891 = vld [vmem:[#allocation7 + $0x3d0] sm:$0xff]
        %v892 = vld [vmem:[#allocation7 + $0x3d8] sm:$0xff]
        %v893 = vld [vmem:[#allocation7 + $0x3e0] sm:$0xff]
        %v894 = vld [vmem:[#allocation7 + $0x3e8] sm:$0xff]
        %v895 = vld [vmem:[#allocation7 + $0x3f0] sm:$0xff]
        %v896 = vld [vmem:[#allocation7 + $0x3f8] sm:$0xff]
        %v897 = vld [vmem:[%s3] sm:$0x3]
        %v899 = vlaneseq
        %v900 = vshrl.u32 %v899, 7
        %v901 = vsub.s32 0, %v900
        %v902 = vrot.slane %v897, %v901
        %v903 = vlaneseq
        %v904 = vshrl.u32 %v903, 7
        %v905 = vsub.s32 1, %v904
        %v906 = vrot.slane %v897, %v905
        %v1037 = vunpack.c.l.b16 %v769
        %v1038 = vunpack.c.h.b16 %v769
        %v1039 = vunpack.c.l.b16 %v770
        %v1040 = vunpack.c.h.b16 %v770
        %v1041 = vunpack.c.l.b16 %v771
        %v1042 = vunpack.c.h.b16 %v771
        %v1043 = vunpack.c.l.b16 %v772
        %v1044 = vunpack.c.h.b16 %v772
        %v1045 = vunpack.c.l.b16 %v773
        %v1046 = vunpack.c.h.b16 %v773
        %v1047 = vunpack.c.l.b16 %v774
        %v1048 = vunpack.c.h.b16 %v774
        %v1049 = vunpack.c.l.b16 %v775
        %v1050 = vunpack.c.h.b16 %v775
        %v1051 = vunpack.c.l.b16 %v776
        %v1052 = vunpack.c.h.b16 %v776
        %v1053 = vunpack.c.l.b16 %v777
        %v1054 = vunpack.c.h.b16 %v777
        %v1055 = vunpack.c.l.b16 %v778
        %v1056 = vunpack.c.h.b16 %v778
        %v1057 = vunpack.c.l.b16 %v779
        %v1058 = vunpack.c.h.b16 %v779
        %v1059 = vunpack.c.l.b16 %v780
        %v1060 = vunpack.c.h.b16 %v780
        %v1061 = vunpack.c.l.b16 %v781
        %v1062 = vunpack.c.h.b16 %v781
        %v1063 = vunpack.c.l.b16 %v782
        %v1064 = vunpack.c.h.b16 %v782
        %v1065 = vunpack.c.l.b16 %v783
        %v1066 = vunpack.c.h.b16 %v783
        %v1067 = vunpack.c.l.b16 %v784
        %v1068 = vunpack.c.h.b16 %v784
        %v1069 = vunpack.c.l.b16 %v785
        %v1070 = vunpack.c.h.b16 %v785
        %v1071 = vunpack.c.l.b16 %v786
        %v1072 = vunpack.c.h.b16 %v786
        %v1073 = vunpack.c.l.b16 %v787
        %v1074 = vunpack.c.h.b16 %v787
        %v1075 = vunpack.c.l.b16 %v788
        %v1076 = vunpack.c.h.b16 %v788
        %v1077 = vunpack.c.l.b16 %v789
        %v1078 = vunpack.c.h.b16 %v789
        %v1079 = vunpack.c.l.b16 %v790
        %v1080 = vunpack.c.h.b16 %v790
        %v1081 = vunpack.c.l.b16 %v791
        %v1082 = vunpack.c.h.b16 %v791
        %v1083 = vunpack.c.l.b16 %v792
        %v1084 = vunpack.c.h.b16 %v792
        %v1085 = vunpack.c.l.b16 %v793
        %v1086 = vunpack.c.h.b16 %v793
        %v1087 = vunpack.c.l.b16 %v794
        %v1088 = vunpack.c.h.b16 %v794
        %v1089 = vunpack.c.l.b16 %v795
        %v1090 = vunpack.c.h.b16 %v795
        %v1091 = vunpack.c.l.b16 %v796
        %v1092 = vunpack.c.h.b16 %v796
        %v1093 = vunpack.c.l.b16 %v797
        %v1094 = vunpack.c.h.b16 %v797
        %v1095 = vunpack.c.l.b16 %v798
        %v1096 = vunpack.c.h.b16 %v798
        %v1097 = vunpack.c.l.b16 %v799
        %v1098 = vunpack.c.h.b16 %v799
        %v1099 = vunpack.c.l.b16 %v800
        %v1100 = vunpack.c.h.b16 %v800
        %v1101 = vunpack.c.l.b16 %v801
        %v1102 = vunpack.c.h.b16 %v801
        %v1103 = vunpack.c.l.b16 %v802
        %v1104 = vunpack.c.h.b16 %v802
        %v1105 = vunpack.c.l.b16 %v803
        %v1106 = vunpack.c.h.b16 %v803
        %v1107 = vunpack.c.l.b16 %v804
        %v1108 = vunpack.c.h.b16 %v804
        %v1109 = vunpack.c.l.b16 %v805
        %v1110 = vunpack.c.h.b16 %v805
        %v1111 = vunpack.c.l.b16 %v806
        %v1112 = vunpack.c.h.b16 %v806
        %v1113 = vunpack.c.l.b16 %v807
        %v1114 = vunpack.c.h.b16 %v807
        %v1115 = vunpack.c.l.b16 %v808
        %v1116 = vunpack.c.h.b16 %v808
        %v1117 = vunpack.c.l.b16 %v809
        %v1118 = vunpack.c.h.b16 %v809
        %v1119 = vunpack.c.l.b16 %v810
        %v1120 = vunpack.c.h.b16 %v810
        %v1121 = vunpack.c.l.b16 %v811
        %v1122 = vunpack.c.h.b16 %v811
        %v1123 = vunpack.c.l.b16 %v812
        %v1124 = vunpack.c.h.b16 %v812
        %v1125 = vunpack.c.l.b16 %v813
        %v1126 = vunpack.c.h.b16 %v813
        %v1127 = vunpack.c.l.b16 %v814
        %v1128 = vunpack.c.h.b16 %v814
        %v1129 = vunpack.c.l.b16 %v815
        %v1130 = vunpack.c.h.b16 %v815
        %v1131 = vunpack.c.l.b16 %v816
        %v1132 = vunpack.c.h.b16 %v816
        %v1133 = vunpack.c.l.b16 %v817
        %v1134 = vunpack.c.h.b16 %v817
        %v1135 = vunpack.c.l.b16 %v818
        %v1136 = vunpack.c.h.b16 %v818
        %v1137 = vunpack.c.l.b16 %v819
        %v1138 = vunpack.c.h.b16 %v819
        %v1139 = vunpack.c.l.b16 %v820
        %v1140 = vunpack.c.h.b16 %v820
        %v1141 = vunpack.c.l.b16 %v821
        %v1142 = vunpack.c.h.b16 %v821
        %v1143 = vunpack.c.l.b16 %v822
        %v1144 = vunpack.c.h.b16 %v822
        %v1145 = vunpack.c.l.b16 %v823
        %v1146 = vunpack.c.h.b16 %v823
        %v1147 = vunpack.c.l.b16 %v824
        %v1148 = vunpack.c.h.b16 %v824
        %v1149 = vunpack.c.l.b16 %v825
        %v1150 = vunpack.c.h.b16 %v825
        %v1151 = vunpack.c.l.b16 %v826
        %v1152 = vunpack.c.h.b16 %v826
        %v1153 = vunpack.c.l.b16 %v827
        %v1154 = vunpack.c.h.b16 %v827
        %v1155 = vunpack.c.l.b16 %v828
        %v1156 = vunpack.c.h.b16 %v828
        %v1157 = vunpack.c.l.b16 %v829
        %v1158 = vunpack.c.h.b16 %v829
        %v1159 = vunpack.c.l.b16 %v830
        %v1160 = vunpack.c.h.b16 %v830
        %v1161 = vunpack.c.l.b16 %v831
        %v1162 = vunpack.c.h.b16 %v831
        %v1163 = vunpack.c.l.b16 %v832
        %v1164 = vunpack.c.h.b16 %v832
        %v1165 = vunpack.c.l.b16 %v833
        %v1166 = vunpack.c.h.b16 %v833
        %v1167 = vunpack.c.l.b16 %v834
        %v1168 = vunpack.c.h.b16 %v834
        %v1169 = vunpack.c.l.b16 %v835
        %v1170 = vunpack.c.h.b16 %v835
        %v1171 = vunpack.c.l.b16 %v836
        %v1172 = vunpack.c.h.b16 %v836
        %v1173 = vunpack.c.l.b16 %v837
        %v1174 = vunpack.c.h.b16 %v837
        %v1175 = vunpack.c.l.b16 %v838
        %v1176 = vunpack.c.h.b16 %v838
        %v1177 = vunpack.c.l.b16 %v839
        %v1178 = vunpack.c.h.b16 %v839
        %v1179 = vunpack.c.l.b16 %v840
        %v1180 = vunpack.c.h.b16 %v840
        %v1181 = vunpack.c.l.b16 %v841
        %v1182 = vunpack.c.h.b16 %v841
        %v1183 = vunpack.c.l.b16 %v842
        %v1184 = vunpack.c.h.b16 %v842
        %v1185 = vunpack.c.l.b16 %v843
        %v1186 = vunpack.c.h.b16 %v843
        %v1187 = vunpack.c.l.b16 %v844
        %v1188 = vunpack.c.h.b16 %v844
        %v1189 = vunpack.c.l.b16 %v845
        %v1190 = vunpack.c.h.b16 %v845
        %v1191 = vunpack.c.l.b16 %v846
        %v1192 = vunpack.c.h.b16 %v846
        %v1193 = vunpack.c.l.b16 %v847
        %v1194 = vunpack.c.h.b16 %v847
        %v1195 = vunpack.c.l.b16 %v848
        %v1196 = vunpack.c.h.b16 %v848
        %v1197 = vunpack.c.l.b16 %v849
        %v1198 = vunpack.c.h.b16 %v849
        %v1199 = vunpack.c.l.b16 %v850
        %v1200 = vunpack.c.h.b16 %v850
        %v1201 = vunpack.c.l.b16 %v851
        %v1202 = vunpack.c.h.b16 %v851
        %v1203 = vunpack.c.l.b16 %v852
        %v1204 = vunpack.c.h.b16 %v852
        %v1205 = vunpack.c.l.b16 %v853
        %v1206 = vunpack.c.h.b16 %v853
        %v1207 = vunpack.c.l.b16 %v854
        %v1208 = vunpack.c.h.b16 %v854
        %v1209 = vunpack.c.l.b16 %v855
        %v1210 = vunpack.c.h.b16 %v855
        %v1211 = vunpack.c.l.b16 %v856
        %v1212 = vunpack.c.h.b16 %v856
        %v1213 = vunpack.c.l.b16 %v857
        %v1214 = vunpack.c.h.b16 %v857
        %v1215 = vunpack.c.l.b16 %v858
        %v1216 = vunpack.c.h.b16 %v858
        %v1217 = vunpack.c.l.b16 %v859
        %v1218 = vunpack.c.h.b16 %v859
        %v1219 = vunpack.c.l.b16 %v860
        %v1220 = vunpack.c.h.b16 %v860
        %v1221 = vunpack.c.l.b16 %v861
        %v1222 = vunpack.c.h.b16 %v861
        %v1223 = vunpack.c.l.b16 %v862
        %v1224 = vunpack.c.h.b16 %v862
        %v1225 = vunpack.c.l.b16 %v863
        %v1226 = vunpack.c.h.b16 %v863
        %v1227 = vunpack.c.l.b16 %v864
        %v1228 = vunpack.c.h.b16 %v864
        %v1229 = vunpack.c.l.b16 %v865
        %v1230 = vunpack.c.h.b16 %v865
        %v1231 = vunpack.c.l.b16 %v866
        %v1232 = vunpack.c.h.b16 %v866
        %v1233 = vunpack.c.l.b16 %v867
        %v1234 = vunpack.c.h.b16 %v867
        %v1235 = vunpack.c.l.b16 %v868
        %v1236 = vunpack.c.h.b16 %v868
        %v1237 = vunpack.c.l.b16 %v869
        %v1238 = vunpack.c.h.b16 %v869
        %v1239 = vunpack.c.l.b16 %v870
        %v1240 = vunpack.c.h.b16 %v870
        %v1241 = vunpack.c.l.b16 %v871
        %v1242 = vunpack.c.h.b16 %v871
        %v1243 = vunpack.c.l.b16 %v872
        %v1244 = vunpack.c.h.b16 %v872
        %v1245 = vunpack.c.l.b16 %v873
        %v1246 = vunpack.c.h.b16 %v873
        %v1247 = vunpack.c.l.b16 %v874
        %v1248 = vunpack.c.h.b16 %v874
        %v1249 = vunpack.c.l.b16 %v875
        %v1250 = vunpack.c.h.b16 %v875
        %v1251 = vunpack.c.l.b16 %v876
        %v1252 = vunpack.c.h.b16 %v876
        %v1253 = vunpack.c.l.b16 %v877
        %v1254 = vunpack.c.h.b16 %v877
        %v1255 = vunpack.c.l.b16 %v878
        %v1256 = vunpack.c.h.b16 %v878
        %v1257 = vunpack.c.l.b16 %v879
        %v1258 = vunpack.c.h.b16 %v879
        %v1259 = vunpack.c.l.b16 %v880
        %v1260 = vunpack.c.h.b16 %v880
        %v1261 = vunpack.c.l.b16 %v881
        %v1262 = vunpack.c.h.b16 %v881
        %v1263 = vunpack.c.l.b16 %v882
        %v1264 = vunpack.c.h.b16 %v882
        %v1265 = vunpack.c.l.b16 %v883
        %v1266 = vunpack.c.h.b16 %v883
        %v1267 = vunpack.c.l.b16 %v884
        %v1268 = vunpack.c.h.b16 %v884
        %v1269 = vunpack.c.l.b16 %v885
        %v1270 = vunpack.c.h.b16 %v885
        %v1271 = vunpack.c.l.b16 %v886
        %v1272 = vunpack.c.h.b16 %v886
        %v1273 = vunpack.c.l.b16 %v887
        %v1274 = vunpack.c.h.b16 %v887
        %v1275 = vunpack.c.l.b16 %v888
        %v1276 = vunpack.c.h.b16 %v888
        %v1277 = vunpack.c.l.b16 %v889
        %v1278 = vunpack.c.h.b16 %v889
        %v1279 = vunpack.c.l.b16 %v890
        %v1280 = vunpack.c.h.b16 %v890
        %v1281 = vunpack.c.l.b16 %v891
        %v1282 = vunpack.c.h.b16 %v891
        %v1283 = vunpack.c.l.b16 %v892
        %v1284 = vunpack.c.h.b16 %v892
        %v1285 = vunpack.c.l.b16 %v893
        %v1286 = vunpack.c.h.b16 %v893
        %v1287 = vunpack.c.l.b16 %v894
        %v1288 = vunpack.c.h.b16 %v894
        %v1289 = vunpack.c.l.b16 %v895
        %v1290 = vunpack.c.h.b16 %v895
        %v1291 = vunpack.c.l.b16 %v896
        %v1292 = vunpack.c.h.b16 %v896
        %v1293 = vpack.c.b16 %v1039, %v1037
        %v1294 = vpack.c.b16 %v1040, %v1038
        %v1295 = vpack.c.b16 %v1043, %v1041
        %v1296 = vpack.c.b16 %v1044, %v1042
        %v1297 = vpack.c.b16 %v1047, %v1045
        %v1298 = vpack.c.b16 %v1048, %v1046
        %v1299 = vpack.c.b16 %v1051, %v1049
        %v1300 = vpack.c.b16 %v1052, %v1050
        %v1301 = vpack.c.b16 %v1055, %v1053
        %v1302 = vpack.c.b16 %v1056, %v1054
        %v1303 = vpack.c.b16 %v1059, %v1057
        %v1304 = vpack.c.b16 %v1060, %v1058
        %v1305 = vpack.c.b16 %v1063, %v1061
        %v1306 = vpack.c.b16 %v1064, %v1062
        %v1307 = vpack.c.b16 %v1067, %v1065
        %v1308 = vpack.c.b16 %v1068, %v1066
        %v1309 = vpack.c.b16 %v1071, %v1069
        %v1310 = vpack.c.b16 %v1072, %v1070
        %v1311 = vpack.c.b16 %v1075, %v1073
        %v1312 = vpack.c.b16 %v1076, %v1074
        %v1313 = vpack.c.b16 %v1079, %v1077
        %v1314 = vpack.c.b16 %v1080, %v1078
        %v1315 = vpack.c.b16 %v1083, %v1081
        %v1316 = vpack.c.b16 %v1084, %v1082
        %v1317 = vpack.c.b16 %v1087, %v1085
        %v1318 = vpack.c.b16 %v1088, %v1086
        %v1319 = vpack.c.b16 %v1091, %v1089
        %v1320 = vpack.c.b16 %v1092, %v1090
        %v1321 = vpack.c.b16 %v1095, %v1093
        %v1322 = vpack.c.b16 %v1096, %v1094
        %v1323 = vpack.c.b16 %v1099, %v1097
        %v1324 = vpack.c.b16 %v1100, %v1098
        %v1325 = vpack.c.b16 %v1103, %v1101
        %v1326 = vpack.c.b16 %v1104, %v1102
        %v1327 = vpack.c.b16 %v1107, %v1105
        %v1328 = vpack.c.b16 %v1108, %v1106
        %v1329 = vpack.c.b16 %v1111, %v1109
        %v1330 = vpack.c.b16 %v1112, %v1110
        %v1331 = vpack.c.b16 %v1115, %v1113
        %v1332 = vpack.c.b16 %v1116, %v1114
        %v1333 = vpack.c.b16 %v1119, %v1117
        %v1334 = vpack.c.b16 %v1120, %v1118
        %v1335 = vpack.c.b16 %v1123, %v1121
        %v1336 = vpack.c.b16 %v1124, %v1122
        %v1337 = vpack.c.b16 %v1127, %v1125
        %v1338 = vpack.c.b16 %v1128, %v1126
        %v1339 = vpack.c.b16 %v1131, %v1129
        %v1340 = vpack.c.b16 %v1132, %v1130
        %v1341 = vpack.c.b16 %v1135, %v1133
        %v1342 = vpack.c.b16 %v1136, %v1134
        %v1343 = vpack.c.b16 %v1139, %v1137
        %v1344 = vpack.c.b16 %v1140, %v1138
        %v1345 = vpack.c.b16 %v1143, %v1141
        %v1346 = vpack.c.b16 %v1144, %v1142
        %v1347 = vpack.c.b16 %v1147, %v1145
        %v1348 = vpack.c.b16 %v1148, %v1146
        %v1349 = vpack.c.b16 %v1151, %v1149
        %v1350 = vpack.c.b16 %v1152, %v1150
        %v1351 = vpack.c.b16 %v1155, %v1153
        %v1352 = vpack.c.b16 %v1156, %v1154
        %v1353 = vpack.c.b16 %v1159, %v1157
        %v1354 = vpack.c.b16 %v1160, %v1158
        %v1355 = vpack.c.b16 %v1163, %v1161
        %v1356 = vpack.c.b16 %v1164, %v1162
        %v1357 = vpack.c.b16 %v1167, %v1165
        %v1358 = vpack.c.b16 %v1168, %v1166
        %v1359 = vpack.c.b16 %v1171, %v1169
        %v1360 = vpack.c.b16 %v1172, %v1170
        %v1361 = vpack.c.b16 %v1175, %v1173
        %v1362 = vpack.c.b16 %v1176, %v1174
        %v1363 = vpack.c.b16 %v1179, %v1177
        %v1364 = vpack.c.b16 %v1180, %v1178
        %v1365 = vpack.c.b16 %v1183, %v1181
        %v1366 = vpack.c.b16 %v1184, %v1182
        %v1367 = vpack.c.b16 %v1187, %v1185
        %v1368 = vpack.c.b16 %v1188, %v1186
        %v1369 = vpack.c.b16 %v1191, %v1189
        %v1370 = vpack.c.b16 %v1192, %v1190
        %v1371 = vpack.c.b16 %v1195, %v1193
        %v1372 = vpack.c.b16 %v1196, %v1194
        %v1373 = vpack.c.b16 %v1199, %v1197
        %v1374 = vpack.c.b16 %v1200, %v1198
        %v1375 = vpack.c.b16 %v1203, %v1201
        %v1376 = vpack.c.b16 %v1204, %v1202
        %v1377 = vpack.c.b16 %v1207, %v1205
        %v1378 = vpack.c.b16 %v1208, %v1206
        %v1379 = vpack.c.b16 %v1211, %v1209
        %v1380 = vpack.c.b16 %v1212, %v1210
        %v1381 = vpack.c.b16 %v1215, %v1213
        %v1382 = vpack.c.b16 %v1216, %v1214
        %v1383 = vpack.c.b16 %v1219, %v1217
        %v1384 = vpack.c.b16 %v1220, %v1218
        %v1385 = vpack.c.b16 %v1223, %v1221
        %v1386 = vpack.c.b16 %v1224, %v1222
        %v1387 = vpack.c.b16 %v1227, %v1225
        %v1388 = vpack.c.b16 %v1228, %v1226
        %v1389 = vpack.c.b16 %v1231, %v1229
        %v1390 = vpack.c.b16 %v1232, %v1230
        %v1391 = vpack.c.b16 %v1235, %v1233
        %v1392 = vpack.c.b16 %v1236, %v1234
        %v1393 = vpack.c.b16 %v1239, %v1237
        %v1394 = vpack.c.b16 %v1240, %v1238
        %v1395 = vpack.c.b16 %v1243, %v1241
        %v1396 = vpack.c.b16 %v1244, %v1242
        %v1397 = vpack.c.b16 %v1247, %v1245
        %v1398 = vpack.c.b16 %v1248, %v1246
        %v1399 = vpack.c.b16 %v1251, %v1249
        %v1400 = vpack.c.b16 %v1252, %v1250
        %v1401 = vpack.c.b16 %v1255, %v1253
        %v1402 = vpack.c.b16 %v1256, %v1254
        %v1403 = vpack.c.b16 %v1259, %v1257
        %v1404 = vpack.c.b16 %v1260, %v1258
        %v1405 = vpack.c.b16 %v1263, %v1261
        %v1406 = vpack.c.b16 %v1264, %v1262
        %v1407 = vpack.c.b16 %v1267, %v1265
        %v1408 = vpack.c.b16 %v1268, %v1266
        %v1409 = vpack.c.b16 %v1271, %v1269
        %v1410 = vpack.c.b16 %v1272, %v1270
        %v1411 = vpack.c.b16 %v1275, %v1273
        %v1412 = vpack.c.b16 %v1276, %v1274
        %v1413 = vpack.c.b16 %v1279, %v1277
        %v1414 = vpack.c.b16 %v1280, %v1278
        %v1415 = vpack.c.b16 %v1283, %v1281
        %v1416 = vpack.c.b16 %v1284, %v1282
        %v1417 = vpack.c.b16 %v1287, %v1285
        %v1418 = vpack.c.b16 %v1288, %v1286
        %v1419 = vpack.c.b16 %v1291, %v1289
        %v1420 = vpack.c.b16 %v1292, %v1290
        %1549 = vmatprep.subr.bf16.mxu0 %v1294
        %1550 = vmatpush1.bf16.msra.mxu0 %v1293
        %1551 = vmatprep.subr.bf16.mxu0 %v1296
        %1552 = vmatpush1.bf16.msra.mxu0 %v1295
        %1553 = vmatprep.subr.bf16.mxu0 %v1298
        %1554 = vmatpush1.bf16.msra.mxu0 %v1297
        %1555 = vmatprep.subr.bf16.mxu0 %v1300
        %1556 = vmatpush1.bf16.msra.mxu0 %v1299
        %1557 = vmatprep.subr.bf16.mxu0 %v1302
        %1558 = vmatpush1.bf16.msra.mxu0 %v1301
        %1559 = vmatprep.subr.bf16.mxu0 %v1304
        %1560 = vmatpush1.bf16.msra.mxu0 %v1303
        %1561 = vmatprep.subr.bf16.mxu0 %v1306
        %1562 = vmatpush1.bf16.msra.mxu0 %v1305
        %1563 = vmatprep.subr.bf16.mxu0 %v1308
        %1564 = vmatpush1.bf16.msra.mxu0 %v1307
        %1565 = vmatprep.subr.bf16.mxu0 %v1310
        %1566 = vmatpush1.bf16.msra.mxu0 %v1309
        %1567 = vmatprep.subr.bf16.mxu0 %v1312
        %1568 = vmatpush1.bf16.msra.mxu0 %v1311
        %1569 = vmatprep.subr.bf16.mxu0 %v1314
        %1570 = vmatpush1.bf16.msra.mxu0 %v1313
        %1571 = vmatprep.subr.bf16.mxu0 %v1316
        %1572 = vmatpush1.bf16.msra.mxu0 %v1315
        %1573 = vmatprep.subr.bf16.mxu0 %v1318
        %1574 = vmatpush1.bf16.msra.mxu0 %v1317
        %1575 = vmatprep.subr.bf16.mxu0 %v1320
        %1576 = vmatpush1.bf16.msra.mxu0 %v1319
        %1577 = vmatprep.subr.bf16.mxu0 %v1322
        %1578 = vmatpush1.bf16.msra.mxu0 %v1321
        %1579 = vmatprep.subr.bf16.mxu0 %v1324
        %1580 = vmatpush1.bf16.msra.mxu0 %v1323
        %1581 = vmatprep.mubr.bf16.mxu0 %v738
        %1582 = vmatmul.mubr.bf16.gmra.mrb[0].mxu0 %v737
        %v1583 = vpop.f32.mrb[0].mxu0
        %v1584 = vadd.f32 %v902, %v1583
        %v1585 = vpop.f32.mrb[0].mxu0
        %v1586 = vadd.f32 %v906, %v1585
        %v1587 = vpop.f32.mrb[0].mxu0
        %v1588 = vadd.f32 %v902, %v1587
        %v1589 = vpop.f32.mrb[0].mxu0
        %v1590 = vadd.f32 %v906, %v1589
        %1591 = vmatprep.mubr.bf16.mxu0 %v746
        %1592 = vmatmul.mubr.bf16.gmra.mrb[0].mxu0 %v745
        %v1593 = vpop.f32.mrb[0].mxu0
        %v1594 = vadd.f32 %v902, %v1593
        %v1595 = vpop.f32.mrb[0].mxu0
        %v1596 = vadd.f32 %v906, %v1595
        %v1597 = vpop.f32.mrb[0].mxu0
        %v1598 = vadd.f32 %v902, %v1597
        %v1599 = vpop.f32.mrb[0].mxu0
        %v1600 = vadd.f32 %v906, %v1599
        %1601 = vmatprep.mubr.bf16.mxu0 %v754
        %1602 = vmatmul.mubr.bf16.gmra.mrb[0].mxu0 %v753
        %v1603 = vpop.f32.mrb[0].mxu0
        %v1604 = vadd.f32 %v902, %v1603
        %v1605 = vpop.f32.mrb[0].mxu0
        %v1606 = vadd.f32 %v906, %v1605
        %v1607 = vpop.f32.mrb[0].mxu0
        %v1608 = vadd.f32 %v902, %v1607
        %v1609 = vpop.f32.mrb[0].mxu0
        %v1610 = vadd.f32 %v906, %v1609
        %1611 = vmatprep.mubr.bf16.mxu0 %v762
        %1612 = vmatmul.mubr.bf16.gmra.mrb[0].mxu0 %v761
        %v1613 = vpop.f32.mrb[0].mxu0
        %v1614 = vadd.f32 %v902, %v1613
        %v1615 = vpop.f32.mrb[0].mxu0
        %v1616 = vadd.f32 %v906, %v1615
        %v1617 = vpop.f32.mrb[0].mxu0
        %v1618 = vadd.f32 %v902, %v1617
        %v1619 = vpop.f32.mrb[0].mxu0
        %v1620 = vadd.f32 %v906, %v1619
        %1621 = vdwg.mxu0
        %1622 = vmatprep.subr.bf16.mxu0 %v1326
        %1623 = vmatpush1.bf16.msra.mxu0 %v1325
        %1624 = vmatprep.subr.bf16.mxu0 %v1328
        %1625 = vmatpush1.bf16.msra.mxu0 %v1327
        %1626 = vmatprep.subr.bf16.mxu0 %v1330
        %1627 = vmatpush1.bf16.msra.mxu0 %v1329
        %1628 = vmatprep.subr.bf16.mxu0 %v1332
        %1629 = vmatpush1.bf16.msra.mxu0 %v1331
        %1630 = vmatprep.subr.bf16.mxu0 %v1334
        %1631 = vmatpush1.bf16.msra.mxu0 %v1333
        %1632 = vmatprep.subr.bf16.mxu0 %v1336
        %1633 = vmatpush1.bf16.msra.mxu0 %v1335
        %1634 = vmatprep.subr.bf16.mxu0 %v1338
        %1635 = vmatpush1.bf16.msra.mxu0 %v1337
        %1636 = vmatprep.subr.bf16.mxu0 %v1340
        %1637 = vmatpush1.bf16.msra.mxu0 %v1339
        %1638 = vmatprep.subr.bf16.mxu0 %v1342
        %1639 = vmatpush1.bf16.msra.mxu0 %v1341
        %1640 = vmatprep.subr.bf16.mxu0 %v1344
        %1641 = vmatpush1.bf16.msra.mxu0 %v1343
        %1642 = vmatprep.subr.bf16.mxu0 %v1346
        %1643 = vmatpush1.bf16.msra.mxu0 %v1345
        %1644 = vmatprep.subr.bf16.mxu0 %v1348
        %1645 = vmatpush1.bf16.msra.mxu0 %v1347
        %1646 = vmatprep.subr.bf16.mxu0 %v1350
        %1647 = vmatpush1.bf16.msra.mxu0 %v1349
        %1648 = vmatprep.subr.bf16.mxu0 %v1352
        %1649 = vmatpush1.bf16.msra.mxu0 %v1351
        %1650 = vmatprep.subr.bf16.mxu0 %v1354
        %1651 = vmatpush1.bf16.msra.mxu0 %v1353
        %1652 = vmatprep.subr.bf16.mxu0 %v1356
        %1653 = vmatpush1.bf16.msra.mxu0 %v1355
        %1654 = vmatprep.mubr.bf16.mxu0 %v740
        %1655 = vmatmul.mubr.bf16.gmra.mrb[0].mxu0 %v739
        %v1656 = vpop.f32.mrb[0].mxu0
        %v1657 = vadd.f32 %v1584, %v1656
        %v1658 = vpop.f32.mrb[0].mxu0
        %v1659 = vadd.f32 %v1586, %v1658
        %v1660 = vpop.f32.mrb[0].mxu0
        %v1661 = vadd.f32 %v1588, %v1660
        %v1662 = vpop.f32.mrb[0].mxu0
        %v1663 = vadd.f32 %v1590, %v1662
        %1664 = vmatprep.mubr.bf16.mxu0 %v748
        %1665 = vmatmul.mubr.bf16.gmra.mrb[0].mxu0 %v747
        %v1666 = vpop.f32.mrb[0].mxu0
        %v1667 = vadd.f32 %v1594, %v1666
        %v1668 = vpop.f32.mrb[0].mxu0
        %v1669 = vadd.f32 %v1596, %v1668
        %v1670 = vpop.f32.mrb[0].mxu0
        %v1671 = vadd.f32 %v1598, %v1670
        %v1672 = vpop.f32.mrb[0].mxu0
        %v1673 = vadd.f32 %v1600, %v1672
        %1674 = vmatprep.mubr.bf16.mxu0 %v756
        %1675 = vmatmul.mubr.bf16.gmra.mrb[0].mxu0 %v755
        %v1676 = vpop.f32.mrb[0].mxu0
        %v1677 = vadd.f32 %v1604, %v1676
        %v1678 = vpop.f32.mrb[0].mxu0
        %v1679 = vadd.f32 %v1606, %v1678
        %v1680 = vpop.f32.mrb[0].mxu0
        %v1681 = vadd.f32 %v1608, %v1680
        %v1682 = vpop.f32.mrb[0].mxu0
        %v1683 = vadd.f32 %v1610, %v1682
        %1684 = vmatprep.mubr.bf16.mxu0 %v764
        %1685 = vmatmul.mubr.bf16.gmra.mrb[0].mxu0 %v763
        %v1686 = vpop.f32.mrb[0].mxu0
        %v1687 = vadd.f32 %v1614, %v1686
        %v1688 = vpop.f32.mrb[0].mxu0
        %v1689 = vadd.f32 %v1616, %v1688
        %v1690 = vpop.f32.mrb[0].mxu0
        %v1691 = vadd.f32 %v1618, %v1690
        %v1692 = vpop.f32.mrb[0].mxu0
        %v1693 = vadd.f32 %v1620, %v1692
        %1694 = vdwg.mxu0
        %1695 = vmatprep.subr.bf16.mxu0 %v1358
        %1696 = vmatpush1.bf16.msra.mxu0 %v1357
        %1697 = vmatprep.subr.bf16.mxu0 %v1360
        %1698 = vmatpush1.bf16.msra.mxu0 %v1359
        %1699 = vmatprep.subr.bf16.mxu0 %v1362
        %1700 = vmatpush1.bf16.msra.mxu0 %v1361
        %1701 = vmatprep.subr.bf16.mxu0 %v1364
        %1702 = vmatpush1.bf16.msra.mxu0 %v1363
        %1703 = vmatprep.subr.bf16.mxu0 %v1366
        %1704 = vmatpush1.bf16.msra.mxu0 %v1365
        %1705 = vmatprep.subr.bf16.mxu0 %v1368
        %1706 = vmatpush1.bf16.msra.mxu0 %v1367
        %1707 = vmatprep.subr.bf16.mxu0 %v1370
        %1708 = vmatpush1.bf16.msra.mxu0 %v1369
        %1709 = vmatprep.subr.bf16.mxu0 %v1372
        %1710 = vmatpush1.bf16.msra.mxu0 %v1371
        %1711 = vmatprep.subr.bf16.mxu0 %v1374
        %1712 = vmatpush1.bf16.msra.mxu0 %v1373
        %1713 = vmatprep.subr.bf16.mxu0 %v1376
        %1714 = vmatpush1.bf16.msra.mxu0 %v1375
        %1715 = vmatprep.subr.bf16.mxu0 %v1378
        %1716 = vmatpush1.bf16.msra.mxu0 %v1377
        %1717 = vmatprep.subr.bf16.mxu0 %v1380
        %1718 = vmatpush1.bf16.msra.mxu0 %v1379
        %1719 = vmatprep.subr.bf16.mxu0 %v1382
        %1720 = vmatpush1.bf16.msra.mxu0 %v1381
        %1721 = vmatprep.subr.bf16.mxu0 %v1384
        %1722 = vmatpush1.bf16.msra.mxu0 %v1383
        %1723 = vmatprep.subr.bf16.mxu0 %v1386
        %1724 = vmatpush1.bf16.msra.mxu0 %v1385
        %1725 = vmatprep.subr.bf16.mxu0 %v1388
        %1726 = vmatpush1.bf16.msra.mxu0 %v1387
        %1727 = vmatprep.mubr.bf16.mxu0 %v742
        %1728 = vmatmul.mubr.bf16.gmra.mrb[0].mxu0 %v741
        %v1729 = vpop.f32.mrb[0].mxu0
        %v1730 = vadd.f32 %v1657, %v1729
        %v1731 = vpop.f32.mrb[0].mxu0
        %v1732 = vadd.f32 %v1659, %v1731
        %v1733 = vpop.f32.mrb[0].mxu0
        %v1734 = vadd.f32 %v1661, %v1733
        %v1735 = vpop.f32.mrb[0].mxu0
        %v1736 = vadd.f32 %v1663, %v1735
        %1737 = vmatprep.mubr.bf16.mxu0 %v750
        %1738 = vmatmul.mubr.bf16.gmra.mrb[0].mxu0 %v749
        %v1739 = vpop.f32.mrb[0].mxu0
        %v1740 = vadd.f32 %v1667, %v1739
        %v1741 = vpop.f32.mrb[0].mxu0
        %v1742 = vadd.f32 %v1669, %v1741
        %v1743 = vpop.f32.mrb[0].mxu0
        %v1744 = vadd.f32 %v1671, %v1743
        %v1745 = vpop.f32.mrb[0].mxu0
        %v1746 = vadd.f32 %v1673, %v1745
        %1747 = vmatprep.mubr.bf16.mxu0 %v758
        %1748 = vmatmul.mubr.bf16.gmra.mrb[0].mxu0 %v757
        %v1749 = vpop.f32.mrb[0].mxu0
        %v1750 = vadd.f32 %v1677, %v1749
        %v1751 = vpop.f32.mrb[0].mxu0
        %v1752 = vadd.f32 %v1679, %v1751
        %v1753 = vpop.f32.mrb[0].mxu0
        %v1754 = vadd.f32 %v1681, %v1753
        %v1755 = vpop.f32.mrb[0].mxu0
        %v1756 = vadd.f32 %v1683, %v1755
        %1757 = vmatprep.mubr.bf16.mxu0 %v766
        %1758 = vmatmul.mubr.bf16.gmra.mrb[0].mxu0 %v765
        %v1759 = vpop.f32.mrb[0].mxu0
        %v1760 = vadd.f32 %v1687, %v1759
        %v1761 = vpop.f32.mrb[0].mxu0
        %v1762 = vadd.f32 %v1689, %v1761
        %v1763 = vpop.f32.mrb[0].mxu0
        %v1764 = vadd.f32 %v1691, %v1763
        %v1765 = vpop.f32.mrb[0].mxu0
        %v1766 = vadd.f32 %v1693, %v1765
        %1767 = vdwg.mxu0
        %1768 = vmatprep.subr.bf16.mxu0 %v1390
        %1769 = vmatpush1.bf16.msra.mxu0 %v1389
        %1770 = vmatprep.subr.bf16.mxu0 %v1392
        %1771 = vmatpush1.bf16.msra.mxu0 %v1391
        %1772 = vmatprep.subr.bf16.mxu0 %v1394
        %1773 = vmatpush1.bf16.msra.mxu0 %v1393
        %1774 = vmatprep.subr.bf16.mxu0 %v1396
        %1775 = vmatpush1.bf16.msra.mxu0 %v1395
        %1776 = vmatprep.subr.bf16.mxu0 %v1398
        %1777 = vmatpush1.bf16.msra.mxu0 %v1397
        %1778 = vmatprep.subr.bf16.mxu0 %v1400
        %1779 = vmatpush1.bf16.msra.mxu0 %v1399
        %1780 = vmatprep.subr.bf16.mxu0 %v1402
        %1781 = vmatpush1.bf16.msra.mxu0 %v1401
        %1782 = vmatprep.subr.bf16.mxu0 %v1404
        %1783 = vmatpush1.bf16.msra.mxu0 %v1403
        %1784 = vmatprep.subr.bf16.mxu0 %v1406
        %1785 = vmatpush1.bf16.msra.mxu0 %v1405
        %1786 = vmatprep.subr.bf16.mxu0 %v1408
        %1787 = vmatpush1.bf16.msra.mxu0 %v1407
        %1788 = vmatprep.subr.bf16.mxu0 %v1410
        %1789 = vmatpush1.bf16.msra.mxu0 %v1409
        %1790 = vmatprep.subr.bf16.mxu0 %v1412
        %1791 = vmatpush1.bf16.msra.mxu0 %v1411
        %1792 = vmatprep.subr.bf16.mxu0 %v1414
        %1793 = vmatpush1.bf16.msra.mxu0 %v1413
        %1794 = vmatprep.subr.bf16.mxu0 %v1416
        %1795 = vmatpush1.bf16.msra.mxu0 %v1415
        %1796 = vmatprep.subr.bf16.mxu0 %v1418
        %1797 = vmatpush1.bf16.msra.mxu0 %v1417
        %1798 = vmatprep.subr.bf16.mxu0 %v1420
        %1799 = vmatpush1.bf16.msra.mxu0 %v1419
        %1800 = vmatprep.mubr.bf16.mxu0 %v744
        %1801 = vmatmul.mubr.bf16.gmra.mrb[0].mxu0 %v743
        %v1802 = vpop.f32.mrb[0].mxu0
        %v1803 = vadd.f32 %v1730, %v1802
        %v1804 = vpop.f32.mrb[0].mxu0
        %v1805 = vadd.f32 %v1732, %v1804
        %v1806 = vpop.f32.mrb[0].mxu0
        %v1807 = vadd.f32 %v1734, %v1806
        %v1808 = vpop.f32.mrb[0].mxu0
        %v1809 = vadd.f32 %v1736, %v1808
        %1810 = vmatprep.mubr.bf16.mxu0 %v752
        %1811 = vmatmul.mubr.bf16.gmra.mrb[0].mxu0 %v751
        %v1812 = vpop.f32.mrb[0].mxu0
        %v1813 = vadd.f32 %v1740, %v1812
        %v1814 = vpop.f32.mrb[0].mxu0
        %v1815 = vadd.f32 %v1742, %v1814
        %v1816 = vpop.f32.mrb[0].mxu0
        %v1817 = vadd.f32 %v1744, %v1816
        %v1818 = vpop.f32.mrb[0].mxu0
        %v1819 = vadd.f32 %v1746, %v1818
        %1820 = vmatprep.mubr.bf16.mxu0 %v760
        %1821 = vmatmul.mubr.bf16.gmra.mrb[0].mxu0 %v759
        %v1822 = vpop.f32.mrb[0].mxu0
        %v1823 = vadd.f32 %v1750, %v1822
        %v1824 = vpop.f32.mrb[0].mxu0
        %v1825 = vadd.f32 %v1752, %v1824
        %v1826 = vpop.f32.mrb[0].mxu0
        %v1827 = vadd.f32 %v1754, %v1826
        %v1828 = vpop.f32.mrb[0].mxu0
        %v1829 = vadd.f32 %v1756, %v1828
        %1830 = vmatprep.mubr.bf16.mxu0 %v768
        %1831 = vmatmul.mubr.bf16.gmra.mrb[0].mxu0 %v767
        %v1832 = vpop.f32.mrb[0].mxu0
        %v1833 = vadd.f32 %v1760, %v1832
        %v1834 = vpop.f32.mrb[0].mxu0
        %v1835 = vadd.f32 %v1762, %v1834
        %v1836 = vpop.f32.mrb[0].mxu0
        %v1837 = vadd.f32 %v1764, %v1836
        %v1838 = vpop.f32.mrb[0].mxu0
        %v1839 = vadd.f32 %v1766, %v1838
        %1840 = vdwg.mxu0
        %vm1841 = vcmp.gt.f32.partialorder %v1803, 0.0
        %vm1842 = vcmp.gt.f32.partialorder %v1805, 0.0
        %vm1843 = vcmp.gt.f32.partialorder %v1807, 0.0
        %vm1844 = vcmp.gt.f32.partialorder %v1809, 0.0
        %vm1845 = vcmp.gt.f32.partialorder %v1813, 0.0
        %vm1846 = vcmp.gt.f32.partialorder %v1815, 0.0
        %vm1847 = vcmp.gt.f32.partialorder %v1817, 0.0
        %vm1848 = vcmp.gt.f32.partialorder %v1819, 0.0
        %vm1849 = vcmp.gt.f32.partialorder %v1823, 0.0
        %vm1850 = vcmp.gt.f32.partialorder %v1825, 0.0
        %vm1851 = vcmp.gt.f32.partialorder %v1827, 0.0
        %vm1852 = vcmp.gt.f32.partialorder %v1829, 0.0
        %vm1853 = vcmp.gt.f32.partialorder %v1833, 0.0
        %vm1854 = vcmp.gt.f32.partialorder %v1835, 0.0
        %vm1855 = vcmp.gt.f32.partialorder %v1837, 0.0
        %vm1856 = vcmp.gt.f32.partialorder %v1839, 0.0
        %v1857 = vmul.f32 %v1803, 0.2
        %v1858 = vmul.f32 %v1805, 0.2
        %v1859 = vmul.f32 %v1807, 0.2
        %v1860 = vmul.f32 %v1809, 0.2
        %v1861 = vmul.f32 %v1813, 0.2
        %v1862 = vmul.f32 %v1815, 0.2
        %v1863 = vmul.f32 %v1817, 0.2
        %v1864 = vmul.f32 %v1819, 0.2
        %v1865 = vmul.f32 %v1823, 0.2
        %v1866 = vmul.f32 %v1825, 0.2
        %v1867 = vmul.f32 %v1827, 0.2
        %v1868 = vmul.f32 %v1829, 0.2
        %v1869 = vmul.f32 %v1833, 0.2
        %v1870 = vmul.f32 %v1835, 0.2
        %v1871 = vmul.f32 %v1837, 0.2
        %v1872 = vmul.f32 %v1839, 0.2
        %v1873 = vsel %vm1841, %v1803, %v1857
        %v1874 = vsel %vm1842, %v1805, %v1858
        %v1875 = vsel %vm1843, %v1807, %v1859
        %v1876 = vsel %vm1844, %v1809, %v1860
        %v1877 = vsel %vm1845, %v1813, %v1861
        %v1878 = vsel %vm1846, %v1815, %v1862
        %v1879 = vsel %vm1847, %v1817, %v1863
        %v1880 = vsel %vm1848, %v1819, %v1864
        %v1881 = vsel %vm1849, %v1823, %v1865
        %v1882 = vsel %vm1850, %v1825, %v1866
        %v1883 = vsel %vm1851, %v1827, %v1867
        %v1884 = vsel %vm1852, %v1829, %v1868
        %v1885 = vsel %vm1853, %v1833, %v1869
        %v1886 = vsel %vm1854, %v1835, %v1870
        %v1887 = vsel %vm1855, %v1837, %v1871
        %v1888 = vsel %vm1856, %v1839, %v1872
        %v1889 = vpack.c.bf16 %v1875, %v1873
        %v1890 = vpack.c.bf16 %v1876, %v1874
        %v1891 = vpack.c.bf16 %v1879, %v1877
        %v1892 = vpack.c.bf16 %v1880, %v1878
        %v1893 = vpack.c.bf16 %v1883, %v1881
        %v1894 = vpack.c.bf16 %v1884, %v1882
        %v1895 = vpack.c.bf16 %v1887, %v1885
        %v1896 = vpack.c.bf16 %v1888, %v1886
        %v1897 = vld [vmem:[#allocation8] sm:$0xf]
        %v1898 = vld [vmem:[#allocation8 + $0x4] sm:$0xf]
        %v1899 = vld [vmem:[#allocation8 + $0x8] sm:$0xf]
        %v1900 = vld [vmem:[#allocation8 + $0xc] sm:$0xf]
        %v1901 = vld [vmem:[#allocation8 + $0x10] sm:$0xf]
        %v1902 = vld [vmem:[#allocation8 + $0x14] sm:$0xf]
        %v1903 = vld [vmem:[#allocation8 + $0x18] sm:$0xf]
        %v1904 = vld [vmem:[#allocation8 + $0x1c] sm:$0xf]
        %v1905 = vld [vmem:[#allocation8 + $0x20] sm:$0xf]
        %v1906 = vld [vmem:[#allocation8 + $0x24] sm:$0xf]
        %v1907 = vld [vmem:[#allocation8 + $0x28] sm:$0xf]
        %v1908 = vld [vmem:[#allocation8 + $0x2c] sm:$0xf]
        %v1909 = vld [vmem:[#allocation8 + $0x30] sm:$0xf]
        %v1910 = vld [vmem:[#allocation8 + $0x34] sm:$0xf]
        %v1911 = vld [vmem:[#allocation8 + $0x38] sm:$0xf]
        %v1912 = vld [vmem:[#allocation8 + $0x3c] sm:$0xf]
        %v1913 = vld [vmem:[#allocation8 + $0x40] sm:$0xf]
        %v1914 = vld [vmem:[#allocation8 + $0x44] sm:$0xf]
        %v1915 = vld [vmem:[#allocation8 + $0x48] sm:$0xf]
        %v1916 = vld [vmem:[#allocation8 + $0x4c] sm:$0xf]
        %v1917 = vld [vmem:[#allocation8 + $0x50] sm:$0xf]
        %v1918 = vld [vmem:[#allocation8 + $0x54] sm:$0xf]
        %v1919 = vld [vmem:[#allocation8 + $0x58] sm:$0xf]
        %v1920 = vld [vmem:[#allocation8 + $0x5c] sm:$0xf]
        %v1921 = vld [vmem:[#allocation8 + $0x60] sm:$0xf]
        %v1922 = vld [vmem:[#allocation8 + $0x64] sm:$0xf]
        %v1923 = vld [vmem:[#allocation8 + $0x68] sm:$0xf]
        %v1924 = vld [vmem:[#allocation8 + $0x6c] sm:$0xf]
        %v1925 = vld [vmem:[#allocation8 + $0x70] sm:$0xf]
        %v1926 = vld [vmem:[#allocation8 + $0x74] sm:$0xf]
        %v1927 = vld [vmem:[#allocation8 + $0x78] sm:$0xf]
        %v1928 = vld [vmem:[#allocation8 + $0x7c] sm:$0xf]
        %v1929 = vld [vmem:[%s5] sm:$0x1]
        %v1931 = vlaneseq
        %v1932 = vshrl.u32 %v1931, 7
        %v1933 = vsub.s32 0, %v1932
        %v1934 = vrot.slane %v1929, %v1933
        %v1968 = vunpack.c.l.b16 %v1897
        %v1969 = vunpack.c.l.b16 %v1898
        %v1970 = vunpack.c.l.b16 %v1899
        %v1971 = vunpack.c.l.b16 %v1900
        %v1972 = vunpack.c.l.b16 %v1901
        %v1973 = vunpack.c.l.b16 %v1902
        %v1974 = vunpack.c.l.b16 %v1903
        %v1975 = vunpack.c.l.b16 %v1904
        %v1976 = vunpack.c.l.b16 %v1905
        %v1977 = vunpack.c.l.b16 %v1906
        %v1978 = vunpack.c.l.b16 %v1907
        %v1979 = vunpack.c.l.b16 %v1908
        %v1980 = vunpack.c.l.b16 %v1909
        %v1981 = vunpack.c.l.b16 %v1910
        %v1982 = vunpack.c.l.b16 %v1911
        %v1983 = vunpack.c.l.b16 %v1912
        %v1984 = vunpack.c.l.b16 %v1913
        %v1985 = vunpack.c.l.b16 %v1914
        %v1986 = vunpack.c.l.b16 %v1915
        %v1987 = vunpack.c.l.b16 %v1916
        %v1988 = vunpack.c.l.b16 %v1917
        %v1989 = vunpack.c.l.b16 %v1918
        %v1990 = vunpack.c.l.b16 %v1919
        %v1991 = vunpack.c.l.b16 %v1920
        %v1992 = vunpack.c.l.b16 %v1921
        %v1993 = vunpack.c.l.b16 %v1922
        %v1994 = vunpack.c.l.b16 %v1923
        %v1995 = vunpack.c.l.b16 %v1924
        %v1996 = vunpack.c.l.b16 %v1925
        %v1997 = vunpack.c.l.b16 %v1926
        %v1998 = vunpack.c.l.b16 %v1927
        %v1999 = vunpack.c.l.b16 %v1928
        %v2000 = vpack.c.b16 %v1969, %v1968
        %v2001 = vpack.c.b16 %v1971, %v1970
        %v2002 = vpack.c.b16 %v1973, %v1972
        %v2003 = vpack.c.b16 %v1975, %v1974
        %v2004 = vpack.c.b16 %v1977, %v1976
        %v2005 = vpack.c.b16 %v1979, %v1978
        %v2006 = vpack.c.b16 %v1981, %v1980
        %v2007 = vpack.c.b16 %v1983, %v1982
        %v2008 = vpack.c.b16 %v1985, %v1984
        %v2009 = vpack.c.b16 %v1987, %v1986
        %v2010 = vpack.c.b16 %v1989, %v1988
        %v2011 = vpack.c.b16 %v1991, %v1990
        %v2012 = vpack.c.b16 %v1993, %v1992
        %v2013 = vpack.c.b16 %v1995, %v1994
        %v2014 = vpack.c.b16 %v1997, %v1996
        %v2015 = vpack.c.b16 %v1999, %v1998
        %2032 = vmatprep.subr.bf16.mxu0 0
        %2033 = vmatpush1.bf16.msra.mxu0 %v2000
        %2034 = vmatprep.subr.bf16.mxu0 0
        %2035 = vmatpush1.bf16.msra.mxu0 %v2001
        %2036 = vmatprep.subr.bf16.mxu0 0
        %2037 = vmatpush1.bf16.msra.mxu0 %v2002
        %2038 = vmatprep.subr.bf16.mxu0 0
        %2039 = vmatpush1.bf16.msra.mxu0 %v2003
        %2040 = vmatprep.subr.bf16.mxu0 0
        %2041 = vmatpush1.bf16.msra.mxu0 %v2004
        %2042 = vmatprep.subr.bf16.mxu0 0
        %2043 = vmatpush1.bf16.msra.mxu0 %v2005
        %2044 = vmatprep.subr.bf16.mxu0 0
        %2045 = vmatpush1.bf16.msra.mxu0 %v2006
        %2046 = vmatprep.subr.bf16.mxu0 0
        %2047 = vmatpush1.bf16.msra.mxu0 %v2007
        %2048 = vmatprep.subr.bf16.mxu0 0
        %2049 = vmatpush1.bf16.msra.mxu0 %v2008
        %2050 = vmatprep.subr.bf16.mxu0 0
        %2051 = vmatpush1.bf16.msra.mxu0 %v2009
        %2052 = vmatprep.subr.bf16.mxu0 0
        %2053 = vmatpush1.bf16.msra.mxu0 %v2010
        %2054 = vmatprep.subr.bf16.mxu0 0
        %2055 = vmatpush1.bf16.msra.mxu0 %v2011
        %2056 = vmatprep.subr.bf16.mxu0 0
        %2057 = vmatpush1.bf16.msra.mxu0 %v2012
        %2058 = vmatprep.subr.bf16.mxu0 0
        %2059 = vmatpush1.bf16.msra.mxu0 %v2013
        %2060 = vmatprep.subr.bf16.mxu0 0
        %2061 = vmatpush1.bf16.msra.mxu0 %v2014
        %2062 = vmatprep.subr.bf16.mxu0 0
        %2063 = vmatpush1.bf16.msra.mxu0 %v2015
        %2064 = vmatprep.mubr.bf16.mxu0 %v1890
        %2065 = vmatmul.mubr.bf16.gmra.mrb[0].mxu0 %v1889
        %v2066 = vpop.f32.mrb[0].mxu0
        %v2067 = vadd.f32 %v1934, %v2066
        %v2068 = vpop.f32.mrb[0].mxu0
        %v2069 = vpop.f32.mrb[0].mxu0
        %v2070 = vadd.f32 %v1934, %v2069
        %v2071 = vpop.f32.mrb[0].mxu0
        %2072 = vmatprep.mubr.bf16.mxu0 %v1892
        %2073 = vmatmul.mubr.bf16.gmra.mrb[0].mxu0 %v1891
        %v2074 = vpop.f32.mrb[0].mxu0
        %v2075 = vadd.f32 %v1934, %v2074
        %v2076 = vpop.f32.mrb[0].mxu0
        %v2077 = vpop.f32.mrb[0].mxu0
        %v2078 = vadd.f32 %v1934, %v2077
        %v2079 = vpop.f32.mrb[0].mxu0
        %2080 = vmatprep.mubr.bf16.mxu0 %v1894
        %2081 = vmatmul.mubr.bf16.gmra.mrb[0].mxu0 %v1893
        %v2082 = vpop.f32.mrb[0].mxu0
        %v2083 = vadd.f32 %v1934, %v2082
        %v2084 = vpop.f32.mrb[0].mxu0
        %v2085 = vpop.f32.mrb[0].mxu0
        %v2086 = vadd.f32 %v1934, %v2085
        %v2087 = vpop.f32.mrb[0].mxu0
        %2088 = vmatprep.mubr.bf16.mxu0 %v1896
        %2089 = vmatmul.mubr.bf16.gmra.mrb[0].mxu0 %v1895
        %v2090 = vpop.f32.mrb[0].mxu0
        %v2091 = vadd.f32 %v1934, %v2090
        %v2092 = vpop.f32.mrb[0].mxu0
        %v2093 = vpop.f32.mrb[0].mxu0
        %v2094 = vadd.f32 %v1934, %v2093
        %v2095 = vpop.f32.mrb[0].mxu0
        %2096 = vdwg.mxu0
        %vm2097 = vcmp.gt.f32.partialorder %v2067, 0.0
        %vm2098 = vcmp.gt.f32.partialorder %v2070, 0.0
        %vm2099 = vcmp.gt.f32.partialorder %v2075, 0.0
        %vm2100 = vcmp.gt.f32.partialorder %v2078, 0.0
        %vm2101 = vcmp.gt.f32.partialorder %v2083, 0.0
        %vm2102 = vcmp.gt.f32.partialorder %v2086, 0.0
        %vm2103 = vcmp.gt.f32.partialorder %v2091, 0.0
        %vm2104 = vcmp.gt.f32.partialorder %v2094, 0.0
        %v2105 = vmul.f32 %v2067, 0.2
        %v2106 = vmul.f32 %v2070, 0.2
        %v2107 = vmul.f32 %v2075, 0.2
        %v2108 = vmul.f32 %v2078, 0.2
        %v2109 = vmul.f32 %v2083, 0.2
        %v2110 = vmul.f32 %v2086, 0.2
        %v2111 = vmul.f32 %v2091, 0.2
        %v2112 = vmul.f32 %v2094, 0.2
        %v2113 = vsel %vm2097, %v2067, %v2105
        %v2114 = vsel %vm2098, %v2070, %v2106
        %v2115 = vsel %vm2099, %v2075, %v2107
        %v2116 = vsel %vm2100, %v2078, %v2108
        %v2117 = vsel %vm2101, %v2083, %v2109
        %v2118 = vsel %vm2102, %v2086, %v2110
        %v2119 = vsel %vm2103, %v2091, %v2111
        %v2120 = vsel %vm2104, %v2094, %v2112
        %v2121 = vpack.c.bf16 %v2114, %v2113
        %v2122 = vpack.c.bf16 %v2116, %v2115
        %v2123 = vpack.c.bf16 %v2118, %v2117
        %v2124 = vpack.c.bf16 %v2120, %v2119
        %v2125 = vld [vmem:[#allocation10] sm:$0xff]
        %v2126 = vld [vmem:[#allocation10 + $0x8] sm:$0xff]
        %v2127 = vld [vmem:[#allocation10 + $0x10] sm:$0xff]
        %v2128 = vld [vmem:[#allocation10 + $0x18] sm:$0xff]
        %v2129 = vld [vmem:[#allocation10 + $0x20] sm:$0xff]
        %v2130 = vld [vmem:[#allocation10 + $0x28] sm:$0xff]
        %v2131 = vld [vmem:[#allocation10 + $0x30] sm:$0xff]
        %v2132 = vld [vmem:[#allocation10 + $0x38] sm:$0xff]
        %v2133 = vld [vmem:[#allocation10 + $0x40] sm:$0xff]
        %v2134 = vld [vmem:[#allocation10 + $0x48] sm:$0xff]
        %v2135 = vld [vmem:[#allocation10 + $0x50] sm:$0xff]
        %v2136 = vld [vmem:[#allocation10 + $0x58] sm:$0xff]
        %v2137 = vld [vmem:[#allocation10 + $0x60] sm:$0xff]
        %v2138 = vld [vmem:[#allocation10 + $0x68] sm:$0xff]
        %v2139 = vld [vmem:[#allocation10 + $0x70] sm:$0xff]
        %v2140 = vld [vmem:[#allocation10 + $0x78] sm:$0xff]
        %v2141 = vld [vmem:[%s7] sm:$0x3]
        %v2143 = vlaneseq
        %v2144 = vshrl.u32 %v2143, 7
        %v2145 = vsub.s32 0, %v2144
        %v2146 = vrot.slane %v2141, %v2145
        %v2147 = vlaneseq
        %v2148 = vshrl.u32 %v2147, 7
        %v2149 = vsub.s32 1, %v2148
        %v2150 = vrot.slane %v2141, %v2149
        %v2169 = vunpack.c.l.b16 %v2125
        %v2170 = vunpack.c.h.b16 %v2125
        %v2171 = vunpack.c.l.b16 %v2126
        %v2172 = vunpack.c.h.b16 %v2126
        %v2173 = vunpack.c.l.b16 %v2127
        %v2174 = vunpack.c.h.b16 %v2127
        %v2175 = vunpack.c.l.b16 %v2128
        %v2176 = vunpack.c.h.b16 %v2128
        %v2177 = vunpack.c.l.b16 %v2129
        %v2178 = vunpack.c.h.b16 %v2129
        %v2179 = vunpack.c.l.b16 %v2130
        %v2180 = vunpack.c.h.b16 %v2130
        %v2181 = vunpack.c.l.b16 %v2131
        %v2182 = vunpack.c.h.b16 %v2131
        %v2183 = vunpack.c.l.b16 %v2132
        %v2184 = vunpack.c.h.b16 %v2132
        %v2185 = vunpack.c.l.b16 %v2133
        %v2186 = vunpack.c.h.b16 %v2133
        %v2187 = vunpack.c.l.b16 %v2134
        %v2188 = vunpack.c.h.b16 %v2134
        %v2189 = vunpack.c.l.b16 %v2135
        %v2190 = vunpack.c.h.b16 %v2135
        %v2191 = vunpack.c.l.b16 %v2136
        %v2192 = vunpack.c.h.b16 %v2136
        %v2193 = vunpack.c.l.b16 %v2137
        %v2194 = vunpack.c.h.b16 %v2137
        %v2195 = vunpack.c.l.b16 %v2138
        %v2196 = vunpack.c.h.b16 %v2138
        %v2197 = vunpack.c.l.b16 %v2139
        %v2198 = vunpack.c.h.b16 %v2139
        %v2199 = vunpack.c.l.b16 %v2140
        %v2200 = vunpack.c.h.b16 %v2140
        %v2201 = vpack.c.b16 %v2171, %v2169
        %v2202 = vpack.c.b16 %v2172, %v2170
        %v2203 = vpack.c.b16 %v2175, %v2173
        %v2204 = vpack.c.b16 %v2176, %v2174
        %v2205 = vpack.c.b16 %v2179, %v2177
        %v2206 = vpack.c.b16 %v2180, %v2178
        %v2207 = vpack.c.b16 %v2183, %v2181
        %v2208 = vpack.c.b16 %v2184, %v2182
        %v2209 = vpack.c.b16 %v2187, %v2185
        %v2210 = vpack.c.b16 %v2188, %v2186
        %v2211 = vpack.c.b16 %v2191, %v2189
        %v2212 = vpack.c.b16 %v2192, %v2190
        %v2213 = vpack.c.b16 %v2195, %v2193
        %v2214 = vpack.c.b16 %v2196, %v2194
        %v2215 = vpack.c.b16 %v2199, %v2197
        %v2216 = vpack.c.b16 %v2200, %v2198
        %2233 = vmatprep.subr.bf16.mxu0 %v2202
        %2234 = vmatpush1.bf16.msra.mxu0 %v2201
        %2235 = vmatprep.subr.bf16.mxu0 %v2204
        %2236 = vmatpush1.bf16.msra.mxu0 %v2203
        %2237 = vmatprep.subr.bf16.mxu0 %v2206
        %2238 = vmatpush1.bf16.msra.mxu0 %v2205
        %2239 = vmatprep.subr.bf16.mxu0 %v2208
        %2240 = vmatpush1.bf16.msra.mxu0 %v2207
        %2241 = vmatprep.subr.bf16.mxu0 %v2210
        %2242 = vmatpush1.bf16.msra.mxu0 %v2209
        %2243 = vmatprep.subr.bf16.mxu0 %v2212
        %2244 = vmatpush1.bf16.msra.mxu0 %v2211
        %2245 = vmatprep.subr.bf16.mxu0 %v2214
        %2246 = vmatpush1.bf16.msra.mxu0 %v2213
        %2247 = vmatprep.subr.bf16.mxu0 %v2216
        %2248 = vmatpush1.bf16.msra.mxu0 %v2215
        %2249 = vmatprep.subr.bf16.mxu0 0
        %2250 = vmatpush1.bf16.msra.mxu0 0
        %2251 = vmatprep.subr.bf16.mxu0 0
        %2252 = vmatpush1.bf16.msra.mxu0 0
        %2253 = vmatprep.subr.bf16.mxu0 0
        %2254 = vmatpush1.bf16.msra.mxu0 0
        %2255 = vmatprep.subr.bf16.mxu0 0
        %2256 = vmatpush1.bf16.msra.mxu0 0
        %2257 = vmatprep.subr.bf16.mxu0 0
        %2258 = vmatpush1.bf16.msra.mxu0 0
        %2259 = vmatprep.subr.bf16.mxu0 0
        %2260 = vmatpush1.bf16.msra.mxu0 0
        %2261 = vmatprep.subr.bf16.mxu0 0
        %2262 = vmatpush1.bf16.msra.mxu0 0
        %2263 = vmatprep.subr.bf16.mxu0 0
        %2264 = vmatpush1.bf16.msra.mxu0 0
        %2265 = vmatprep.mubr.bf16.mxu0 0
        %2266 = vmatmul.mubr.bf16.gmra.mrb[0].mxu0 %v2121
        %v2267 = vpop.f32.mrb[0].mxu0
        %v2268 = vadd.f32 %v2146, %v2267
        %v2269 = vpop.f32.mrb[0].mxu0
        %v2270 = vadd.f32 %v2150, %v2269
        %v2271 = vpop.f32.mrb[0].mxu0
        %v2272 = vadd.f32 %v2146, %v2271
        %v2273 = vpop.f32.mrb[0].mxu0
        %v2274 = vadd.f32 %v2150, %v2273
        %2275 = vmatprep.mubr.bf16.mxu0 0
        %2276 = vmatmul.mubr.bf16.gmra.mrb[0].mxu0 %v2122
        %v2277 = vpop.f32.mrb[0].mxu0
        %v2278 = vadd.f32 %v2146, %v2277
        %v2279 = vpop.f32.mrb[0].mxu0
        %v2280 = vadd.f32 %v2150, %v2279
        %v2281 = vpop.f32.mrb[0].mxu0
        %v2282 = vadd.f32 %v2146, %v2281
        %v2283 = vpop.f32.mrb[0].mxu0
        %v2284 = vadd.f32 %v2150, %v2283
        %2285 = vmatprep.mubr.bf16.mxu0 0
        %2286 = vmatmul.mubr.bf16.gmra.mrb[0].mxu0 %v2123
        %v2287 = vpop.f32.mrb[0].mxu0
        %v2288 = vadd.f32 %v2146, %v2287
        %v2289 = vpop.f32.mrb[0].mxu0
        %v2290 = vadd.f32 %v2150, %v2289
        %v2291 = vpop.f32.mrb[0].mxu0
        %v2292 = vadd.f32 %v2146, %v2291
        %v2293 = vpop.f32.mrb[0].mxu0
        %v2294 = vadd.f32 %v2150, %v2293
        %2295 = vmatprep.mubr.bf16.mxu0 0
        %2296 = vmatmul.mubr.bf16.gmra.mrb[0].mxu0 %v2124
        %v2297 = vpop.f32.mrb[0].mxu0
        %v2298 = vadd.f32 %v2146, %v2297
        %v2299 = vpop.f32.mrb[0].mxu0
        %v2300 = vadd.f32 %v2150, %v2299
        %v2301 = vpop.f32.mrb[0].mxu0
        %v2302 = vadd.f32 %v2146, %v2301
        %v2303 = vpop.f32.mrb[0].mxu0
        %v2304 = vadd.f32 %v2150, %v2303
        %2305 = vdwg.mxu0
        %v2306 = vmul.f32 %v2270, 0.5
        %v2307 = vmul.f32 %v2274, 0.5
        %v2308 = vmul.f32 %v2280, 0.5
        %v2309 = vmul.f32 %v2284, 0.5
        %v2310 = vmul.f32 %v2290, 0.5
        %v2311 = vmul.f32 %v2294, 0.5
        %v2312 = vmul.f32 %v2300, 0.5
        %v2313 = vmul.f32 %v2304, 0.5
        %v2314 = vmul.f32 %v2306, 1.442695
        %v2315 = vpow.pop %v2314
        %v2316 = vmul.f32 %v2307, 1.442695
        %v2317 = vpow.pop %v2316
        %v2318 = vmul.f32 %v2308, 1.442695
        %v2319 = vpow.pop %v2318
        %v2320 = vmul.f32 %v2309, 1.442695
        %v2321 = vpow.pop %v2320
        %v2322 = vmul.f32 %v2310, 1.442695
        %v2323 = vpow.pop %v2322
        %v2324 = vmul.f32 %v2311, 1.442695
        %v2325 = vpow.pop %v2324
        %v2326 = vmul.f32 %v2312, 1.442695
        %v2327 = vpow.pop %v2326
        %v2328 = vmul.f32 %v2313, 1.442695
        %v2329 = vpow.pop %v2328
        %v2330 = vld [vmem:[%s576] sm:$0xff]
        %v2331 = vld [vmem:[%s576 + $0x8] sm:$0xff]
        %v2332 = vld [vmem:[%s576 + $0x10] sm:$0xff]
        %v2333 = vld [vmem:[%s576 + $0x18] sm:$0xff]
        %v2334 = vld [vmem:[%s576 + $0x20] sm:$0xff]
        %v2335 = vld [vmem:[%s576 + $0x28] sm:$0xff]
        %v2336 = vld [vmem:[%s576 + $0x30] sm:$0xff]
        %v2337 = vld [vmem:[%s576 + $0x38] sm:$0xff]
        %v2338 = vmul.f32 %v2315, %v2330
        %v2339 = vmul.f32 %v2317, %v2331
        %v2340 = vmul.f32 %v2319, %v2332
        %v2341 = vmul.f32 %v2321, %v2333
        %v2342 = vmul.f32 %v2323, %v2334
        %v2343 = vmul.f32 %v2325, %v2335
        %v2344 = vmul.f32 %v2327, %v2336
        %v2345 = vmul.f32 %v2329, %v2337
        %v2346 = vadd.f32 %v2268, %v2338
        %v2347 = vadd.f32 %v2272, %v2339
        %v2348 = vadd.f32 %v2278, %v2340
        %v2349 = vadd.f32 %v2282, %v2341
        %v2350 = vadd.f32 %v2288, %v2342
        %v2351 = vadd.f32 %v2292, %v2343
        %v2352 = vadd.f32 %v2298, %v2344
        %v2353 = vadd.f32 %v2302, %v2345
        %v2354 = vpack.c.bf16 %v2347, %v2346
        %v2355 = vpack.c.bf16 %v2349, %v2348
        %v2356 = vpack.c.bf16 %v2351, %v2350
        %v2357 = vpack.c.bf16 %v2353, %v2352
        %v2358 = vld [vmem:[#allocation11] sm:$0xf]
        %v2359 = vld [vmem:[#allocation11 + $0x4] sm:$0xf]
        %v2360 = vld [vmem:[#allocation11 + $0x8] sm:$0xf]
        %v2361 = vld [vmem:[#allocation11 + $0xc] sm:$0xf]
        %v2362 = vld [vmem:[#allocation11 + $0x10] sm:$0xf]
        %v2363 = vld [vmem:[#allocation11 + $0x14] sm:$0xf]
        %v2364 = vld [vmem:[#allocation11 + $0x18] sm:$0xf]
        %v2365 = vld [vmem:[#allocation11 + $0x1c] sm:$0xf]
        %v2366 = vld [vmem:[#allocation11 + $0x20] sm:$0xf]
        %v2367 = vld [vmem:[#allocation11 + $0x24] sm:$0xf]
        %v2368 = vld [vmem:[#allocation11 + $0x28] sm:$0xf]
        %v2369 = vld [vmem:[#allocation11 + $0x2c] sm:$0xf]
        %v2370 = vld [vmem:[#allocation11 + $0x30] sm:$0xf]
        %v2371 = vld [vmem:[#allocation11 + $0x34] sm:$0xf]
        %v2372 = vld [vmem:[#allocation11 + $0x38] sm:$0xf]
        %v2373 = vld [vmem:[#allocation11 + $0x3c] sm:$0xf]
        %v2374 = vld [vmem:[#allocation13] sm:$0x1]
        %v2376 = vlaneseq
        %v2377 = vshrl.u32 %v2376, 7
        %v2378 = vsub.s32 0, %v2377
        %v2379 = vrot.slane %v2374, %v2378
        %v2397 = vunpack.c.l.b16 %v2358
        %v2398 = vunpack.c.l.b16 %v2359
        %v2399 = vunpack.c.l.b16 %v2360
        %v2400 = vunpack.c.l.b16 %v2361
        %v2401 = vunpack.c.l.b16 %v2362
        %v2402 = vunpack.c.l.b16 %v2363
        %v2403 = vunpack.c.l.b16 %v2364
        %v2404 = vunpack.c.l.b16 %v2365
        %v2405 = vunpack.c.l.b16 %v2366
        %v2406 = vunpack.c.l.b16 %v2367
        %v2407 = vunpack.c.l.b16 %v2368
        %v2408 = vunpack.c.l.b16 %v2369
        %v2409 = vunpack.c.l.b16 %v2370
        %v2410 = vunpack.c.l.b16 %v2371
        %v2411 = vunpack.c.l.b16 %v2372
        %v2412 = vunpack.c.l.b16 %v2373
        %v2413 = vpack.c.b16 %v2398, %v2397
        %v2414 = vpack.c.b16 %v2400, %v2399
        %v2415 = vpack.c.b16 %v2402, %v2401
        %v2416 = vpack.c.b16 %v2404, %v2403
        %v2417 = vpack.c.b16 %v2406, %v2405
        %v2418 = vpack.c.b16 %v2408, %v2407
        %v2419 = vpack.c.b16 %v2410, %v2409
        %v2420 = vpack.c.b16 %v2412, %v2411
        %2429 = vmatprep.subr.bf16.mxu0 0
        %2430 = vmatpush1.bf16.msra.mxu0 %v2413
        %2431 = vmatprep.subr.bf16.mxu0 0
        %2432 = vmatpush1.bf16.msra.mxu0 %v2414
        %2433 = vmatprep.subr.bf16.mxu0 0
        %2434 = vmatpush1.bf16.msra.mxu0 %v2415
        %2435 = vmatprep.subr.bf16.mxu0 0
        %2436 = vmatpush1.bf16.msra.mxu0 %v2416
        %2437 = vmatprep.subr.bf16.mxu0 0
        %2438 = vmatpush1.bf16.msra.mxu0 %v2417
        %2439 = vmatprep.subr.bf16.mxu0 0
        %2440 = vmatpush1.bf16.msra.mxu0 %v2418
        %2441 = vmatprep.subr.bf16.mxu0 0
        %2442 = vmatpush1.bf16.msra.mxu0 %v2419
        %2443 = vmatprep.subr.bf16.mxu0 0
        %2444 = vmatpush1.bf16.msra.mxu0 %v2420
        %2445 = vmatprep.subr.bf16.mxu0 0
        %2446 = vmatpush1.bf16.msra.mxu0 0
        %2447 = vmatprep.subr.bf16.mxu0 0
        %2448 = vmatpush1.bf16.msra.mxu0 0
        %2449 = vmatprep.subr.bf16.mxu0 0
        %2450 = vmatpush1.bf16.msra.mxu0 0
        %2451 = vmatprep.subr.bf16.mxu0 0
        %2452 = vmatpush1.bf16.msra.mxu0 0
        %2453 = vmatprep.subr.bf16.mxu0 0
        %2454 = vmatpush1.bf16.msra.mxu0 0
        %2455 = vmatprep.subr.bf16.mxu0 0
        %2456 = vmatpush1.bf16.msra.mxu0 0
        %2457 = vmatprep.subr.bf16.mxu0 0
        %2458 = vmatpush1.bf16.msra.mxu0 0
        %2459 = vmatprep.subr.bf16.mxu0 0
        %2460 = vmatpush1.bf16.msra.mxu0 0
        %2461 = vmatprep.mubr.bf16.mxu0 0
        %2462 = vmatmul.mubr.bf16.gmra.mrb[0].mxu0 %v2354
        %v2463 = vpop.f32.mrb[0].mxu0
        %v2464 = vadd.f32 %v2379, %v2463
        %v2465 = vpop.f32.mrb[0].mxu0
        %v2466 = vpop.f32.mrb[0].mxu0
        %v2467 = vadd.f32 %v2379, %v2466
        %v2468 = vpop.f32.mrb[0].mxu0
        %2469 = vmatprep.mubr.bf16.mxu0 0
        %2470 = vmatmul.mubr.bf16.gmra.mrb[0].mxu0 %v2355
        %v2471 = vpop.f32.mrb[0].mxu0
        %v2472 = vadd.f32 %v2379, %v2471
        %v2473 = vpop.f32.mrb[0].mxu0
        %v2474 = vpop.f32.mrb[0].mxu0
        %v2475 = vadd.f32 %v2379, %v2474
        %v2476 = vpop.f32.mrb[0].mxu0
        %2477 = vmatprep.mubr.bf16.mxu0 0
        %2478 = vmatmul.mubr.bf16.gmra.mrb[0].mxu0 %v2356
        %v2479 = vpop.f32.mrb[0].mxu0
        %v2480 = vadd.f32 %v2379, %v2479
        %v2481 = vpop.f32.mrb[0].mxu0
        %v2482 = vpop.f32.mrb[0].mxu0
        %v2483 = vadd.f32 %v2379, %v2482
        %v2484 = vpop.f32.mrb[0].mxu0
        %2485 = vmatprep.mubr.bf16.mxu0 0
        %2486 = vmatmul.mubr.bf16.gmra.mrb[0].mxu0 %v2357
        %v2487 = vpop.f32.mrb[0].mxu0
        %v2488 = vadd.f32 %v2379, %v2487
        %v2489 = vpop.f32.mrb[0].mxu0
        %v2490 = vpop.f32.mrb[0].mxu0
        %v2491 = vadd.f32 %v2379, %v2490
        %v2492 = vpop.f32.mrb[0].mxu0
        %2493 = vdwg.mxu0
        %vm2494 = vcmp.gt.f32.partialorder %v2464, 0.0
        %vm2495 = vcmp.gt.f32.partialorder %v2467, 0.0
        %vm2496 = vcmp.gt.f32.partialorder %v2472, 0.0
        %vm2497 = vcmp.gt.f32.partialorder %v2475, 0.0
        %vm2498 = vcmp.gt.f32.partialorder %v2480, 0.0
        %vm2499 = vcmp.gt.f32.partialorder %v2483, 0.0
        %vm2500 = vcmp.gt.f32.partialorder %v2488, 0.0
        %vm2501 = vcmp.gt.f32.partialorder %v2491, 0.0
        %v2502 = vmul.f32 %v2464, 0.2
        %v2503 = vmul.f32 %v2467, 0.2
        %v2504 = vmul.f32 %v2472, 0.2
        %v2505 = vmul.f32 %v2475, 0.2
        %v2506 = vmul.f32 %v2480, 0.2
        %v2507 = vmul.f32 %v2483, 0.2
        %v2508 = vmul.f32 %v2488, 0.2
        %v2509 = vmul.f32 %v2491, 0.2
        %v2510 = vsel %vm2494, %v2464, %v2502
        %v2511 = vsel %vm2495, %v2467, %v2503
        %v2512 = vsel %vm2496, %v2472, %v2504
        %v2513 = vsel %vm2497, %v2475, %v2505
        %v2514 = vsel %vm2498, %v2480, %v2506
        %v2515 = vsel %vm2499, %v2483, %v2507
        %v2516 = vsel %vm2500, %v2488, %v2508
        %v2517 = vsel %vm2501, %v2491, %v2509
        %v2518 = vpack.c.bf16 %v2511, %v2510
        %v2519 = vpack.c.bf16 %v2513, %v2512
        %v2520 = vpack.c.bf16 %v2515, %v2514
        %v2521 = vpack.c.bf16 %v2517, %v2516
        %v2522 = vld [vmem:[#allocation14] sm:$0xff]
        %v2523 = vld [vmem:[#allocation14 + $0x8] sm:$0xff]
        %v2524 = vld [vmem:[#allocation14 + $0x10] sm:$0xff]
        %v2525 = vld [vmem:[#allocation14 + $0x18] sm:$0xff]
        %v2526 = vld [vmem:[#allocation14 + $0x20] sm:$0xff]
        %v2527 = vld [vmem:[#allocation14 + $0x28] sm:$0xff]
        %v2528 = vld [vmem:[#allocation14 + $0x30] sm:$0xff]
        %v2529 = vld [vmem:[#allocation14 + $0x38] sm:$0xff]
        %v2530 = vld [vmem:[#allocation14 + $0x40] sm:$0xff]
        %v2531 = vld [vmem:[#allocation14 + $0x48] sm:$0xff]
        %v2532 = vld [vmem:[#allocation14 + $0x50] sm:$0xff]
        %v2533 = vld [vmem:[#allocation14 + $0x58] sm:$0xff]
        %v2534 = vld [vmem:[#allocation14 + $0x60] sm:$0xff]
        %v2535 = vld [vmem:[#allocation14 + $0x68] sm:$0xff]
        %v2536 = vld [vmem:[#allocation14 + $0x70] sm:$0xff]
        %v2537 = vld [vmem:[#allocation14 + $0x78] sm:$0xff]
        %v2538 = vld [vmem:[%s11] sm:$0x3]
        %v2540 = vlaneseq
        %v2541 = vshrl.u32 %v2540, 7
        %v2542 = vsub.s32 0, %v2541
        %v2543 = vrot.slane %v2538, %v2542
        %v2544 = vlaneseq
        %v2545 = vshrl.u32 %v2544, 7
        %v2546 = vsub.s32 1, %v2545
        %v2547 = vrot.slane %v2538, %v2546
        %v2566 = vunpack.c.l.b16 %v2522
        %v2567 = vunpack.c.h.b16 %v2522
        %v2568 = vunpack.c.l.b16 %v2523
        %v2569 = vunpack.c.h.b16 %v2523
        %v2570 = vunpack.c.l.b16 %v2524
        %v2571 = vunpack.c.h.b16 %v2524
        %v2572 = vunpack.c.l.b16 %v2525
        %v2573 = vunpack.c.h.b16 %v2525
        %v2574 = vunpack.c.l.b16 %v2526
        %v2575 = vunpack.c.h.b16 %v2526
        %v2576 = vunpack.c.l.b16 %v2527
        %v2577 = vunpack.c.h.b16 %v2527
        %v2578 = vunpack.c.l.b16 %v2528
        %v2579 = vunpack.c.h.b16 %v2528
        %v2580 = vunpack.c.l.b16 %v2529
        %v2581 = vunpack.c.h.b16 %v2529
        %v2582 = vunpack.c.l.b16 %v2530
        %v2583 = vunpack.c.h.b16 %v2530
        %v2584 = vunpack.c.l.b16 %v2531
        %v2585 = vunpack.c.h.b16 %v2531
        %v2586 = vunpack.c.l.b16 %v2532
        %v2587 = vunpack.c.h.b16 %v2532
        %v2588 = vunpack.c.l.b16 %v2533
        %v2589 = vunpack.c.h.b16 %v2533
        %v2590 = vunpack.c.l.b16 %v2534
        %v2591 = vunpack.c.h.b16 %v2534
        %v2592 = vunpack.c.l.b16 %v2535
        %v2593 = vunpack.c.h.b16 %v2535
        %v2594 = vunpack.c.l.b16 %v2536
        %v2595 = vunpack.c.h.b16 %v2536
        %v2596 = vunpack.c.l.b16 %v2537
        %v2597 = vunpack.c.h.b16 %v2537
        %v2598 = vpack.c.b16 %v2568, %v2566
        %v2599 = vpack.c.b16 %v2569, %v2567
        %v2600 = vpack.c.b16 %v2572, %v2570
        %v2601 = vpack.c.b16 %v2573, %v2571
        %v2602 = vpack.c.b16 %v2576, %v2574
        %v2603 = vpack.c.b16 %v2577, %v2575
        %v2604 = vpack.c.b16 %v2580, %v2578
        %v2605 = vpack.c.b16 %v2581, %v2579
        %v2606 = vpack.c.b16 %v2584, %v2582
        %v2607 = vpack.c.b16 %v2585, %v2583
        %v2608 = vpack.c.b16 %v2588, %v2586
        %v2609 = vpack.c.b16 %v2589, %v2587
        %v2610 = vpack.c.b16 %v2592, %v2590
        %v2611 = vpack.c.b16 %v2593, %v2591
        %v2612 = vpack.c.b16 %v2596, %v2594
        %v2613 = vpack.c.b16 %v2597, %v2595
        %2630 = vmatprep.subr.bf16.mxu0 %v2599
        %2631 = vmatpush1.bf16.msra.mxu0 %v2598
        %2632 = vmatprep.subr.bf16.mxu0 %v2601
        %2633 = vmatpush1.bf16.msra.mxu0 %v2600
        %2634 = vmatprep.subr.bf16.mxu0 %v2603
        %2635 = vmatpush1.bf16.msra.mxu0 %v2602
        %2636 = vmatprep.subr.bf16.mxu0 %v2605
        %2637 = vmatpush1.bf16.msra.mxu0 %v2604
        %2638 = vmatprep.subr.bf16.mxu0 %v2607
        %2639 = vmatpush1.bf16.msra.mxu0 %v2606
        %2640 = vmatprep.subr.bf16.mxu0 %v2609
        %2641 = vmatpush1.bf16.msra.mxu0 %v2608
        %2642 = vmatprep.subr.bf16.mxu0 %v2611
        %2643 = vmatpush1.bf16.msra.mxu0 %v2610
        %2644 = vmatprep.subr.bf16.mxu0 %v2613
        %2645 = vmatpush1.bf16.msra.mxu0 %v2612
        %2646 = vmatprep.subr.bf16.mxu0 0
        %2647 = vmatpush1.bf16.msra.mxu0 0
        %2648 = vmatprep.subr.bf16.mxu0 0
        %2649 = vmatpush1.bf16.msra.mxu0 0
        %2650 = vmatprep.subr.bf16.mxu0 0
        %2651 = vmatpush1.bf16.msra.mxu0 0
        %2652 = vmatprep.subr.bf16.mxu0 0
        %2653 = vmatpush1.bf16.msra.mxu0 0
        %2654 = vmatprep.subr.bf16.mxu0 0
        %2655 = vmatpush1.bf16.msra.mxu0 0
        %2656 = vmatprep.subr.bf16.mxu0 0
        %2657 = vmatpush1.bf16.msra.mxu0 0
        %2658 = vmatprep.subr.bf16.mxu0 0
        %2659 = vmatpush1.bf16.msra.mxu0 0
        %2660 = vmatprep.subr.bf16.mxu0 0
        %2661 = vmatpush1.bf16.msra.mxu0 0
        %2662 = vmatprep.mubr.bf16.mxu0 0
        %2663 = vmatmul.mubr.bf16.gmra.mrb[0].mxu0 %v2518
        %v2664 = vpop.f32.mrb[0].mxu0
        %v2665 = vadd.f32 %v2543, %v2664
        %v2666 = vpop.f32.mrb[0].mxu0
        %v2667 = vadd.f32 %v2547, %v2666
        %v2668 = vpop.f32.mrb[0].mxu0
        %v2669 = vadd.f32 %v2543, %v2668
        %v2670 = vpop.f32.mrb[0].mxu0
        %v2671 = vadd.f32 %v2547, %v2670
        %2672 = vmatprep.mubr.bf16.mxu0 0
        %2673 = vmatmul.mubr.bf16.gmra.mrb[0].mxu0 %v2519
        %v2674 = vpop.f32.mrb[0].mxu0
        %v2675 = vadd.f32 %v2543, %v2674
        %v2676 = vpop.f32.mrb[0].mxu0
        %v2677 = vadd.f32 %v2547, %v2676
        %v2678 = vpop.f32.mrb[0].mxu0
        %v2679 = vadd.f32 %v2543, %v2678
        %v2680 = vpop.f32.mrb[0].mxu0
        %v2681 = vadd.f32 %v2547, %v2680
        %2682 = vmatprep.mubr.bf16.mxu0 0
        %2683 = vmatmul.mubr.bf16.gmra.mrb[0].mxu0 %v2520
        %v2684 = vpop.f32.mrb[0].mxu0
        %v2685 = vadd.f32 %v2543, %v2684
        %v2686 = vpop.f32.mrb[0].mxu0
        %v2687 = vadd.f32 %v2547, %v2686
        %v2688 = vpop.f32.mrb[0].mxu0
        %v2689 = vadd.f32 %v2543, %v2688
        %v2690 = vpop.f32.mrb[0].mxu0
        %v2691 = vadd.f32 %v2547, %v2690
        %2692 = vmatprep.mubr.bf16.mxu0 0
        %2693 = vmatmul.mubr.bf16.gmra.mrb[0].mxu0 %v2521
        %v2694 = vpop.f32.mrb[0].mxu0
        %v2695 = vadd.f32 %v2543, %v2694
        %v2696 = vpop.f32.mrb[0].mxu0
        %v2697 = vadd.f32 %v2547, %v2696
        %v2698 = vpop.f32.mrb[0].mxu0
        %v2699 = vadd.f32 %v2543, %v2698
        %v2700 = vpop.f32.mrb[0].mxu0
        %v2701 = vadd.f32 %v2547, %v2700
        %2702 = vdwg.mxu0
        %vm2703 = vcmp.gt.f32.partialorder %v2665, 0.0
        %vm2704 = vcmp.gt.f32.partialorder %v2667, 0.0
        %vm2705 = vcmp.gt.f32.partialorder %v2669, 0.0
        %vm2706 = vcmp.gt.f32.partialorder %v2671, 0.0
        %vm2707 = vcmp.gt.f32.partialorder %v2675, 0.0
        %vm2708 = vcmp.gt.f32.partialorder %v2677, 0.0
        %vm2709 = vcmp.gt.f32.partialorder %v2679, 0.0
        %vm2710 = vcmp.gt.f32.partialorder %v2681, 0.0
        %vm2711 = vcmp.gt.f32.partialorder %v2685, 0.0
        %vm2712 = vcmp.gt.f32.partialorder %v2687, 0.0
        %vm2713 = vcmp.gt.f32.partialorder %v2689, 0.0
        %vm2714 = vcmp.gt.f32.partialorder %v2691, 0.0
        %vm2715 = vcmp.gt.f32.partialorder %v2695, 0.0
        %vm2716 = vcmp.gt.f32.partialorder %v2697, 0.0
        %vm2717 = vcmp.gt.f32.partialorder %v2699, 0.0
        %vm2718 = vcmp.gt.f32.partialorder %v2701, 0.0
        %v2719 = vmul.f32 %v2665, 0.2
        %v2720 = vmul.f32 %v2667, 0.2
        %v2721 = vmul.f32 %v2669, 0.2
        %v2722 = vmul.f32 %v2671, 0.2
        %v2723 = vmul.f32 %v2675, 0.2
        %v2724 = vmul.f32 %v2677, 0.2
        %v2725 = vmul.f32 %v2679, 0.2
        %v2726 = vmul.f32 %v2681, 0.2
        %v2727 = vmul.f32 %v2685, 0.2
        %v2728 = vmul.f32 %v2687, 0.2
        %v2729 = vmul.f32 %v2689, 0.2
        %v2730 = vmul.f32 %v2691, 0.2
        %v2731 = vmul.f32 %v2695, 0.2
        %v2732 = vmul.f32 %v2697, 0.2
        %v2733 = vmul.f32 %v2699, 0.2
        %v2734 = vmul.f32 %v2701, 0.2
        %v2735 = vsel %vm2703, %v2665, %v2719
        %v2736 = vsel %vm2704, %v2667, %v2720
        %v2737 = vsel %vm2705, %v2669, %v2721
        %v2738 = vsel %vm2706, %v2671, %v2722
        %v2739 = vsel %vm2707, %v2675, %v2723
        %v2740 = vsel %vm2708, %v2677, %v2724
        %v2741 = vsel %vm2709, %v2679, %v2725
        %v2742 = vsel %vm2710, %v2681, %v2726
        %v2743 = vsel %vm2711, %v2685, %v2727
        %v2744 = vsel %vm2712, %v2687, %v2728
        %v2745 = vsel %vm2713, %v2689, %v2729
        %v2746 = vsel %vm2714, %v2691, %v2730
        %v2747 = vsel %vm2715, %v2695, %v2731
        %v2748 = vsel %vm2716, %v2697, %v2732
        %v2749 = vsel %vm2717, %v2699, %v2733
        %v2750 = vsel %vm2718, %v2701, %v2734
        %v2751 = vpack.c.bf16 %v2737, %v2735
        %v2752 = vpack.c.bf16 %v2738, %v2736
        %v2753 = vpack.c.bf16 %v2741, %v2739
        %v2754 = vpack.c.bf16 %v2742, %v2740
        %v2755 = vpack.c.bf16 %v2745, %v2743
        %v2756 = vpack.c.bf16 %v2746, %v2744
        %v2757 = vpack.c.bf16 %v2749, %v2747
        %v2758 = vpack.c.bf16 %v2750, %v2748
        %v2759 = vld [vmem:[#allocation16] sm:$0xff]
        %v2760 = vld [vmem:[#allocation16 + $0x20] sm:$0xff]
        %v2761 = vld [vmem:[#allocation16 + $0x40] sm:$0xff]
        %v2762 = vld [vmem:[#allocation16 + $0x60] sm:$0xff]
        %v2763 = vld [vmem:[#allocation16 + $0x80] sm:$0xff]
        %v2764 = vld [vmem:[#allocation16 + $0xa0] sm:$0xff]
        %v2765 = vld [vmem:[#allocation16 + $0xc0] sm:$0xff]
        %v2766 = vld [vmem:[#allocation16 + $0xe0] sm:$0xff]
        %v2767 = vld [vmem:[#allocation16 + $0x100] sm:$0xff]
        %v2768 = vld [vmem:[#allocation16 + $0x120] sm:$0xff]
        %v2769 = vld [vmem:[#allocation16 + $0x140] sm:$0xff]
        %v2770 = vld [vmem:[#allocation16 + $0x160] sm:$0xff]
        %v2771 = vld [vmem:[#allocation16 + $0x180] sm:$0xff]
        %v2772 = vld [vmem:[#allocation16 + $0x1a0] sm:$0xff]
        %v2773 = vld [vmem:[#allocation16 + $0x1c0] sm:$0xff]
        %v2774 = vld [vmem:[#allocation16 + $0x1e0] sm:$0xff]
        %v2775 = vld [vmem:[#allocation16 + $0x200] sm:$0xff]
        %v2776 = vld [vmem:[#allocation16 + $0x220] sm:$0xff]
        %v2777 = vld [vmem:[#allocation16 + $0x240] sm:$0xff]
        %v2778 = vld [vmem:[#allocation16 + $0x260] sm:$0xff]
        %v2779 = vld [vmem:[#allocation16 + $0x280] sm:$0xff]
        %v2780 = vld [vmem:[#allocation16 + $0x2a0] sm:$0xff]
        %v2781 = vld [vmem:[#allocation16 + $0x2c0] sm:$0xff]
        %v2782 = vld [vmem:[#allocation16 + $0x2e0] sm:$0xff]
        %v2783 = vld [vmem:[#allocation16 + $0x300] sm:$0xff]
        %v2784 = vld [vmem:[#allocation16 + $0x320] sm:$0xff]
        %v2785 = vld [vmem:[#allocation16 + $0x340] sm:$0xff]
        %v2786 = vld [vmem:[#allocation16 + $0x360] sm:$0xff]
        %v2787 = vld [vmem:[#allocation16 + $0x380] sm:$0xff]
        %v2788 = vld [vmem:[#allocation16 + $0x3a0] sm:$0xff]
        %v2789 = vld [vmem:[#allocation16 + $0x3c0] sm:$0xff]
        %v2790 = vld [vmem:[#allocation16 + $0x3e0] sm:$0xff]
        %v2791 = vld [vmem:[%s13] sm:$0x3]
        %v2793 = vlaneseq
        %v2794 = vshrl.u32 %v2793, 7
        %v2795 = vsub.s32 0, %v2794
        %v2796 = vrot.slane %v2791, %v2795
        %v2797 = vlaneseq
        %v2798 = vshrl.u32 %v2797, 7
        %v2799 = vsub.s32 1, %v2798
        %v2800 = vrot.slane %v2791, %v2799
        %v2835 = vunpack.c.l.b16 %v2759
        %v2836 = vunpack.c.h.b16 %v2759
        %v2837 = vunpack.c.l.b16 %v2760
        %v2838 = vunpack.c.h.b16 %v2760
        %v2839 = vunpack.c.l.b16 %v2761
        %v2840 = vunpack.c.h.b16 %v2761
        %v2841 = vunpack.c.l.b16 %v2762
        %v2842 = vunpack.c.h.b16 %v2762
        %v2843 = vunpack.c.l.b16 %v2763
        %v2844 = vunpack.c.h.b16 %v2763
        %v2845 = vunpack.c.l.b16 %v2764
        %v2846 = vunpack.c.h.b16 %v2764
        %v2847 = vunpack.c.l.b16 %v2765
        %v2848 = vunpack.c.h.b16 %v2765
        %v2849 = vunpack.c.l.b16 %v2766
        %v2850 = vunpack.c.h.b16 %v2766
        %v2851 = vunpack.c.l.b16 %v2767
        %v2852 = vunpack.c.h.b16 %v2767
        %v2853 = vunpack.c.l.b16 %v2768
        %v2854 = vunpack.c.h.b16 %v2768
        %v2855 = vunpack.c.l.b16 %v2769
        %v2856 = vunpack.c.h.b16 %v2769
        %v2857 = vunpack.c.l.b16 %v2770
        %v2858 = vunpack.c.h.b16 %v2770
        %v2859 = vunpack.c.l.b16 %v2771
        %v2860 = vunpack.c.h.b16 %v2771
        %v2861 = vunpack.c.l.b16 %v2772
        %v2862 = vunpack.c.h.b16 %v2772
        %v2863 = vunpack.c.l.b16 %v2773
        %v2864 = vunpack.c.h.b16 %v2773
        %v2865 = vunpack.c.l.b16 %v2774
        %v2866 = vunpack.c.h.b16 %v2774
        %v2867 = vunpack.c.l.b16 %v2775
        %v2868 = vunpack.c.h.b16 %v2775
        %v2869 = vunpack.c.l.b16 %v2776
        %v2870 = vunpack.c.h.b16 %v2776
        %v2871 = vunpack.c.l.b16 %v2777
        %v2872 = vunpack.c.h.b16 %v2777
        %v2873 = vunpack.c.l.b16 %v2778
        %v2874 = vunpack.c.h.b16 %v2778
        %v2875 = vunpack.c.l.b16 %v2779
        %v2876 = vunpack.c.h.b16 %v2779
        %v2877 = vunpack.c.l.b16 %v2780
        %v2878 = vunpack.c.h.b16 %v2780
        %v2879 = vunpack.c.l.b16 %v2781
        %v2880 = vunpack.c.h.b16 %v2781
        %v2881 = vunpack.c.l.b16 %v2782
        %v2882 = vunpack.c.h.b16 %v2782
        %v2883 = vunpack.c.l.b16 %v2783
        %v2884 = vunpack.c.h.b16 %v2783
        %v2885 = vunpack.c.l.b16 %v2784
        %v2886 = vunpack.c.h.b16 %v2784
        %v2887 = vunpack.c.l.b16 %v2785
        %v2888 = vunpack.c.h.b16 %v2785
        %v2889 = vunpack.c.l.b16 %v2786
        %v2890 = vunpack.c.h.b16 %v2786
        %v2891 = vunpack.c.l.b16 %v2787
        %v2892 = vunpack.c.h.b16 %v2787
        %v2893 = vunpack.c.l.b16 %v2788
        %v2894 = vunpack.c.h.b16 %v2788
        %v2895 = vunpack.c.l.b16 %v2789
        %v2896 = vunpack.c.h.b16 %v2789
        %v2897 = vunpack.c.l.b16 %v2790
        %v2898 = vunpack.c.h.b16 %v2790
        %v2899 = vpack.c.b16 %v2837, %v2835
        %v2900 = vpack.c.b16 %v2838, %v2836
        %v2901 = vpack.c.b16 %v2841, %v2839
        %v2902 = vpack.c.b16 %v2842, %v2840
        %v2903 = vpack.c.b16 %v2845, %v2843
        %v2904 = vpack.c.b16 %v2846, %v2844
        %v2905 = vpack.c.b16 %v2849, %v2847
        %v2906 = vpack.c.b16 %v2850, %v2848
        %v2907 = vpack.c.b16 %v2853, %v2851
        %v2908 = vpack.c.b16 %v2854, %v2852
        %v2909 = vpack.c.b16 %v2857, %v2855
        %v2910 = vpack.c.b16 %v2858, %v2856
        %v2911 = vpack.c.b16 %v2861, %v2859
        %v2912 = vpack.c.b16 %v2862, %v2860
        %v2913 = vpack.c.b16 %v2865, %v2863
        %v2914 = vpack.c.b16 %v2866, %v2864
        %v2915 = vpack.c.b16 %v2869, %v2867
        %v2916 = vpack.c.b16 %v2870, %v2868
        %v2917 = vpack.c.b16 %v2873, %v2871
        %v2918 = vpack.c.b16 %v2874, %v2872
        %v2919 = vpack.c.b16 %v2877, %v2875
        %v2920 = vpack.c.b16 %v2878, %v2876
        %v2921 = vpack.c.b16 %v2881, %v2879
        %v2922 = vpack.c.b16 %v2882, %v2880
        %v2923 = vpack.c.b16 %v2885, %v2883
        %v2924 = vpack.c.b16 %v2886, %v2884
        %v2925 = vpack.c.b16 %v2889, %v2887
        %v2926 = vpack.c.b16 %v2890, %v2888
        %v2927 = vpack.c.b16 %v2893, %v2891
        %v2928 = vpack.c.b16 %v2894, %v2892
        %v2929 = vpack.c.b16 %v2897, %v2895
        %v2930 = vpack.c.b16 %v2898, %v2896
        %2963 = vmatprep.subr.bf16.mxu0 %v2900
        %2964 = vmatpush1.bf16.msra.mxu0 %v2899
        %2965 = vmatprep.subr.bf16.mxu0 %v2902
        %2966 = vmatpush1.bf16.msra.mxu0 %v2901
        %2967 = vmatprep.subr.bf16.mxu0 %v2904
        %2968 = vmatpush1.bf16.msra.mxu0 %v2903
        %2969 = vmatprep.subr.bf16.mxu0 %v2906
        %2970 = vmatpush1.bf16.msra.mxu0 %v2905
        %2971 = vmatprep.subr.bf16.mxu0 %v2908
        %2972 = vmatpush1.bf16.msra.mxu0 %v2907
        %2973 = vmatprep.subr.bf16.mxu0 %v2910
        %2974 = vmatpush1.bf16.msra.mxu0 %v2909
        %2975 = vmatprep.subr.bf16.mxu0 %v2912
        %2976 = vmatpush1.bf16.msra.mxu0 %v2911
        %2977 = vmatprep.subr.bf16.mxu0 %v2914
        %2978 = vmatpush1.bf16.msra.mxu0 %v2913
        %2979 = vmatprep.subr.bf16.mxu0 %v2916
        %2980 = vmatpush1.bf16.msra.mxu0 %v2915
        %2981 = vmatprep.subr.bf16.mxu0 %v2918
        %2982 = vmatpush1.bf16.msra.mxu0 %v2917
        %2983 = vmatprep.subr.bf16.mxu0 %v2920
        %2984 = vmatpush1.bf16.msra.mxu0 %v2919
        %2985 = vmatprep.subr.bf16.mxu0 %v2922
        %2986 = vmatpush1.bf16.msra.mxu0 %v2921
        %2987 = vmatprep.subr.bf16.mxu0 %v2924
        %2988 = vmatpush1.bf16.msra.mxu0 %v2923
        %2989 = vmatprep.subr.bf16.mxu0 %v2926
        %2990 = vmatpush1.bf16.msra.mxu0 %v2925
        %2991 = vmatprep.subr.bf16.mxu0 %v2928
        %2992 = vmatpush1.bf16.msra.mxu0 %v2927
        %2993 = vmatprep.subr.bf16.mxu0 %v2930
        %2994 = vmatpush1.bf16.msra.mxu0 %v2929
        %2995 = vmatprep.mubr.bf16.mxu0 %v2752
        %2996 = vmatmul.mubr.bf16.gmra.mrb[0].mxu0 %v2751
        %v2997 = vpop.f32.mrb[0].mxu0
        %v2998 = vadd.f32 %v2796, %v2997
        %v2999 = vpop.f32.mrb[0].mxu0
        %v3000 = vadd.f32 %v2800, %v2999
        %v3001 = vpop.f32.mrb[0].mxu0
        %v3002 = vadd.f32 %v2796, %v3001
        %v3003 = vpop.f32.mrb[0].mxu0
        %v3004 = vadd.f32 %v2800, %v3003
        %3005 = vmatprep.mubr.bf16.mxu0 %v2754
        %3006 = vmatmul.mubr.bf16.gmra.mrb[0].mxu0 %v2753
        %v3007 = vpop.f32.mrb[0].mxu0
        %v3008 = vadd.f32 %v2796, %v3007
        %v3009 = vpop.f32.mrb[0].mxu0
        %v3010 = vadd.f32 %v2800, %v3009
        %v3011 = vpop.f32.mrb[0].mxu0
        %v3012 = vadd.f32 %v2796, %v3011
        %v3013 = vpop.f32.mrb[0].mxu0
        %v3014 = vadd.f32 %v2800, %v3013
        %3015 = vmatprep.mubr.bf16.mxu0 %v2756
        %3016 = vmatmul.mubr.bf16.gmra.mrb[0].mxu0 %v2755
        %v3017 = vpop.f32.mrb[0].mxu0
        %v3018 = vadd.f32 %v2796, %v3017
        %v3019 = vpop.f32.mrb[0].mxu0
        %v3020 = vadd.f32 %v2800, %v3019
        %v3021 = vpop.f32.mrb[0].mxu0
        %v3022 = vadd.f32 %v2796, %v3021
        %v3023 = vpop.f32.mrb[0].mxu0
        %v3024 = vadd.f32 %v2800, %v3023
        %3025 = vmatprep.mubr.bf16.mxu0 %v2758
        %3026 = vmatmul.mubr.bf16.gmra.mrb[0].mxu0 %v2757
        %v3027 = vpop.f32.mrb[0].mxu0
        %v3028 = vadd.f32 %v2796, %v3027
        %v3029 = vpop.f32.mrb[0].mxu0
        %v3030 = vadd.f32 %v2800, %v3029
        %v3031 = vpop.f32.mrb[0].mxu0
        %v3032 = vadd.f32 %v2796, %v3031
        %v3033 = vpop.f32.mrb[0].mxu0
        %v3034 = vadd.f32 %v2800, %v3033
        %3035 = vdwg.mxu0
        %v3036 = vxor.u32 %v2998, 2147483648
        %v3037 = vxor.u32 %v3000, 2147483648
        %v3038 = vxor.u32 %v3002, 2147483648
        %v3039 = vxor.u32 %v3004, 2147483648
        %v3040 = vxor.u32 %v3008, 2147483648
        %v3041 = vxor.u32 %v3010, 2147483648
        %v3042 = vxor.u32 %v3012, 2147483648
        %v3043 = vxor.u32 %v3014, 2147483648
        %v3044 = vxor.u32 %v3018, 2147483648
        %v3045 = vxor.u32 %v3020, 2147483648
        %v3046 = vxor.u32 %v3022, 2147483648
        %v3047 = vxor.u32 %v3024, 2147483648
        %v3048 = vxor.u32 %v3028, 2147483648
        %v3049 = vxor.u32 %v3030, 2147483648
        %v3050 = vxor.u32 %v3032, 2147483648
        %v3051 = vxor.u32 %v3034, 2147483648
        %v3052 = vmul.f32 %v3036, 1.442695
        %v3053 = vpow.pop %v3052
        %v3054 = vmul.f32 %v3037, 1.442695
        %v3055 = vpow.pop %v3054
        %v3056 = vmul.f32 %v3038, 1.442695
        %v3057 = vpow.pop %v3056
        %v3058 = vmul.f32 %v3039, 1.442695
        %v3059 = vpow.pop %v3058
        %v3060 = vmul.f32 %v3040, 1.442695
        %v3061 = vpow.pop %v3060
        %v3062 = vmul.f32 %v3041, 1.442695
        %v3063 = vpow.pop %v3062
        %v3064 = vmul.f32 %v3042, 1.442695
        %v3065 = vpow.pop %v3064
        %v3066 = vmul.f32 %v3043, 1.442695
        %v3067 = vpow.pop %v3066
        %v3068 = vmul.f32 %v3044, 1.442695
        %v3069 = vpow.pop %v3068
        %v3070 = vmul.f32 %v3045, 1.442695
        %v3071 = vpow.pop %v3070
        %v3072 = vmul.f32 %v3046, 1.442695
        %v3073 = vpow.pop %v3072
        %v3074 = vmul.f32 %v3047, 1.442695
        %v3075 = vpow.pop %v3074
        %v3076 = vmul.f32 %v3048, 1.442695
        %v3077 = vpow.pop %v3076
        %v3078 = vmul.f32 %v3049, 1.442695
        %v3079 = vpow.pop %v3078
        %v3080 = vmul.f32 %v3050, 1.442695
        %v3081 = vpow.pop %v3080
        %v3082 = vmul.f32 %v3051, 1.442695
        %v3083 = vpow.pop %v3082
        %v3084 = vadd.f32 %v3053, 1.0
        %v3085 = vadd.f32 %v3055, 1.0
        %v3086 = vadd.f32 %v3057, 1.0
        %v3087 = vadd.f32 %v3059, 1.0
        %v3088 = vadd.f32 %v3061, 1.0
        %v3089 = vadd.f32 %v3063, 1.0
        %v3090 = vadd.f32 %v3065, 1.0
        %v3091 = vadd.f32 %v3067, 1.0
        %v3092 = vadd.f32 %v3069, 1.0
        %v3093 = vadd.f32 %v3071, 1.0
        %v3094 = vadd.f32 %v3073, 1.0
        %v3095 = vadd.f32 %v3075, 1.0
        %v3096 = vadd.f32 %v3077, 1.0
        %v3097 = vadd.f32 %v3079, 1.0
        %v3098 = vadd.f32 %v3081, 1.0
        %v3099 = vadd.f32 %v3083, 1.0
        %v3100 = vrcp.pop %v3084
        %v3101 = vmul.f32 1.0, %v3100
        %v3102 = vrcp.pop %v3085
        %v3103 = vmul.f32 1.0, %v3102
        %v3104 = vrcp.pop %v3086
        %v3105 = vmul.f32 1.0, %v3104
        %v3106 = vrcp.pop %v3087
        %v3107 = vmul.f32 1.0, %v3106
        %v3108 = vrcp.pop %v3088
        %v3109 = vmul.f32 1.0, %v3108
        %v3110 = vrcp.pop %v3089
        %v3111 = vmul.f32 1.0, %v3110
        %v3112 = vrcp.pop %v3090
        %v3113 = vmul.f32 1.0, %v3112
        %v3114 = vrcp.pop %v3091
        %v3115 = vmul.f32 1.0, %v3114
        %v3116 = vrcp.pop %v3092
        %v3117 = vmul.f32 1.0, %v3116
        %v3118 = vrcp.pop %v3093
        %v3119 = vmul.f32 1.0, %v3118
        %v3120 = vrcp.pop %v3094
        %v3121 = vmul.f32 1.0, %v3120
        %v3122 = vrcp.pop %v3095
        %v3123 = vmul.f32 1.0, %v3122
        %v3124 = vrcp.pop %v3096
        %v3125 = vmul.f32 1.0, %v3124
        %v3126 = vrcp.pop %v3097
        %v3127 = vmul.f32 1.0, %v3126
        %v3128 = vrcp.pop %v3098
        %v3129 = vmul.f32 1.0, %v3128
        %v3130 = vrcp.pop %v3099
        %v3131 = vmul.f32 1.0, %v3130
        %3132 = vst [vmem:[%s653] sm:$0xff] %v3101
        %3133 = vst [vmem:[%s653 + $0x8] sm:$0xff] %v3103
        %3134 = vst [vmem:[%s653 + $0x40] sm:$0xff] %v3105
        %3135 = vst [vmem:[%s653 + $0x48] sm:$0xff] %v3107
        %3136 = vst [vmem:[%s653 + $0x80] sm:$0xff] %v3109
        %3137 = vst [vmem:[%s653 + $0x88] sm:$0xff] %v3111
        %3138 = vst [vmem:[%s653 + $0xc0] sm:$0xff] %v3113
        %3139 = vst [vmem:[%s653 + $0xc8] sm:$0xff] %v3115
        %3140 = vst [vmem:[%s653 + $0x100] sm:$0xff] %v3117
        %3141 = vst [vmem:[%s653 + $0x108] sm:$0xff] %v3119
        %3142 = vst [vmem:[%s653 + $0x140] sm:$0xff] %v3121
        %3143 = vst [vmem:[%s653 + $0x148] sm:$0xff] %v3123
        %3144 = vst [vmem:[%s653 + $0x180] sm:$0xff] %v3125
        %3145 = vst [vmem:[%s653 + $0x188] sm:$0xff] %v3127
        %3146 = vst [vmem:[%s653 + $0x1c0] sm:$0xff] %v3129
        %3147 = vst [vmem:[%s653 + $0x1c8] sm:$0xff] %v3131
        %v3148 = vld [vmem:[#allocation16 + $0x8] sm:$0xff]
        %v3149 = vld [vmem:[#allocation16 + $0x28] sm:$0xff]
        %v3150 = vld [vmem:[#allocation16 + $0x48] sm:$0xff]
        %v3151 = vld [vmem:[#allocation16 + $0x68] sm:$0xff]
        %v3152 = vld [vmem:[#allocation16 + $0x88] sm:$0xff]
        %v3153 = vld [vmem:[#allocation16 + $0xa8] sm:$0xff]
        %v3154 = vld [vmem:[#allocation16 + $0xc8] sm:$0xff]
        %v3155 = vld [vmem:[#allocation16 + $0xe8] sm:$0xff]
        %v3156 = vld [vmem:[#allocation16 + $0x108] sm:$0xff]
        %v3157 = vld [vmem:[#allocation16 + $0x128] sm:$0xff]
        %v3158 = vld [vmem:[#allocation16 + $0x148] sm:$0xff]
        %v3159 = vld [vmem:[#allocation16 + $0x168] sm:$0xff]
        %v3160 = vld [vmem:[#allocation16 + $0x188] sm:$0xff]
        %v3161 = vld [vmem:[#allocation16 + $0x1a8] sm:$0xff]
        %v3162 = vld [vmem:[#allocation16 + $0x1c8] sm:$0xff]
        %v3163 = vld [vmem:[#allocation16 + $0x1e8] sm:$0xff]
        %v3164 = vld [vmem:[#allocation16 + $0x208] sm:$0xff]
        %v3165 = vld [vmem:[#allocation16 + $0x228] sm:$0xff]
        %v3166 = vld [vmem:[#allocation16 + $0x248] sm:$0xff]
        %v3167 = vld [vmem:[#allocation16 + $0x268] sm:$0xff]
        %v3168 = vld [vmem:[#allocation16 + $0x288] sm:$0xff]
        %v3169 = vld [vmem:[#allocation16 + $0x2a8] sm:$0xff]
        %v3170 = vld [vmem:[#allocation16 + $0x2c8] sm:$0xff]
        %v3171 = vld [vmem:[#allocation16 + $0x2e8] sm:$0xff]
        %v3172 = vld [vmem:[#allocation16 + $0x308] sm:$0xff]
        %v3173 = vld [vmem:[#allocation16 + $0x328] sm:$0xff]
        %v3174 = vld [vmem:[#allocation16 + $0x348] sm:$0xff]
        %v3175 = vld [vmem:[#allocation16 + $0x368] sm:$0xff]
        %v3176 = vld [vmem:[#allocation16 + $0x388] sm:$0xff]
        %v3177 = vld [vmem:[#allocation16 + $0x3a8] sm:$0xff]
        %v3178 = vld [vmem:[#allocation16 + $0x3c8] sm:$0xff]
        %v3179 = vld [vmem:[#allocation16 + $0x3e8] sm:$0xff]
        %v3180 = vld [vmem:[%s13 + $0x2] sm:$0x3]
        %v3182 = vlaneseq
        %v3183 = vshrl.u32 %v3182, 7
        %v3184 = vsub.s32 0, %v3183
        %v3185 = vrot.slane %v3180, %v3184
        %v3186 = vlaneseq
        %v3187 = vshrl.u32 %v3186, 7
        %v3188 = vsub.s32 1, %v3187
        %v3189 = vrot.slane %v3180, %v3188
        %v3224 = vunpack.c.l.b16 %v3148
        %v3225 = vunpack.c.h.b16 %v3148
        %v3226 = vunpack.c.l.b16 %v3149
        %v3227 = vunpack.c.h.b16 %v3149
        %v3228 = vunpack.c.l.b16 %v3150
        %v3229 = vunpack.c.h.b16 %v3150
        %v3230 = vunpack.c.l.b16 %v3151
        %v3231 = vunpack.c.h.b16 %v3151
        %v3232 = vunpack.c.l.b16 %v3152
        %v3233 = vunpack.c.h.b16 %v3152
        %v3234 = vunpack.c.l.b16 %v3153
        %v3235 = vunpack.c.h.b16 %v3153
        %v3236 = vunpack.c.l.b16 %v3154
        %v3237 = vunpack.c.h.b16 %v3154
        %v3238 = vunpack.c.l.b16 %v3155
        %v3239 = vunpack.c.h.b16 %v3155
        %v3240 = vunpack.c.l.b16 %v3156
        %v3241 = vunpack.c.h.b16 %v3156
        %v3242 = vunpack.c.l.b16 %v3157
        %v3243 = vunpack.c.h.b16 %v3157
        %v3244 = vunpack.c.l.b16 %v3158
        %v3245 = vunpack.c.h.b16 %v3158
        %v3246 = vunpack.c.l.b16 %v3159
        %v3247 = vunpack.c.h.b16 %v3159
        %v3248 = vunpack.c.l.b16 %v3160
        %v3249 = vunpack.c.h.b16 %v3160
        %v3250 = vunpack.c.l.b16 %v3161
        %v3251 = vunpack.c.h.b16 %v3161
        %v3252 = vunpack.c.l.b16 %v3162
        %v3253 = vunpack.c.h.b16 %v3162
        %v3254 = vunpack.c.l.b16 %v3163
        %v3255 = vunpack.c.h.b16 %v3163
        %v3256 = vunpack.c.l.b16 %v3164
        %v3257 = vunpack.c.h.b16 %v3164
        %v3258 = vunpack.c.l.b16 %v3165
        %v3259 = vunpack.c.h.b16 %v3165
        %v3260 = vunpack.c.l.b16 %v3166
        %v3261 = vunpack.c.h.b16 %v3166
        %v3262 = vunpack.c.l.b16 %v3167
        %v3263 = vunpack.c.h.b16 %v3167
        %v3264 = vunpack.c.l.b16 %v3168
        %v3265 = vunpack.c.h.b16 %v3168
        %v3266 = vunpack.c.l.b16 %v3169
        %v3267 = vunpack.c.h.b16 %v3169
        %v3268 = vunpack.c.l.b16 %v3170
        %v3269 = vunpack.c.h.b16 %v3170
        %v3270 = vunpack.c.l.b16 %v3171
        %v3271 = vunpack.c.h.b16 %v3171
        %v3272 = vunpack.c.l.b16 %v3172
        %v3273 = vunpack.c.h.b16 %v3172
        %v3274 = vunpack.c.l.b16 %v3173
        %v3275 = vunpack.c.h.b16 %v3173
        %v3276 = vunpack.c.l.b16 %v3174
        %v3277 = vunpack.c.h.b16 %v3174
        %v3278 = vunpack.c.l.b16 %v3175
        %v3279 = vunpack.c.h.b16 %v3175
        %v3280 = vunpack.c.l.b16 %v3176
        %v3281 = vunpack.c.h.b16 %v3176
        %v3282 = vunpack.c.l.b16 %v3177
        %v3283 = vunpack.c.h.b16 %v3177
        %v3284 = vunpack.c.l.b16 %v3178
        %v3285 = vunpack.c.h.b16 %v3178
        %v3286 = vunpack.c.l.b16 %v3179
        %v3287 = vunpack.c.h.b16 %v3179
        %v3288 = vpack.c.b16 %v3226, %v3224
        %v3289 = vpack.c.b16 %v3227, %v3225
        %v3290 = vpack.c.b16 %v3230, %v3228
        %v3291 = vpack.c.b16 %v3231, %v3229
        %v3292 = vpack.c.b16 %v3234, %v3232
        %v3293 = vpack.c.b16 %v3235, %v3233
        %v3294 = vpack.c.b16 %v3238, %v3236
        %v3295 = vpack.c.b16 %v3239, %v3237
        %v3296 = vpack.c.b16 %v3242, %v3240
        %v3297 = vpack.c.b16 %v3243, %v3241
        %v3298 = vpack.c.b16 %v3246, %v3244
        %v3299 = vpack.c.b16 %v3247, %v3245
        %v3300 = vpack.c.b16 %v3250, %v3248
        %v3301 = vpack.c.b16 %v3251, %v3249
        %v3302 = vpack.c.b16 %v3254, %v3252
        %v3303 = vpack.c.b16 %v3255, %v3253
        %v3304 = vpack.c.b16 %v3258, %v3256
        %v3305 = vpack.c.b16 %v3259, %v3257
        %v3306 = vpack.c.b16 %v3262, %v3260
        %v3307 = vpack.c.b16 %v3263, %v3261
        %v3308 = vpack.c.b16 %v3266, %v3264
        %v3309 = vpack.c.b16 %v3267, %v3265
        %v3310 = vpack.c.b16 %v3270, %v3268
        %v3311 = vpack.c.b16 %v3271, %v3269
        %v3312 = vpack.c.b16 %v3274, %v3272
        %v3313 = vpack.c.b16 %v3275, %v3273
        %v3314 = vpack.c.b16 %v3278, %v3276
        %v3315 = vpack.c.b16 %v3279, %v3277
        %v3316 = vpack.c.b16 %v3282, %v3280
        %v3317 = vpack.c.b16 %v3283, %v3281
        %v3318 = vpack.c.b16 %v3286, %v3284
        %v3319 = vpack.c.b16 %v3287, %v3285
        %3352 = vmatprep.subr.bf16.mxu0 %v3289
        %3353 = vmatpush1.bf16.msra.mxu0 %v3288
        %3354 = vmatprep.subr.bf16.mxu0 %v3291
        %3355 = vmatpush1.bf16.msra.mxu0 %v3290
        %3356 = vmatprep.subr.bf16.mxu0 %v3293
        %3357 = vmatpush1.bf16.msra.mxu0 %v3292
        %3358 = vmatprep.subr.bf16.mxu0 %v3295
        %3359 = vmatpush1.bf16.msra.mxu0 %v3294
        %3360 = vmatprep.subr.bf16.mxu0 %v3297
        %3361 = vmatpush1.bf16.msra.mxu0 %v3296
        %3362 = vmatprep.subr.bf16.mxu0 %v3299
        %3363 = vmatpush1.bf16.msra.mxu0 %v3298
        %3364 = vmatprep.subr.bf16.mxu0 %v3301
        %3365 = vmatpush1.bf16.msra.mxu0 %v3300
        %3366 = vmatprep.subr.bf16.mxu0 %v3303
        %3367 = vmatpush1.bf16.msra.mxu0 %v3302
        %3368 = vmatprep.subr.bf16.mxu0 %v3305
        %3369 = vmatpush1.bf16.msra.mxu0 %v3304
        %3370 = vmatprep.subr.bf16.mxu0 %v3307
        %3371 = vmatpush1.bf16.msra.mxu0 %v3306
        %3372 = vmatprep.subr.bf16.mxu0 %v3309
        %3373 = vmatpush1.bf16.msra.mxu0 %v3308
        %3374 = vmatprep.subr.bf16.mxu0 %v3311
        %3375 = vmatpush1.bf16.msra.mxu0 %v3310
        %3376 = vmatprep.subr.bf16.mxu0 %v3313
        %3377 = vmatpush1.bf16.msra.mxu0 %v3312
        %3378 = vmatprep.subr.bf16.mxu0 %v3315
        %3379 = vmatpush1.bf16.msra.mxu0 %v3314
        %3380 = vmatprep.subr.bf16.mxu0 %v3317
        %3381 = vmatpush1.bf16.msra.mxu0 %v3316
        %3382 = vmatprep.subr.bf16.mxu0 %v3319
        %3383 = vmatpush1.bf16.msra.mxu0 %v3318
        %3384 = vmatprep.mubr.bf16.mxu0 %v2752
        %3385 = vmatmul.mubr.bf16.gmra.mrb[0].mxu0 %v2751
        %v3386 = vpop.f32.mrb[0].mxu0
        %v3387 = vadd.f32 %v3185, %v3386
        %v3388 = vpop.f32.mrb[0].mxu0
        %v3389 = vadd.f32 %v3189, %v3388
        %v3390 = vpop.f32.mrb[0].mxu0
        %v3391 = vadd.f32 %v3185, %v3390
        %v3392 = vpop.f32.mrb[0].mxu0
        %v3393 = vadd.f32 %v3189, %v3392
        %3394 = vmatprep.mubr.bf16.mxu0 %v2754
        %3395 = vmatmul.mubr.bf16.gmra.mrb[0].mxu0 %v2753
        %v3396 = vpop.f32.mrb[0].mxu0
        %v3397 = vadd.f32 %v3185, %v3396
        %v3398 = vpop.f32.mrb[0].mxu0
        %v3399 = vadd.f32 %v3189, %v3398
        %v3400 = vpop.f32.mrb[0].mxu0
        %v3401 = vadd.f32 %v3185, %v3400
        %v3402 = vpop.f32.mrb[0].mxu0
        %v3403 = vadd.f32 %v3189, %v3402
        %3404 = vmatprep.mubr.bf16.mxu0 %v2756
        %3405 = vmatmul.mubr.bf16.gmra.mrb[0].mxu0 %v2755
        %v3406 = vpop.f32.mrb[0].mxu0
        %v3407 = vadd.f32 %v3185, %v3406
        %v3408 = vpop.f32.mrb[0].mxu0
        %v3409 = vadd.f32 %v3189, %v3408
        %v3410 = vpop.f32.mrb[0].mxu0
        %v3411 = vadd.f32 %v3185, %v3410
        %v3412 = vpop.f32.mrb[0].mxu0
        %v3413 = vadd.f32 %v3189, %v3412
        %3414 = vmatprep.mubr.bf16.mxu0 %v2758
        %3415 = vmatmul.mubr.bf16.gmra.mrb[0].mxu0 %v2757
        %v3416 = vpop.f32.mrb[0].mxu0
        %v3417 = vadd.f32 %v3185, %v3416
        %v3418 = vpop.f32.mrb[0].mxu0
        %v3419 = vadd.f32 %v3189, %v3418
        %v3420 = vpop.f32.mrb[0].mxu0
        %v3421 = vadd.f32 %v3185, %v3420
        %v3422 = vpop.f32.mrb[0].mxu0
        %v3423 = vadd.f32 %v3189, %v3422
        %3424 = vdwg.mxu0
        %v3425 = vxor.u32 %v3387, 2147483648
        %v3426 = vxor.u32 %v3389, 2147483648
        %v3427 = vxor.u32 %v3391, 2147483648
        %v3428 = vxor.u32 %v3393, 2147483648
        %v3429 = vxor.u32 %v3397, 2147483648
        %v3430 = vxor.u32 %v3399, 2147483648
        %v3431 = vxor.u32 %v3401, 2147483648
        %v3432 = vxor.u32 %v3403, 2147483648
        %v3433 = vxor.u32 %v3407, 2147483648
        %v3434 = vxor.u32 %v3409, 2147483648
        %v3435 = vxor.u32 %v3411, 2147483648
        %v3436 = vxor.u32 %v3413, 2147483648
        %v3437 = vxor.u32 %v3417, 2147483648
        %v3438 = vxor.u32 %v3419, 2147483648
        %v3439 = vxor.u32 %v3421, 2147483648
        %v3440 = vxor.u32 %v3423, 2147483648
        %v3441 = vmul.f32 %v3425, 1.442695
        %v3442 = vpow.pop %v3441
        %v3443 = vmul.f32 %v3426, 1.442695
        %v3444 = vpow.pop %v3443
        %v3445 = vmul.f32 %v3427, 1.442695
        %v3446 = vpow.pop %v3445
        %v3447 = vmul.f32 %v3428, 1.442695
        %v3448 = vpow.pop %v3447
        %v3449 = vmul.f32 %v3429, 1.442695
        %v3450 = vpow.pop %v3449
        %v3451 = vmul.f32 %v3430, 1.442695
        %v3452 = vpow.pop %v3451
        %v3453 = vmul.f32 %v3431, 1.442695
        %v3454 = vpow.pop %v3453
        %v3455 = vmul.f32 %v3432, 1.442695
        %v3456 = vpow.pop %v3455
        %v3457 = vmul.f32 %v3433, 1.442695
        %v3458 = vpow.pop %v3457
        %v3459 = vmul.f32 %v3434, 1.442695
        %v3460 = vpow.pop %v3459
        %v3461 = vmul.f32 %v3435, 1.442695
        %v3462 = vpow.pop %v3461
        %v3463 = vmul.f32 %v3436, 1.442695
        %v3464 = vpow.pop %v3463
        %v3465 = vmul.f32 %v3437, 1.442695
        %v3466 = vpow.pop %v3465
        %v3467 = vmul.f32 %v3438, 1.442695
        %v3468 = vpow.pop %v3467
        %v3469 = vmul.f32 %v3439, 1.442695
        %v3470 = vpow.pop %v3469
        %v3471 = vmul.f32 %v3440, 1.442695
        %v3472 = vpow.pop %v3471
        %v3473 = vadd.f32 %v3442, 1.0
        %v3474 = vadd.f32 %v3444, 1.0
        %v3475 = vadd.f32 %v3446, 1.0
        %v3476 = vadd.f32 %v3448, 1.0
        %v3477 = vadd.f32 %v3450, 1.0
        %v3478 = vadd.f32 %v3452, 1.0
        %v3479 = vadd.f32 %v3454, 1.0
        %v3480 = vadd.f32 %v3456, 1.0
        %v3481 = vadd.f32 %v3458, 1.0
        %v3482 = vadd.f32 %v3460, 1.0
        %v3483 = vadd.f32 %v3462, 1.0
        %v3484 = vadd.f32 %v3464, 1.0
        %v3485 = vadd.f32 %v3466, 1.0
        %v3486 = vadd.f32 %v3468, 1.0
        %v3487 = vadd.f32 %v3470, 1.0
        %v3488 = vadd.f32 %v3472, 1.0
        %v3489 = vrcp.pop %v3473
        %v3490 = vmul.f32 1.0, %v3489
        %v3491 = vrcp.pop %v3474
        %v3492 = vmul.f32 1.0, %v3491
        %v3493 = vrcp.pop %v3475
        %v3494 = vmul.f32 1.0, %v3493
        %v3495 = vrcp.pop %v3476
        %v3496 = vmul.f32 1.0, %v3495
        %v3497 = vrcp.pop %v3477
        %v3498 = vmul.f32 1.0, %v3497
        %v3499 = vrcp.pop %v3478
        %v3500 = vmul.f32 1.0, %v3499
        %v3501 = vrcp.pop %v3479
        %v3502 = vmul.f32 1.0, %v3501
        %v3503 = vrcp.pop %v3480
        %v3504 = vmul.f32 1.0, %v3503
        %v3505 = vrcp.pop %v3481
        %v3506 = vmul.f32 1.0, %v3505
        %v3507 = vrcp.pop %v3482
        %v3508 = vmul.f32 1.0, %v3507
        %v3509 = vrcp.pop %v3483
        %v3510 = vmul.f32 1.0, %v3509
        %v3511 = vrcp.pop %v3484
        %v3512 = vmul.f32 1.0, %v3511
        %v3513 = vrcp.pop %v3485
        %v3514 = vmul.f32 1.0, %v3513
        %v3515 = vrcp.pop %v3486
        %v3516 = vmul.f32 1.0, %v3515
        %v3517 = vrcp.pop %v3487
        %v3518 = vmul.f32 1.0, %v3517
        %v3519 = vrcp.pop %v3488
        %v3520 = vmul.f32 1.0, %v3519
        %3521 = vst [vmem:[%s653 + $0x10] sm:$0xff] %v3490
        %3522 = vst [vmem:[%s653 + $0x18] sm:$0xff] %v3492
        %3523 = vst [vmem:[%s653 + $0x50] sm:$0xff] %v3494
        %3524 = vst [vmem:[%s653 + $0x58] sm:$0xff] %v3496
        %3525 = vst [vmem:[%s653 + $0x90] sm:$0xff] %v3498
        %3526 = vst [vmem:[%s653 + $0x98] sm:$0xff] %v3500
        %3527 = vst [vmem:[%s653 + $0xd0] sm:$0xff] %v3502
        %3528 = vst [vmem:[%s653 + $0xd8] sm:$0xff] %v3504
        %3529 = vst [vmem:[%s653 + $0x110] sm:$0xff] %v3506
        %3530 = vst [vmem:[%s653 + $0x118] sm:$0xff] %v3508
        %3531 = vst [vmem:[%s653 + $0x150] sm:$0xff] %v3510
        %3532 = vst [vmem:[%s653 + $0x158] sm:$0xff] %v3512
        %3533 = vst [vmem:[%s653 + $0x190] sm:$0xff] %v3514
        %3534 = vst [vmem:[%s653 + $0x198] sm:$0xff] %v3516
        %3535 = vst [vmem:[%s653 + $0x1d0] sm:$0xff] %v3518
        %3536 = vst [vmem:[%s653 + $0x1d8] sm:$0xff] %v3520
        %v3537 = vld [vmem:[#allocation16 + $0x10] sm:$0xff]
        %v3538 = vld [vmem:[#allocation16 + $0x30] sm:$0xff]
        %v3539 = vld [vmem:[#allocation16 + $0x50] sm:$0xff]
        %v3540 = vld [vmem:[#allocation16 + $0x70] sm:$0xff]
        %v3541 = vld [vmem:[#allocation16 + $0x90] sm:$0xff]
        %v3542 = vld [vmem:[#allocation16 + $0xb0] sm:$0xff]
        %v3543 = vld [vmem:[#allocation16 + $0xd0] sm:$0xff]
        %v3544 = vld [vmem:[#allocation16 + $0xf0] sm:$0xff]
        %v3545 = vld [vmem:[#allocation16 + $0x110] sm:$0xff]
        %v3546 = vld [vmem:[#allocation16 + $0x130] sm:$0xff]
        %v3547 = vld [vmem:[#allocation16 + $0x150] sm:$0xff]
        %v3548 = vld [vmem:[#allocation16 + $0x170] sm:$0xff]
        %v3549 = vld [vmem:[#allocation16 + $0x190] sm:$0xff]
        %v3550 = vld [vmem:[#allocation16 + $0x1b0] sm:$0xff]
        %v3551 = vld [vmem:[#allocation16 + $0x1d0] sm:$0xff]
        %v3552 = vld [vmem:[#allocation16 + $0x1f0] sm:$0xff]
        %v3553 = vld [vmem:[#allocation16 + $0x210] sm:$0xff]
        %v3554 = vld [vmem:[#allocation16 + $0x230] sm:$0xff]
        %v3555 = vld [vmem:[#allocation16 + $0x250] sm:$0xff]
        %v3556 = vld [vmem:[#allocation16 + $0x270] sm:$0xff]
        %v3557 = vld [vmem:[#allocation16 + $0x290] sm:$0xff]
        %v3558 = vld [vmem:[#allocation16 + $0x2b0] sm:$0xff]
        %v3559 = vld [vmem:[#allocation16 + $0x2d0] sm:$0xff]
        %v3560 = vld [vmem:[#allocation16 + $0x2f0] sm:$0xff]
        %v3561 = vld [vmem:[#allocation16 + $0x310] sm:$0xff]
        %v3562 = vld [vmem:[#allocation16 + $0x330] sm:$0xff]
        %v3563 = vld [vmem:[#allocation16 + $0x350] sm:$0xff]
        %v3564 = vld [vmem:[#allocation16 + $0x370] sm:$0xff]
        %v3565 = vld [vmem:[#allocation16 + $0x390] sm:$0xff]
        %v3566 = vld [vmem:[#allocation16 + $0x3b0] sm:$0xff]
        %v3567 = vld [vmem:[#allocation16 + $0x3d0] sm:$0xff]
        %v3568 = vld [vmem:[#allocation16 + $0x3f0] sm:$0xff]
        %v3569 = vld [vmem:[%s13 + $0x4] sm:$0x3]
        %v3571 = vlaneseq
        %v3572 = vshrl.u32 %v3571, 7
        %v3573 = vsub.s32 0, %v3572
        %v3574 = vrot.slane %v3569, %v3573
        %v3575 = vlaneseq
        %v3576 = vshrl.u32 %v3575, 7
        %v3577 = vsub.s32 1, %v3576
        %v3578 = vrot.slane %v3569, %v3577
        %v3613 = vunpack.c.l.b16 %v3537
        %v3614 = vunpack.c.h.b16 %v3537
        %v3615 = vunpack.c.l.b16 %v3538
        %v3616 = vunpack.c.h.b16 %v3538
        %v3617 = vunpack.c.l.b16 %v3539
        %v3618 = vunpack.c.h.b16 %v3539
        %v3619 = vunpack.c.l.b16 %v3540
        %v3620 = vunpack.c.h.b16 %v3540
        %v3621 = vunpack.c.l.b16 %v3541
        %v3622 = vunpack.c.h.b16 %v3541
        %v3623 = vunpack.c.l.b16 %v3542
        %v3624 = vunpack.c.h.b16 %v3542
        %v3625 = vunpack.c.l.b16 %v3543
        %v3626 = vunpack.c.h.b16 %v3543
        %v3627 = vunpack.c.l.b16 %v3544
        %v3628 = vunpack.c.h.b16 %v3544
        %v3629 = vunpack.c.l.b16 %v3545
        %v3630 = vunpack.c.h.b16 %v3545
        %v3631 = vunpack.c.l.b16 %v3546
        %v3632 = vunpack.c.h.b16 %v3546
        %v3633 = vunpack.c.l.b16 %v3547
        %v3634 = vunpack.c.h.b16 %v3547
        %v3635 = vunpack.c.l.b16 %v3548
        %v3636 = vunpack.c.h.b16 %v3548
        %v3637 = vunpack.c.l.b16 %v3549
        %v3638 = vunpack.c.h.b16 %v3549
        %v3639 = vunpack.c.l.b16 %v3550
        %v3640 = vunpack.c.h.b16 %v3550
        %v3641 = vunpack.c.l.b16 %v3551
        %v3642 = vunpack.c.h.b16 %v3551
        %v3643 = vunpack.c.l.b16 %v3552
        %v3644 = vunpack.c.h.b16 %v3552
        %v3645 = vunpack.c.l.b16 %v3553
        %v3646 = vunpack.c.h.b16 %v3553
        %v3647 = vunpack.c.l.b16 %v3554
        %v3648 = vunpack.c.h.b16 %v3554
        %v3649 = vunpack.c.l.b16 %v3555
        %v3650 = vunpack.c.h.b16 %v3555
        %v3651 = vunpack.c.l.b16 %v3556
        %v3652 = vunpack.c.h.b16 %v3556
        %v3653 = vunpack.c.l.b16 %v3557
        %v3654 = vunpack.c.h.b16 %v3557
        %v3655 = vunpack.c.l.b16 %v3558
        %v3656 = vunpack.c.h.b16 %v3558
        %v3657 = vunpack.c.l.b16 %v3559
        %v3658 = vunpack.c.h.b16 %v3559
        %v3659 = vunpack.c.l.b16 %v3560
        %v3660 = vunpack.c.h.b16 %v3560
        %v3661 = vunpack.c.l.b16 %v3561
        %v3662 = vunpack.c.h.b16 %v3561
        %v3663 = vunpack.c.l.b16 %v3562
        %v3664 = vunpack.c.h.b16 %v3562
        %v3665 = vunpack.c.l.b16 %v3563
        %v3666 = vunpack.c.h.b16 %v3563
        %v3667 = vunpack.c.l.b16 %v3564
        %v3668 = vunpack.c.h.b16 %v3564
        %v3669 = vunpack.c.l.b16 %v3565
        %v3670 = vunpack.c.h.b16 %v3565
        %v3671 = vunpack.c.l.b16 %v3566
        %v3672 = vunpack.c.h.b16 %v3566
        %v3673 = vunpack.c.l.b16 %v3567
        %v3674 = vunpack.c.h.b16 %v3567
        %v3675 = vunpack.c.l.b16 %v3568
        %v3676 = vunpack.c.h.b16 %v3568
        %v3677 = vpack.c.b16 %v3615, %v3613
        %v3678 = vpack.c.b16 %v3616, %v3614
        %v3679 = vpack.c.b16 %v3619, %v3617
        %v3680 = vpack.c.b16 %v3620, %v3618
        %v3681 = vpack.c.b16 %v3623, %v3621
        %v3682 = vpack.c.b16 %v3624, %v3622
        %v3683 = vpack.c.b16 %v3627, %v3625
        %v3684 = vpack.c.b16 %v3628, %v3626
        %v3685 = vpack.c.b16 %v3631, %v3629
        %v3686 = vpack.c.b16 %v3632, %v3630
        %v3687 = vpack.c.b16 %v3635, %v3633
        %v3688 = vpack.c.b16 %v3636, %v3634
        %v3689 = vpack.c.b16 %v3639, %v3637
        %v3690 = vpack.c.b16 %v3640, %v3638
        %v3691 = vpack.c.b16 %v3643, %v3641
        %v3692 = vpack.c.b16 %v3644, %v3642
        %v3693 = vpack.c.b16 %v3647, %v3645
        %v3694 = vpack.c.b16 %v3648, %v3646
        %v3695 = vpack.c.b16 %v3651, %v3649
        %v3696 = vpack.c.b16 %v3652, %v3650
        %v3697 = vpack.c.b16 %v3655, %v3653
        %v3698 = vpack.c.b16 %v3656, %v3654
        %v3699 = vpack.c.b16 %v3659, %v3657
        %v3700 = vpack.c.b16 %v3660, %v3658
        %v3701 = vpack.c.b16 %v3663, %v3661
        %v3702 = vpack.c.b16 %v3664, %v3662
        %v3703 = vpack.c.b16 %v3667, %v3665
        %v3704 = vpack.c.b16 %v3668, %v3666
        %v3705 = vpack.c.b16 %v3671, %v3669
        %v3706 = vpack.c.b16 %v3672, %v3670
        %v3707 = vpack.c.b16 %v3675, %v3673
        %v3708 = vpack.c.b16 %v3676, %v3674
        %3741 = vmatprep.subr.bf16.mxu0 %v3678
        %3742 = vmatpush1.bf16.msra.mxu0 %v3677
        %3743 = vmatprep.subr.bf16.mxu0 %v3680
        %3744 = vmatpush1.bf16.msra.mxu0 %v3679
        %3745 = vmatprep.subr.bf16.mxu0 %v3682
        %3746 = vmatpush1.bf16.msra.mxu0 %v3681
        %3747 = vmatprep.subr.bf16.mxu0 %v3684
        %3748 = vmatpush1.bf16.msra.mxu0 %v3683
        %3749 = vmatprep.subr.bf16.mxu0 %v3686
        %3750 = vmatpush1.bf16.msra.mxu0 %v3685
        %3751 = vmatprep.subr.bf16.mxu0 %v3688
        %3752 = vmatpush1.bf16.msra.mxu0 %v3687
        %3753 = vmatprep.subr.bf16.mxu0 %v3690
        %3754 = vmatpush1.bf16.msra.mxu0 %v3689
        %3755 = vmatprep.subr.bf16.mxu0 %v3692
        %3756 = vmatpush1.bf16.msra.mxu0 %v3691
        %3757 = vmatprep.subr.bf16.mxu0 %v3694
        %3758 = vmatpush1.bf16.msra.mxu0 %v3693
        %3759 = vmatprep.subr.bf16.mxu0 %v3696
        %3760 = vmatpush1.bf16.msra.mxu0 %v3695
        %3761 = vmatprep.subr.bf16.mxu0 %v3698
        %3762 = vmatpush1.bf16.msra.mxu0 %v3697
        %3763 = vmatprep.subr.bf16.mxu0 %v3700
        %3764 = vmatpush1.bf16.msra.mxu0 %v3699
        %3765 = vmatprep.subr.bf16.mxu0 %v3702
        %3766 = vmatpush1.bf16.msra.mxu0 %v3701
        %3767 = vmatprep.subr.bf16.mxu0 %v3704
        %3768 = vmatpush1.bf16.msra.mxu0 %v3703
        %3769 = vmatprep.subr.bf16.mxu0 %v3706
        %3770 = vmatpush1.bf16.msra.mxu0 %v3705
        %3771 = vmatprep.subr.bf16.mxu0 %v3708
        %3772 = vmatpush1.bf16.msra.mxu0 %v3707
        %3773 = vmatprep.mubr.bf16.mxu0 %v2752
        %3774 = vmatmul.mubr.bf16.gmra.mrb[0].mxu0 %v2751
        %v3775 = vpop.f32.mrb[0].mxu0
        %v3776 = vadd.f32 %v3574, %v3775
        %v3777 = vpop.f32.mrb[0].mxu0
        %v3778 = vadd.f32 %v3578, %v3777
        %v3779 = vpop.f32.mrb[0].mxu0
        %v3780 = vadd.f32 %v3574, %v3779
        %v3781 = vpop.f32.mrb[0].mxu0
        %v3782 = vadd.f32 %v3578, %v3781
        %3783 = vmatprep.mubr.bf16.mxu0 %v2754
        %3784 = vmatmul.mubr.bf16.gmra.mrb[0].mxu0 %v2753
        %v3785 = vpop.f32.mrb[0].mxu0
        %v3786 = vadd.f32 %v3574, %v3785
        %v3787 = vpop.f32.mrb[0].mxu0
        %v3788 = vadd.f32 %v3578, %v3787
        %v3789 = vpop.f32.mrb[0].mxu0
        %v3790 = vadd.f32 %v3574, %v3789
        %v3791 = vpop.f32.mrb[0].mxu0
        %v3792 = vadd.f32 %v3578, %v3791
        %3793 = vmatprep.mubr.bf16.mxu0 %v2756
        %3794 = vmatmul.mubr.bf16.gmra.mrb[0].mxu0 %v2755
        %v3795 = vpop.f32.mrb[0].mxu0
        %v3796 = vadd.f32 %v3574, %v3795
        %v3797 = vpop.f32.mrb[0].mxu0
        %v3798 = vadd.f32 %v3578, %v3797
        %v3799 = vpop.f32.mrb[0].mxu0
        %v3800 = vadd.f32 %v3574, %v3799
        %v3801 = vpop.f32.mrb[0].mxu0
        %v3802 = vadd.f32 %v3578, %v3801
        %3803 = vmatprep.mubr.bf16.mxu0 %v2758
        %3804 = vmatmul.mubr.bf16.gmra.mrb[0].mxu0 %v2757
        %v3805 = vpop.f32.mrb[0].mxu0
        %v3806 = vadd.f32 %v3574, %v3805
        %v3807 = vpop.f32.mrb[0].mxu0
        %v3808 = vadd.f32 %v3578, %v3807
        %v3809 = vpop.f32.mrb[0].mxu0
        %v3810 = vadd.f32 %v3574, %v3809
        %v3811 = vpop.f32.mrb[0].mxu0
        %v3812 = vadd.f32 %v3578, %v3811
        %3813 = vdwg.mxu0
        %v3814 = vxor.u32 %v3776, 2147483648
        %v3815 = vxor.u32 %v3778, 2147483648
        %v3816 = vxor.u32 %v3780, 2147483648
        %v3817 = vxor.u32 %v3782, 2147483648
        %v3818 = vxor.u32 %v3786, 2147483648
        %v3819 = vxor.u32 %v3788, 2147483648
        %v3820 = vxor.u32 %v3790, 2147483648
        %v3821 = vxor.u32 %v3792, 2147483648
        %v3822 = vxor.u32 %v3796, 2147483648
        %v3823 = vxor.u32 %v3798, 2147483648
        %v3824 = vxor.u32 %v3800, 2147483648
        %v3825 = vxor.u32 %v3802, 2147483648
        %v3826 = vxor.u32 %v3806, 2147483648
        %v3827 = vxor.u32 %v3808, 2147483648
        %v3828 = vxor.u32 %v3810, 2147483648
        %v3829 = vxor.u32 %v3812, 2147483648
        %v3830 = vmul.f32 %v3814, 1.442695
        %v3831 = vpow.pop %v3830
        %v3832 = vmul.f32 %v3815, 1.442695
        %v3833 = vpow.pop %v3832
        %v3834 = vmul.f32 %v3816, 1.442695
        %v3835 = vpow.pop %v3834
        %v3836 = vmul.f32 %v3817, 1.442695
        %v3837 = vpow.pop %v3836
        %v3838 = vmul.f32 %v3818, 1.442695
        %v3839 = vpow.pop %v3838
        %v3840 = vmul.f32 %v3819, 1.442695
        %v3841 = vpow.pop %v3840
        %v3842 = vmul.f32 %v3820, 1.442695
        %v3843 = vpow.pop %v3842
        %v3844 = vmul.f32 %v3821, 1.442695
        %v3845 = vpow.pop %v3844
        %v3846 = vmul.f32 %v3822, 1.442695
        %v3847 = vpow.pop %v3846
        %v3848 = vmul.f32 %v3823, 1.442695
        %v3849 = vpow.pop %v3848
        %v3850 = vmul.f32 %v3824, 1.442695
        %v3851 = vpow.pop %v3850
        %v3852 = vmul.f32 %v3825, 1.442695
        %v3853 = vpow.pop %v3852
        %v3854 = vmul.f32 %v3826, 1.442695
        %v3855 = vpow.pop %v3854
        %v3856 = vmul.f32 %v3827, 1.442695
        %v3857 = vpow.pop %v3856
        %v3858 = vmul.f32 %v3828, 1.442695
        %v3859 = vpow.pop %v3858
        %v3860 = vmul.f32 %v3829, 1.442695
        %v3861 = vpow.pop %v3860
        %v3862 = vadd.f32 %v3831, 1.0
        %v3863 = vadd.f32 %v3833, 1.0
        %v3864 = vadd.f32 %v3835, 1.0
        %v3865 = vadd.f32 %v3837, 1.0
        %v3866 = vadd.f32 %v3839, 1.0
        %v3867 = vadd.f32 %v3841, 1.0
        %v3868 = vadd.f32 %v3843, 1.0
        %v3869 = vadd.f32 %v3845, 1.0
        %v3870 = vadd.f32 %v3847, 1.0
        %v3871 = vadd.f32 %v3849, 1.0
        %v3872 = vadd.f32 %v3851, 1.0
        %v3873 = vadd.f32 %v3853, 1.0
        %v3874 = vadd.f32 %v3855, 1.0
        %v3875 = vadd.f32 %v3857, 1.0
        %v3876 = vadd.f32 %v3859, 1.0
        %v3877 = vadd.f32 %v3861, 1.0
        %v3878 = vrcp.pop %v3862
        %v3879 = vmul.f32 1.0, %v3878
        %v3880 = vrcp.pop %v3863
        %v3881 = vmul.f32 1.0, %v3880
        %v3882 = vrcp.pop %v3864
        %v3883 = vmul.f32 1.0, %v3882
        %v3884 = vrcp.pop %v3865
        %v3885 = vmul.f32 1.0, %v3884
        %v3886 = vrcp.pop %v3866
        %v3887 = vmul.f32 1.0, %v3886
        %v3888 = vrcp.pop %v3867
        %v3889 = vmul.f32 1.0, %v3888
        %v3890 = vrcp.pop %v3868
        %v3891 = vmul.f32 1.0, %v3890
        %v3892 = vrcp.pop %v3869
        %v3893 = vmul.f32 1.0, %v3892
        %v3894 = vrcp.pop %v3870
        %v3895 = vmul.f32 1.0, %v3894
        %v3896 = vrcp.pop %v3871
        %v3897 = vmul.f32 1.0, %v3896
        %v3898 = vrcp.pop %v3872
        %v3899 = vmul.f32 1.0, %v3898
        %v3900 = vrcp.pop %v3873
        %v3901 = vmul.f32 1.0, %v3900
        %v3902 = vrcp.pop %v3874
        %v3903 = vmul.f32 1.0, %v3902
        %v3904 = vrcp.pop %v3875
        %v3905 = vmul.f32 1.0, %v3904
        %v3906 = vrcp.pop %v3876
        %v3907 = vmul.f32 1.0, %v3906
        %v3908 = vrcp.pop %v3877
        %v3909 = vmul.f32 1.0, %v3908
        %3910 = vst [vmem:[%s653 + $0x20] sm:$0xff] %v3879
        %3911 = vst [vmem:[%s653 + $0x28] sm:$0xff] %v3881
        %3912 = vst [vmem:[%s653 + $0x60] sm:$0xff] %v3883
        %3913 = vst [vmem:[%s653 + $0x68] sm:$0xff] %v3885
        %3914 = vst [vmem:[%s653 + $0xa0] sm:$0xff] %v3887
        %3915 = vst [vmem:[%s653 + $0xa8] sm:$0xff] %v3889
        %3916 = vst [vmem:[%s653 + $0xe0] sm:$0xff] %v3891
        %3917 = vst [vmem:[%s653 + $0xe8] sm:$0xff] %v3893
        %3918 = vst [vmem:[%s653 + $0x120] sm:$0xff] %v3895
        %3919 = vst [vmem:[%s653 + $0x128] sm:$0xff] %v3897
        %3920 = vst [vmem:[%s653 + $0x160] sm:$0xff] %v3899
        %3921 = vst [vmem:[%s653 + $0x168] sm:$0xff] %v3901
        %3922 = vst [vmem:[%s653 + $0x1a0] sm:$0xff] %v3903
        %3923 = vst [vmem:[%s653 + $0x1a8] sm:$0xff] %v3905
        %3924 = vst [vmem:[%s653 + $0x1e0] sm:$0xff] %v3907
        %3925 = vst [vmem:[%s653 + $0x1e8] sm:$0xff] %v3909
        %v3926 = vld [vmem:[#allocation16 + $0x18] sm:$0xff]
        %v3927 = vld [vmem:[#allocation16 + $0x38] sm:$0xff]
        %v3928 = vld [vmem:[#allocation16 + $0x58] sm:$0xff]
        %v3929 = vld [vmem:[#allocation16 + $0x78] sm:$0xff]
        %v3930 = vld [vmem:[#allocation16 + $0x98] sm:$0xff]
        %v3931 = vld [vmem:[#allocation16 + $0xb8] sm:$0xff]
        %v3932 = vld [vmem:[#allocation16 + $0xd8] sm:$0xff]
        %v3933 = vld [vmem:[#allocation16 + $0xf8] sm:$0xff]
        %v3934 = vld [vmem:[#allocation16 + $0x118] sm:$0xff]
        %v3935 = vld [vmem:[#allocation16 + $0x138] sm:$0xff]
        %v3936 = vld [vmem:[#allocation16 + $0x158] sm:$0xff]
        %v3937 = vld [vmem:[#allocation16 + $0x178] sm:$0xff]
        %v3938 = vld [vmem:[#allocation16 + $0x198] sm:$0xff]
        %v3939 = vld [vmem:[#allocation16 + $0x1b8] sm:$0xff]
        %v3940 = vld [vmem:[#allocation16 + $0x1d8] sm:$0xff]
        %v3941 = vld [vmem:[#allocation16 + $0x1f8] sm:$0xff]
        %v3942 = vld [vmem:[#allocation16 + $0x218] sm:$0xff]
        %v3943 = vld [vmem:[#allocation16 + $0x238] sm:$0xff]
        %v3944 = vld [vmem:[#allocation16 + $0x258] sm:$0xff]
        %v3945 = vld [vmem:[#allocation16 + $0x278] sm:$0xff]
        %v3946 = vld [vmem:[#allocation16 + $0x298] sm:$0xff]
        %v3947 = vld [vmem:[#allocation16 + $0x2b8] sm:$0xff]
        %v3948 = vld [vmem:[#allocation16 + $0x2d8] sm:$0xff]
        %v3949 = vld [vmem:[#allocation16 + $0x2f8] sm:$0xff]
        %v3950 = vld [vmem:[#allocation16 + $0x318] sm:$0xff]
        %v3951 = vld [vmem:[#allocation16 + $0x338] sm:$0xff]
        %v3952 = vld [vmem:[#allocation16 + $0x358] sm:$0xff]
        %v3953 = vld [vmem:[#allocation16 + $0x378] sm:$0xff]
        %v3954 = vld [vmem:[#allocation16 + $0x398] sm:$0xff]
        %v3955 = vld [vmem:[#allocation16 + $0x3b8] sm:$0xff]
        %v3956 = vld [vmem:[#allocation16 + $0x3d8] sm:$0xff]
        %v3957 = vld [vmem:[#allocation16 + $0x3f8] sm:$0xff]
        %v3958 = vld [vmem:[%s13 + $0x6] sm:$0x3]
        %v3960 = vlaneseq
        %v3961 = vshrl.u32 %v3960, 7
        %v3962 = vsub.s32 0, %v3961
        %v3963 = vrot.slane %v3958, %v3962
        %v3964 = vlaneseq
        %v3965 = vshrl.u32 %v3964, 7
        %v3966 = vsub.s32 1, %v3965
        %v3967 = vrot.slane %v3958, %v3966
        %v4002 = vunpack.c.l.b16 %v3926
        %v4003 = vunpack.c.h.b16 %v3926
        %v4004 = vunpack.c.l.b16 %v3927
        %v4005 = vunpack.c.h.b16 %v3927
        %v4006 = vunpack.c.l.b16 %v3928
        %v4007 = vunpack.c.h.b16 %v3928
        %v4008 = vunpack.c.l.b16 %v3929
        %v4009 = vunpack.c.h.b16 %v3929
        %v4010 = vunpack.c.l.b16 %v3930
        %v4011 = vunpack.c.h.b16 %v3930
        %v4012 = vunpack.c.l.b16 %v3931
        %v4013 = vunpack.c.h.b16 %v3931
        %v4014 = vunpack.c.l.b16 %v3932
        %v4015 = vunpack.c.h.b16 %v3932
        %v4016 = vunpack.c.l.b16 %v3933
        %v4017 = vunpack.c.h.b16 %v3933
        %v4018 = vunpack.c.l.b16 %v3934
        %v4019 = vunpack.c.h.b16 %v3934
        %v4020 = vunpack.c.l.b16 %v3935
        %v4021 = vunpack.c.h.b16 %v3935
        %v4022 = vunpack.c.l.b16 %v3936
        %v4023 = vunpack.c.h.b16 %v3936
        %v4024 = vunpack.c.l.b16 %v3937
        %v4025 = vunpack.c.h.b16 %v3937
        %v4026 = vunpack.c.l.b16 %v3938
        %v4027 = vunpack.c.h.b16 %v3938
        %v4028 = vunpack.c.l.b16 %v3939
        %v4029 = vunpack.c.h.b16 %v3939
        %v4030 = vunpack.c.l.b16 %v3940
        %v4031 = vunpack.c.h.b16 %v3940
        %v4032 = vunpack.c.l.b16 %v3941
        %v4033 = vunpack.c.h.b16 %v3941
        %v4034 = vunpack.c.l.b16 %v3942
        %v4035 = vunpack.c.h.b16 %v3942
        %v4036 = vunpack.c.l.b16 %v3943
        %v4037 = vunpack.c.h.b16 %v3943
        %v4038 = vunpack.c.l.b16 %v3944
        %v4039 = vunpack.c.h.b16 %v3944
        %v4040 = vunpack.c.l.b16 %v3945
        %v4041 = vunpack.c.h.b16 %v3945
        %v4042 = vunpack.c.l.b16 %v3946
        %v4043 = vunpack.c.h.b16 %v3946
        %v4044 = vunpack.c.l.b16 %v3947
        %v4045 = vunpack.c.h.b16 %v3947
        %v4046 = vunpack.c.l.b16 %v3948
        %v4047 = vunpack.c.h.b16 %v3948
        %v4048 = vunpack.c.l.b16 %v3949
        %v4049 = vunpack.c.h.b16 %v3949
        %v4050 = vunpack.c.l.b16 %v3950
        %v4051 = vunpack.c.h.b16 %v3950
        %v4052 = vunpack.c.l.b16 %v3951
        %v4053 = vunpack.c.h.b16 %v3951
        %v4054 = vunpack.c.l.b16 %v3952
        %v4055 = vunpack.c.h.b16 %v3952
        %v4056 = vunpack.c.l.b16 %v3953
        %v4057 = vunpack.c.h.b16 %v3953
        %v4058 = vunpack.c.l.b16 %v3954
        %v4059 = vunpack.c.h.b16 %v3954
        %v4060 = vunpack.c.l.b16 %v3955
        %v4061 = vunpack.c.h.b16 %v3955
        %v4062 = vunpack.c.l.b16 %v3956
        %v4063 = vunpack.c.h.b16 %v3956
        %v4064 = vunpack.c.l.b16 %v3957
        %v4065 = vunpack.c.h.b16 %v3957
        %v4066 = vpack.c.b16 %v4004, %v4002
        %v4067 = vpack.c.b16 %v4005, %v4003
        %v4068 = vpack.c.b16 %v4008, %v4006
        %v4069 = vpack.c.b16 %v4009, %v4007
        %v4070 = vpack.c.b16 %v4012, %v4010
        %v4071 = vpack.c.b16 %v4013, %v4011
        %v4072 = vpack.c.b16 %v4016, %v4014
        %v4073 = vpack.c.b16 %v4017, %v4015
        %v4074 = vpack.c.b16 %v4020, %v4018
        %v4075 = vpack.c.b16 %v4021, %v4019
        %v4076 = vpack.c.b16 %v4024, %v4022
        %v4077 = vpack.c.b16 %v4025, %v4023
        %v4078 = vpack.c.b16 %v4028, %v4026
        %v4079 = vpack.c.b16 %v4029, %v4027
        %v4080 = vpack.c.b16 %v4032, %v4030
        %v4081 = vpack.c.b16 %v4033, %v4031
        %v4082 = vpack.c.b16 %v4036, %v4034
        %v4083 = vpack.c.b16 %v4037, %v4035
        %v4084 = vpack.c.b16 %v4040, %v4038
        %v4085 = vpack.c.b16 %v4041, %v4039
        %v4086 = vpack.c.b16 %v4044, %v4042
        %v4087 = vpack.c.b16 %v4045, %v4043
        %v4088 = vpack.c.b16 %v4048, %v4046
        %v4089 = vpack.c.b16 %v4049, %v4047
        %v4090 = vpack.c.b16 %v4052, %v4050
        %v4091 = vpack.c.b16 %v4053, %v4051
        %v4092 = vpack.c.b16 %v4056, %v4054
        %v4093 = vpack.c.b16 %v4057, %v4055
        %v4094 = vpack.c.b16 %v4060, %v4058
        %v4095 = vpack.c.b16 %v4061, %v4059
        %v4096 = vpack.c.b16 %v4064, %v4062
        %v4097 = vpack.c.b16 %v4065, %v4063
        %4130 = vmatprep.subr.bf16.mxu0 %v4067
        %4131 = vmatpush1.bf16.msra.mxu0 %v4066
        %4132 = vmatprep.subr.bf16.mxu0 %v4069
        %4133 = vmatpush1.bf16.msra.mxu0 %v4068
        %4134 = vmatprep.subr.bf16.mxu0 %v4071
        %4135 = vmatpush1.bf16.msra.mxu0 %v4070
        %4136 = vmatprep.subr.bf16.mxu0 %v4073
        %4137 = vmatpush1.bf16.msra.mxu0 %v4072
        %4138 = vmatprep.subr.bf16.mxu0 %v4075
        %4139 = vmatpush1.bf16.msra.mxu0 %v4074
        %4140 = vmatprep.subr.bf16.mxu0 %v4077
        %4141 = vmatpush1.bf16.msra.mxu0 %v4076
        %4142 = vmatprep.subr.bf16.mxu0 %v4079
        %4143 = vmatpush1.bf16.msra.mxu0 %v4078
        %4144 = vmatprep.subr.bf16.mxu0 %v4081
        %4145 = vmatpush1.bf16.msra.mxu0 %v4080
        %4146 = vmatprep.subr.bf16.mxu0 %v4083
        %4147 = vmatpush1.bf16.msra.mxu0 %v4082
        %4148 = vmatprep.subr.bf16.mxu0 %v4085
        %4149 = vmatpush1.bf16.msra.mxu0 %v4084
        %4150 = vmatprep.subr.bf16.mxu0 %v4087
        %4151 = vmatpush1.bf16.msra.mxu0 %v4086
        %4152 = vmatprep.subr.bf16.mxu0 %v4089
        %4153 = vmatpush1.bf16.msra.mxu0 %v4088
        %4154 = vmatprep.subr.bf16.mxu0 %v4091
        %4155 = vmatpush1.bf16.msra.mxu0 %v4090
        %4156 = vmatprep.subr.bf16.mxu0 %v4093
        %4157 = vmatpush1.bf16.msra.mxu0 %v4092
        %4158 = vmatprep.subr.bf16.mxu0 %v4095
        %4159 = vmatpush1.bf16.msra.mxu0 %v4094
        %4160 = vmatprep.subr.bf16.mxu0 %v4097
        %4161 = vmatpush1.bf16.msra.mxu0 %v4096
        %4162 = vmatprep.mubr.bf16.mxu0 %v2752
        %4163 = vmatmul.mubr.bf16.gmra.mrb[0].mxu0 %v2751
        %v4164 = vpop.f32.mrb[0].mxu0
        %v4165 = vadd.f32 %v3963, %v4164
        %v4166 = vpop.f32.mrb[0].mxu0
        %v4167 = vadd.f32 %v3967, %v4166
        %v4168 = vpop.f32.mrb[0].mxu0
        %v4169 = vadd.f32 %v3963, %v4168
        %v4170 = vpop.f32.mrb[0].mxu0
        %v4171 = vadd.f32 %v3967, %v4170
        %4172 = vmatprep.mubr.bf16.mxu0 %v2754
        %4173 = vmatmul.mubr.bf16.gmra.mrb[0].mxu0 %v2753
        %v4174 = vpop.f32.mrb[0].mxu0
        %v4175 = vadd.f32 %v3963, %v4174
        %v4176 = vpop.f32.mrb[0].mxu0
        %v4177 = vadd.f32 %v3967, %v4176
        %v4178 = vpop.f32.mrb[0].mxu0
        %v4179 = vadd.f32 %v3963, %v4178
        %v4180 = vpop.f32.mrb[0].mxu0
        %v4181 = vadd.f32 %v3967, %v4180
        %4182 = vmatprep.mubr.bf16.mxu0 %v2756
        %4183 = vmatmul.mubr.bf16.gmra.mrb[0].mxu0 %v2755
        %v4184 = vpop.f32.mrb[0].mxu0
        %v4185 = vadd.f32 %v3963, %v4184
        %v4186 = vpop.f32.mrb[0].mxu0
        %v4187 = vadd.f32 %v3967, %v4186
        %v4188 = vpop.f32.mrb[0].mxu0
        %v4189 = vadd.f32 %v3963, %v4188
        %v4190 = vpop.f32.mrb[0].mxu0
        %v4191 = vadd.f32 %v3967, %v4190
        %4192 = vmatprep.mubr.bf16.mxu0 %v2758
        %4193 = vmatmul.mubr.bf16.gmra.mrb[0].mxu0 %v2757
        %v4194 = vpop.f32.mrb[0].mxu0
        %v4195 = vadd.f32 %v3963, %v4194
        %v4196 = vpop.f32.mrb[0].mxu0
        %v4197 = vadd.f32 %v3967, %v4196
        %v4198 = vpop.f32.mrb[0].mxu0
        %v4199 = vadd.f32 %v3963, %v4198
        %v4200 = vpop.f32.mrb[0].mxu0
        %v4201 = vadd.f32 %v3967, %v4200
        %4202 = vdwg.mxu0
        %v4203 = vxor.u32 %v4165, 2147483648
        %v4204 = vxor.u32 %v4167, 2147483648
        %v4205 = vxor.u32 %v4169, 2147483648
        %v4206 = vxor.u32 %v4171, 2147483648
        %v4207 = vxor.u32 %v4175, 2147483648
        %v4208 = vxor.u32 %v4177, 2147483648
        %v4209 = vxor.u32 %v4179, 2147483648
        %v4210 = vxor.u32 %v4181, 2147483648
        %v4211 = vxor.u32 %v4185, 2147483648
        %v4212 = vxor.u32 %v4187, 2147483648
        %v4213 = vxor.u32 %v4189, 2147483648
        %v4214 = vxor.u32 %v4191, 2147483648
        %v4215 = vxor.u32 %v4195, 2147483648
        %v4216 = vxor.u32 %v4197, 2147483648
        %v4217 = vxor.u32 %v4199, 2147483648
        %v4218 = vxor.u32 %v4201, 2147483648
        %v4219 = vmul.f32 %v4203, 1.442695
        %v4220 = vpow.pop %v4219
        %v4221 = vmul.f32 %v4204, 1.442695
        %v4222 = vpow.pop %v4221
        %v4223 = vmul.f32 %v4205, 1.442695
        %v4224 = vpow.pop %v4223
        %v4225 = vmul.f32 %v4206, 1.442695
        %v4226 = vpow.pop %v4225
        %v4227 = vmul.f32 %v4207, 1.442695
        %v4228 = vpow.pop %v4227
        %v4229 = vmul.f32 %v4208, 1.442695
        %v4230 = vpow.pop %v4229
        %v4231 = vmul.f32 %v4209, 1.442695
        %v4232 = vpow.pop %v4231
        %v4233 = vmul.f32 %v4210, 1.442695
        %v4234 = vpow.pop %v4233
        %v4235 = vmul.f32 %v4211, 1.442695
        %v4236 = vpow.pop %v4235
        %v4237 = vmul.f32 %v4212, 1.442695
        %v4238 = vpow.pop %v4237
        %v4239 = vmul.f32 %v4213, 1.442695
        %v4240 = vpow.pop %v4239
        %v4241 = vmul.f32 %v4214, 1.442695
        %v4242 = vpow.pop %v4241
        %v4243 = vmul.f32 %v4215, 1.442695
        %v4244 = vpow.pop %v4243
        %v4245 = vmul.f32 %v4216, 1.442695
        %v4246 = vpow.pop %v4245
        %v4247 = vmul.f32 %v4217, 1.442695
        %v4248 = vpow.pop %v4247
        %v4249 = vmul.f32 %v4218, 1.442695
        %v4250 = vpow.pop %v4249
        %v4251 = vadd.f32 %v4220, 1.0
        %v4252 = vadd.f32 %v4222, 1.0
        %v4253 = vadd.f32 %v4224, 1.0
        %v4254 = vadd.f32 %v4226, 1.0
        %v4255 = vadd.f32 %v4228, 1.0
        %v4256 = vadd.f32 %v4230, 1.0
        %v4257 = vadd.f32 %v4232, 1.0
        %v4258 = vadd.f32 %v4234, 1.0
        %v4259 = vadd.f32 %v4236, 1.0
        %v4260 = vadd.f32 %v4238, 1.0
        %v4261 = vadd.f32 %v4240, 1.0
        %v4262 = vadd.f32 %v4242, 1.0
        %v4263 = vadd.f32 %v4244, 1.0
        %v4264 = vadd.f32 %v4246, 1.0
        %v4265 = vadd.f32 %v4248, 1.0
        %v4266 = vadd.f32 %v4250, 1.0
        %v4267 = vrcp.pop %v4251
        %v4268 = vmul.f32 1.0, %v4267
        %v4269 = vrcp.pop %v4252
        %v4270 = vmul.f32 1.0, %v4269
        %v4271 = vrcp.pop %v4253
        %v4272 = vmul.f32 1.0, %v4271
        %v4273 = vrcp.pop %v4254
        %v4274 = vmul.f32 1.0, %v4273
        %v4275 = vrcp.pop %v4255
        %v4276 = vmul.f32 1.0, %v4275
        %v4277 = vrcp.pop %v4256
        %v4278 = vmul.f32 1.0, %v4277
        %v4279 = vrcp.pop %v4257
        %v4280 = vmul.f32 1.0, %v4279
        %v4281 = vrcp.pop %v4258
        %v4282 = vmul.f32 1.0, %v4281
        %v4283 = vrcp.pop %v4259
        %v4284 = vmul.f32 1.0, %v4283
        %v4285 = vrcp.pop %v4260
        %v4286 = vmul.f32 1.0, %v4285
        %v4287 = vrcp.pop %v4261
        %v4288 = vmul.f32 1.0, %v4287
        %v4289 = vrcp.pop %v4262
        %v4290 = vmul.f32 1.0, %v4289
        %v4291 = vrcp.pop %v4263
        %v4292 = vmul.f32 1.0, %v4291
        %v4293 = vrcp.pop %v4264
        %v4294 = vmul.f32 1.0, %v4293
        %v4295 = vrcp.pop %v4265
        %v4296 = vmul.f32 1.0, %v4295
        %v4297 = vrcp.pop %v4266
        %v4298 = vmul.f32 1.0, %v4297
        %4299 = vst [vmem:[%s653 + $0x30] sm:$0xff] %v4268
        %4300 = vst [vmem:[%s653 + $0x38] sm:$0xff] %v4270
        %4301 = vst [vmem:[%s653 + $0x70] sm:$0xff] %v4272
        %4302 = vst [vmem:[%s653 + $0x78] sm:$0xff] %v4274
        %4303 = vst [vmem:[%s653 + $0xb0] sm:$0xff] %v4276
        %4304 = vst [vmem:[%s653 + $0xb8] sm:$0xff] %v4278
        %4305 = vst [vmem:[%s653 + $0xf0] sm:$0xff] %v4280
        %4306 = vst [vmem:[%s653 + $0xf8] sm:$0xff] %v4282
        %4307 = vst [vmem:[%s653 + $0x130] sm:$0xff] %v4284
        %4308 = vst [vmem:[%s653 + $0x138] sm:$0xff] %v4286
        %4309 = vst [vmem:[%s653 + $0x170] sm:$0xff] %v4288
        %4310 = vst [vmem:[%s653 + $0x178] sm:$0xff] %v4290
        %4311 = vst [vmem:[%s653 + $0x1b0] sm:$0xff] %v4292
        %4312 = vst [vmem:[%s653 + $0x1b8] sm:$0xff] %v4294
        %4313 = vst [vmem:[%s653 + $0x1f0] sm:$0xff] %v4296
        %4314 = vst [vmem:[%s653 + $0x1f8] sm:$0xff] %v4298
        %4315 = vst [vmem:[%s670] sm:$0xff] %v2268
        %4316 = vst [vmem:[%s670 + $0x8] sm:$0xff] %v2270
        %4317 = vst [vmem:[%s670 + $0x10] sm:$0xff] %v2272
        %4318 = vst [vmem:[%s670 + $0x18] sm:$0xff] %v2274
        %4319 = vst [vmem:[%s670 + $0x20] sm:$0xff] %v2278
        %4320 = vst [vmem:[%s670 + $0x28] sm:$0xff] %v2280
        %4321 = vst [vmem:[%s670 + $0x30] sm:$0xff] %v2282
        %4322 = vst [vmem:[%s670 + $0x38] sm:$0xff] %v2284
        %4323 = vst [vmem:[%s670 + $0x40] sm:$0xff] %v2288
        %4324 = vst [vmem:[%s670 + $0x48] sm:$0xff] %v2290
        %4325 = vst [vmem:[%s670 + $0x50] sm:$0xff] %v2292
        %4326 = vst [vmem:[%s670 + $0x58] sm:$0xff] %v2294
        %4327 = vst [vmem:[%s670 + $0x60] sm:$0xff] %v2298
        %4328 = vst [vmem:[%s670 + $0x68] sm:$0xff] %v2300
        %4329 = vst [vmem:[%s670 + $0x70] sm:$0xff] %v2302
        %4330 = vst [vmem:[%s670 + $0x78] sm:$0xff] %v2304
        %s4331 = sand.u32 %s351, 1
        %s4332 = scalar_lea.sflag [#allocation4], %s4331
        %s4333 = sand.u32 %s351, 1
        %s4334 = smul.addr %s4333, 512
        %s4335 = scalar_lea.vmem [#allocation17], %s4334
        %s4336 = smul.u32 8, %s39
        %p4337 = scmp.lt.s32.totalorder %s4336, 31
        %s4338 = scalar_select %p4337, %s4336, 31
        %s4339 = smul.addr %s4338, 2
        %s4340 = smul.addr %s4339, 8
        %s4341 = scalar_lea.vmem %s15, %s4340
        // Predicated region
        $region113: #{vae_forward.1} parent=75 // pred_check
          %p4342 = pneg %p361
        $region114: #{vae_forward.1} parent=75 // pred_check_branch
          %4344 = sbr.rel (%p4342) target = $region116
        $region115: #{vae_forward.1} parent=75 // pred_region
          %s4345 = smul.u32 8, %s39
          %s4347 = ssub.s32 8192, 8192
          %4348 = vsyncadd %s4332, %s4347
          %s4349 = smul.addr %s4345, 8
          %s4350 = smul.addr %s4349, 128
          %s4351 = scalar_lea.hbm %s14, %s4350
          %s4352 = sshll.u32 %s4335, 4
          %s4353 = int_to_ptr.vmem [resolvable:$true] %s4352
          %4358 = dma.vmem_to_hbm [thread:$0]  %s4353, 8192, %s4351, %s4332, 1024, 1024, 64
        $region116: #{vae_forward.1} parent=75 // pred_fallthru
          _
        // Predicated region
        $region117: #{vae_forward.1} parent=75 // pred_check
          %p4359 = pneg %p387
        $region118: #{vae_forward.1} parent=75 // pred_check_branch
          %4361 = sbr.rel (%p4359) target = $region120
        $region119: #{vae_forward.1} parent=75 // pred_region
          %s4362 = smul.u32 8, %s39
        $region120: #{vae_forward.1} parent=75 // pred_fallthru
          _
      $region76: #{vae_forward.1} parent=5 // pred_fallthru
        _
      %p4363 = scmp.le.s32.totalorder 2, %s34
      // Predicated region
      $region121: #{vae_forward.1} parent=5 // pred_check
        %p4364 = pneg %p4363
      $region122: #{vae_forward.1} parent=5 // pred_check_branch
        %4366 = sbr.rel (%p4364) target = $region124
      $region123: #{vae_forward.1} parent=5 // pred_region
        %s4367 = ssub.s32 %s34, 2
        // Predicated region
        $region125: #{vae_forward.1} parent=123 // pred_check
          %p4368 = pneg %p367
        $region126: #{vae_forward.1} parent=123 // pred_check_branch
          %4370 = sbr.rel (%p4368) target = $region128
        $region127: #{vae_forward.1} parent=123 // pred_region
          %s4371 = sand.u32 %s352, 1
          %s4372 = scalar_lea.sflag [#allocation4], %s4371
          %s4373 = sand.u32 %s352, 1
          %s4374 = smul.addr %s4373, 512
          %s4375 = scalar_lea.vmem [#allocation17], %s4374
          %4376 = dma.done %s4372, 8192
        $region128: #{vae_forward.1} parent=123 // pred_fallthru
          _
        // Predicated region
        $region129: #{vae_forward.1} parent=123 // pred_check
          %p4377 = pneg %p393
        $region130: #{vae_forward.1} parent=123 // pred_check_branch
          %4379 = sbr.rel (%p4377) target = $region132
        $region131: #{vae_forward.1} parent=123 // pred_region
          %s4380 = smul.u32 8, %s40
          %p4381 = scmp.lt.s32.totalorder %s4380, 31
          %s4382 = scalar_select %p4381, %s4380, 31
          %s4383 = smul.addr %s4382, 2
          %s4384 = smul.addr %s4383, 8
          %s4385 = scalar_lea.vmem %s15, %s4384
        $region132: #{vae_forward.1} parent=123 // pred_fallthru
          _
      $region124: #{vae_forward.1} parent=5 // pred_fallthru
        _
    $region6: #{vae_forward.1} parent=1 // loop_footer
      %s38 = sadd.s32 1, %s34
    $region7: #{vae_forward.1} parent=1 // loop_footer_branch
      %33 = sbr.rel target = $region3
    $region8: #{vae_forward.1} parent=1 // loop_exit
      _
    %4386 = vsyncpa [#allocation3], 1
    %s4387 = scalar_lea.sflag [#allocation3], 1
    %4388 = vsyncpa %s4387, 1
    %4389 = vsyncpa [#allocation6], 1
    %s4390 = scalar_lea.sflag [#allocation6], 1
    %4391 = vsyncpa %s4390, 1
    %4392 = vsyncpa [#allocation9], 1
    %4393 = vsyncpa [#allocation12], 1
    %4394 = vsyncpa [#allocation15], 1
    %4395 = vsyncpa [#allocation4], 1
    %s4396 = scalar_lea.sflag [#allocation4], 1
    %4397 = vsyncpa %s4396, 1

</llo_original>
